<compile_context>
chip_gen: v5e
topology: v5e:2x2
jax: 0.10.0
libtpu: 0.0.40
codegen_flags: <defaults>
</compile_context>

<pallas_src>
import jax
import jax.numpy as jnp
from jax import lax
from jax.experimental import pallas as pl
from jax.experimental.pallas import tpu as pltpu

BN_EPS = 1e-5
LANE = 128

_CFG = None


def _round_up(x, m):
    return (x + m - 1) // m * m


def _get_cfg():
    """Generation-aware tile / VMEM budget (v5e/v6e: 128 MiB VMEM, v7x: 64)."""
    global _CFG
    if _CFG is None:
        vmem_cap = 64 * 1024 * 1024
        try:
            info = pltpu.get_tpu_info()
            for attr in ("vmem_capacity_bytes", "vmem_size_bytes", "vmem_bytes"):
                v = getattr(info, attr, None)
                if v:
                    vmem_cap = int(v)
                    break
        except Exception:
            pass
        if vmem_cap >= 100 * 1024 * 1024:          # v5e / v6e
            _CFG = {"vmem_limit": 96 * 1024 * 1024, "tm_max": 1024,
                    "k_whole": 4096, "tk": 2048}
        else:                                      # v7x (64 MiB per TC)
            _CFG = {"vmem_limit": 40 * 1024 * 1024, "tm_max": 512,
                    "k_whole": 4096, "tk": 2048}
    return _CFG


def _m_tiling(m, tm_max):
    """Row tile >=256 (full MXU rows on v6e/v7x). Pad M instead of shrinking."""
    for tm in (1024, 512, 256):
        if tm <= tm_max and m % tm == 0:
            return m, tm
    tm = min(256, tm_max)
    return _round_up(m, tm), tm


def _tail_tm(mpad, tm_max):
    for tm in (1024, 512, 256):
        if tm <= tm_max and mpad % tm == 0:
            return tm
    return min(mpad, 256)


# ----------------------------------------------------------------------------
# Kernel 1: tiled conv matmul (bf16 -> f32 acc) + per-tile BN partial stats.
# Single-K fast path (no scratch) and multi-K accumulator variant.
# ----------------------------------------------------------------------------
def _conv_stats_kernel_single_k(p_ref, w_ref, y_ref, st_ref):
    y = jnp.dot(p_ref[...], w_ref[...], preferred_element_type=jnp.float32)
    y_ref[...] = y.astype(y_ref.dtype)
    st_ref[...] = jnp.concatenate(
        [jnp.sum(y, axis=0, keepdims=True),
         jnp.sum(y * y, axis=0, keepdims=True)], axis=0)[None]


def _conv_stats_kernel_multi_k(p_ref, w_ref, y_ref, st_ref, acc_ref):
    k = pl.program_id(1)

    @pl.when(k == 0)
    def _():
        acc_ref[...] = jnp.zeros_like(acc_ref)

    acc_ref[...] += jnp.dot(p_ref[...], w_ref[...],
                            preferred_element_type=jnp.float32)

    @pl.when(k == pl.num_programs(1) - 1)
    def _():
        y = acc_ref[...]
        y_ref[...] = y.astype(y_ref.dtype)
        st_ref[...] = jnp.concatenate(
            [jnp.sum(y, axis=0, keepdims=True),
             jnp.sum(y * y, axis=0, keepdims=True)], axis=0)[None]


def _conv_matmul_stats(patches, w_mat, cp):
    """patches (M,K) bf16 x w_mat (K,cp) bf16 -> y (Mpad,cp) bf16, stats f32."""
    cfg = _get_cfg()
    m, kdim = patches.shape
    mpad, tm = _m_tiling(m, cfg["tm_max"])
    if mpad != m:
        patches = jnp.pad(patches, ((0, mpad - m), (0, 0)))

    if kdim <= cfg["k_whole"]:
        kpad, tk = kdim, kdim
    else:
        tk = cfg["tk"]
        kpad = _round_up(kdim, tk)
    if kpad != kdim:
        patches = jnp.pad(patches, ((0, 0), (0, kpad - kdim)))
        w_mat = jnp.pad(w_mat, ((0, kpad - kdim), (0, 0)))

    num_m, num_k = mpad // tm, kpad // tk
    out_shapes = (jax.ShapeDtypeStruct((mpad, cp), jnp.bfloat16),
                  jax.ShapeDtypeStruct((num_m, 2, cp), jnp.float32))

    if num_k == 1:
        grid_spec = pltpu.PrefetchScalarGridSpec(
            num_scalar_prefetch=0, grid=(num_m,),
            in_specs=[pl.BlockSpec((tm, tk), lambda i: (i, 0)),
                      pl.BlockSpec((tk, cp), lambda i: (0, 0))],
            out_specs=(pl.BlockSpec((tm, cp), lambda i: (i, 0)),
                       pl.BlockSpec((1, 2, cp), lambda i: (i, 0, 0))))
        kernel, dims = _conv_stats_kernel_single_k, ("parallel",)
    else:
        grid_spec = pltpu.PrefetchScalarGridSpec(
            num_scalar_prefetch=0, grid=(num_m, num_k),
            in_specs=[pl.BlockSpec((tm, tk), lambda i, k: (i, k)),
                      pl.BlockSpec((tk, cp), lambda i, k: (k, 0))],
            out_specs=(pl.BlockSpec((tm, cp), lambda i, k: (i, 0)),
                       pl.BlockSpec((1, 2, cp), lambda i, k: (i, 0, 0))),
            scratch_shapes=[pltpu.VMEM((tm, cp), jnp.float32)])
        kernel, dims = _conv_stats_kernel_multi_k, ("parallel", "arbitrary")

    y, stats = pl.pallas_call(
        kernel, out_shape=out_shapes, grid_spec=grid_spec,
        compiler_params=pltpu.CompilerParams(
            dimension_semantics=dims, vmem_limit_bytes=cfg["vmem_limit"]),
    )(patches, w_mat)
    return y, stats, mpad


# ----------------------------------------------------------------------------
# Kernel 2a: BN-apply + ReLU  (first ConvBlock tail), bf16 in / bf16 out
# ----------------------------------------------------------------------------
def _bn_relu_kernel(y_ref, s_ref, t_ref, o_ref):
    y = y_ref[...].astype(jnp.float32)
    o_ref[...] = jnp.maximum(y * s_ref[...] + t_ref[...], 0.0).astype(o_ref.dtype)


def _bn_relu(y, scale, shift):
    cfg = _get_cfg()
    mpad, cp = y.shape
    tm = _tail_tm(mpad, cfg["tm_max"])
    return pl.pallas_call(
        _bn_relu_kernel,
        out_shape=jax.ShapeDtypeStruct((mpad, cp), jnp.bfloat16),
        grid_spec=pltpu.PrefetchScalarGridSpec(
            num_scalar_prefetch=0, grid=(mpad // tm,),
            in_specs=[pl.BlockSpec((tm, cp), lambda i: (i, 0)),
                      pl.BlockSpec((1, cp), lambda i: (0, 0)),
                      pl.BlockSpec((1, cp), lambda i: (0, 0))],
            out_specs=pl.BlockSpec((tm, cp), lambda i: (i, 0))),
        compiler_params=pltpu.CompilerParams(
            dimension_semantics=("parallel",),
            vmem_limit_bytes=cfg["vmem_limit"]),
    )(y, scale, shift)


# ----------------------------------------------------------------------------
# Kernel 2b: fused block tails.
#   projection: relu( BN2(y2) + BNp(yr) )      (residual BN folded in)
#   identity  : relu( BN2(y2) + res )          (no FMA on the residual)
# ----------------------------------------------------------------------------
def _bn_add_bn_relu_kernel(y_ref, s_ref, t_ref, r_ref, sr_ref, tr_ref, o_ref):
    a = y_ref[...].astype(jnp.float32) * s_ref[...] + t_ref[...]
    b = r_ref[...].astype(jnp.float32) * sr_ref[...] + tr_ref[...]
    o_ref[...] = jnp.maximum(a + b, 0.0).astype(o_ref.dtype)


def _bn_add_relu_kernel(y_ref, s_ref, t_ref, r_ref, o_ref):
    a = y_ref[...].astype(jnp.float32) * s_ref[...] + t_ref[...]
    o_ref[...] = jnp.maximum(a + r_ref[...].astype(jnp.float32), 0.0
                             ).astype(o_ref.dtype)


def _fused_tail(y, scale, shift, res, scale_r=None, shift_r=None):
    cfg = _get_cfg()
    mpad, cp = y.shape
    tm = _tail_tm(mpad, cfg["tm_max"])
    row = pl.BlockSpec((tm, cp), lambda i: (i, 0))
    vec = pl.BlockSpec((1, cp), lambda i: (0, 0))
    if scale_r is None:                      # identity residual: skip the FMA
        kernel, in_specs, args = (_bn_add_relu_kernel,
                                  [row, vec, vec, row],
                                  (y, scale, shift, res))
    else:
        kernel, in_specs, args = (_bn_add_bn_relu_kernel,
                                  [row, vec, vec, row, vec, vec],
                                  (y, scale, shift, res, scale_r, shift_r))
    return pl.pallas_call(
        kernel,
        out_shape=jax.ShapeDtypeStruct((mpad, cp), jnp.float32),
        grid_spec=pltpu.PrefetchScalarGridSpec(
            num_scalar_prefetch=0, grid=(mpad // tm,),
            in_specs=in_specs, out_specs=row),
        compiler_params=pltpu.CompilerParams(
            dimension_semantics=("parallel",),
            vmem_limit_bytes=cfg["vmem_limit"]),
    )(*args)


# ----------------------------------------------------------------------------
# JAX-side glue (layout plumbing + parameter-sized math only)
# ----------------------------------------------------------------------------
def _im2col(x_nhwc, k, stride, padding):
    n, h, w, c = x_nhwc.shape
    xp = jnp.pad(x_nhwc, ((0, 0), (padding, padding), (padding, padding), (0, 0)))
    ho = (h + 2 * padding - k) // stride + 1
    wo = (w + 2 * padding - k) // stride + 1
    cols = []
    for kh in range(k):
        for kw in range(k):
            cols.append(xp[:, kh:kh + stride * ho:stride,
                           kw:kw + stride * wo:stride, :])
    patches = jnp.concatenate(cols, axis=-1)              # [N,Ho,Wo,K*K*C]
    return patches.reshape(n * ho * wo, k * k * c), ho, wo


def _weight_matrix(w, cin_total, cp):
    """Conv weight [K,K,Cin,Cout] -> [(K*K*cin_total), cp] bf16, zero-padded."""
    kh, kw, cin, cout = w.shape
    wf = jnp.zeros((kh, kw, cin_total, cp), jnp.bfloat16)
    wf = wf.at[:, :, :cin, :cout].set(w.astype(jnp.bfloat16))
    return wf.reshape(kh * kw * cin_total, cp)


def _pad_vec(v, cp):
    return jnp.pad(v.astype(jnp.float32), (0, cp - v.shape[0]))


def _bn_scale_shift(stats, gamma_p, beta_p, m_rows):
    """Fold training-mode batch statistics into per-channel scale/shift."""
    ssum = jnp.sum(stats[:, 0, :], axis=0)
    ssq = jnp.sum(stats[:, 1, :], axis=0)
    mean = ssum / m_rows
    var = jnp.maximum(ssq / m_rows - mean * mean, 0.0)     # biased variance
    scale = gamma_p * lax.rsqrt(var + BN_EPS)
    shift = beta_p - mean * scale
    return scale.reshape(1, -1), shift.reshape(1, -1)


# ----------------------------------------------------------------------------
# ResidualBlock forward (NCHW in / NCHW out, like the PyTorch module)
# ----------------------------------------------------------------------------
def residual_block(x_nchw, params, in_channels, out_channels):
    projection = in_channels != out_channels
    stride = 2 if projection else 1
    n = x_nchw.shape[0]
    cp = _round_up(out_channels, LANE)

    x = jnp.transpose(x_nchw, (0, 2, 3, 1))                # NCHW -> NHWC
    x_bf = x.astype(jnp.bfloat16)

    # --- c1: 3x3 conv (stride) + BN + ReLU ----------------------------------
    # Conv bias is intentionally dropped: under training-mode BatchNorm it
    # cancels exactly (mean absorbs it, variance unchanged).
    w1, _, g1, be1 = params["c1"]
    p1, ho, wo = _im2col(x_bf, 3, stride, 1)
    m = p1.shape[0]
    y1, st1, mpad = _conv_matmul_stats(p1, _weight_matrix(w1, in_channels, cp), cp)
    s1, t1 = _bn_scale_shift(st1, _pad_vec(g1, cp), _pad_vec(be1, cp), m)
    f = _bn_relu(y1, s1, t1)                               # (Mpad, Cp) bf16

    # --- c2: 3x3 conv (stride 1) + BN (folded into the fused tail) ----------
    # Padded Cp channels are carried through (zero weight rows for dead ch).
    w2, _, g2, be2 = params["c2"]
    f_img = f[:m].reshape(n, ho, wo, cp)                   # strip pad rows only
    p2, ho2, wo2 = _im2col(f_img, 3, 1, 1)
    y2, st2, mpad2 = _conv_matmul_stats(p2, _weight_matrix(w2, cp, cp), cp)
    assert (ho2, wo2, mpad2) == (ho, wo, mpad)
    s2, t2 = _bn_scale_shift(st2, _pad_vec(g2, cp), _pad_vec(be2, cp), m)

    # --- residual branch -----------------------------------------------------
    if projection:
        wp, _, gp, bep = params["p"]
        pp = x_bf[:, ::2, ::2, :].reshape(m, in_channels)  # 1x1 stride-2 "im2col"
        yr, stp, mpad_r = _conv_matmul_stats(pp, _weight_matrix(wp, in_channels, cp), cp)
        assert mpad_r == mpad
        sr, tr = _bn_scale_shift(stp, _pad_vec(gp, cp), _pad_vec(bep, cp), m)
        h_out = _fused_tail(y2, s2, t2, yr, sr, tr)
    else:
        assert in_channels == out_channels
        res = jnp.pad(x_bf.reshape(m, in_channels),        # bf16 pad (not f32)
                      ((0, mpad - m), (0, cp - in_channels)))
        h_out = _fused_tail(y2, s2, t2, res)               # identity: no FMA

    h_img = h_out[:m].reshape(n, ho, wo, cp)[:, :, :, :out_channels]
    return jnp.transpose(h_img, (0, 3, 1, 2))              # NHWC -> NCHW


# ----------------------------------------------------------------------------
# Pure-JAX reference (bf16 MXU feeds, training-mode BN, WITH bias) — the bias
# cancels under BN, so it also validates the bias-drop in the kernel path.
# ----------------------------------------------------------------------------
def _conv_bn_ref(x_nhwc, params, stride, padding):
    w, b, gamma, beta = params
    y = lax.conv_general_dilated(
        x_nhwc.astype(jnp.bfloat16), w.astype(jnp.bfloat16),
        (stride, stride), [(padding, padding), (padding, padding)],
        dimension_numbers=("NHWC", "HWIO", "NHWC"),
        preferred_element_type=jnp.float32) + b
    mean = jnp.mean(y, axis=(0, 1, 2))
    var = jnp.mean((y - mean) ** 2, axis=(0, 1, 2))
    return (y - mean) * lax.rsqrt(var + BN_EPS) * gamma + beta


def residual_block_ref(x_nchw, params, in_channels, out_channels):
    projection = in_channels != out_channels
    stride = 2 if projection else 1
    x = jnp.transpose(x_nchw, (0, 2, 3, 1))
    f = jax.nn.relu(_conv_bn_ref(x, params["c1"], stride, 1))
    g = _conv_bn_ref(f, params["c2"], 1, 1)
    r = _conv_bn_ref(x, params["p"], 2, 0) if projection else x
    return jnp.transpose(jax.nn.relu(g + r), (0, 3, 1, 2))


# ----------------------------------------------------------------------------
# Deterministic parameter init
# ----------------------------------------------------------------------------
def _init_conv_block_params(key, k, cin, cout):
    kw, kb, kg, kbe = jax.random.split(key, 4)
    scale = 1.0 / (k * k * cin) ** 0.5
    w = jax.random.uniform(kw, (k, k, cin, cout), jnp.float32, -scale, scale)
    b = jax.random.uniform(kb, (cout,), jnp.float32, -scale, scale)
    gamma = 1.0 + 0.1 * jax.random.normal(kg, (cout,), jnp.float32)
    beta = 0.1 * jax.random.normal(kbe, (cout,), jnp.float32)
    return (w, b, gamma, beta)


def _make_params(key, cin, cout, projection):
    k1, k2, k3 = jax.random.split(key, 3)
    p = {"c1": _init_conv_block_params(k1, 3, cin, cout),
         "c2": _init_conv_block_params(k2, 3, cout, cout)}
    if projection:
        p["p"] = _init_conv_block_params(k3, 1, cin, cout)
    return p


if __name__ == "__main__":
    root = jax.random.PRNGKey(0)
    k_x1, k_p1, k_x2, k_p2 = jax.random.split(root, 4)

    run = jax.jit(residual_block, static_argnums=(2, 3))
    N, H, W = 2, 16, 16

    # Case 1: projection path (in != out -> stride 2 + 1x1 projection).
    cin1, cout1 = 4, 8
    x1 = jax.random.normal(k_x1, (N, cin1, H, W), jnp.float32)
    params1 = _make_params(k_p1, cin1, cout1, projection=True)
    out1 = jax.block_until_ready(run(x1, params1, cin1, cout1))
    ref1 = residual_block_ref(x1, params1, cin1, cout1)
    assert out1.shape == (N, cout1, H // 2, W // 2), out1.shape
    assert jnp.allclose(out1, ref1, atol=2e-2, rtol=2e-2), \
        float(jnp.max(jnp.abs(out1 - ref1)))

    # Case 2: identity path (in == out -> stride 1, identity residual).
    cin2 = cout2 = 8
    x2 = jax.random.normal(k_x2, (N, cin2, H, W), jnp.float32)
    params2 = _make_params(k_p2, cin2, cout2, projection=False)
    out2 = jax.block_until_ready(run(x2, params2, cin2, cout2))
    ref2 = residual_block_ref(x2, params2, cin2, cout2)
    assert out2.shape == (N, cout2, H, W), out2.shape
    assert jnp.allclose(out2, ref2, atol=2e-2, rtol=2e-2), \
        float(jnp.max(jnp.abs(out2 - ref2)))

    print("KERNEL_OK")
</pallas_src>

<mosaic_0001>
module attributes {stable_mosaic.version = 11 : i64} {
  func.func @_conv_stats_kernel_single_k(%arg0: i32, %arg1: memref<256x36xbf16, #tpu.memory_space<vmem>>, %arg2: memref<36x128xbf16, #tpu.memory_space<vmem>>, %arg3: memref<256x128xbf16, #tpu.memory_space<vmem>>, %arg4: memref<1x2x128xf32, #tpu.memory_space<vmem>>) attributes {dimension_semantics = [#tpu.dimension_semantics<parallel>], iteration_bounds = array<i64: 1>, scalar_prefetch = 0 : i64, scratch_operands = 0 : i64, tpu.core_type = #tpu.core_type<tc>, window_params = [{transform_indices = @transform_0, window_bounds = array<i64: 256, 36>}, {pipeline_mode = #tpu.pipeline_mode<synchronous>, transform_indices = @transform_1, window_bounds = array<i64: 36, 128>}, {transform_indices = @transform_2, window_bounds = array<i64: 256, 128>}, {transform_indices = @transform_3, window_bounds = array<i64: 1, 2, 128>}]} {
    %c0 = arith.constant 0 : index
    %c0_0 = arith.constant 0 : index
    %0 = vector.load %arg1[%c0, %c0_0] : memref<256x36xbf16, #tpu.memory_space<vmem>>, vector<256x36xbf16>
    %c0_1 = arith.constant 0 : index
    %c0_2 = arith.constant 0 : index
    %1 = vector.load %arg2[%c0_1, %c0_2] : memref<36x128xbf16, #tpu.memory_space<vmem>>, vector<36x128xbf16>
    %cst = arith.constant dense<0.000000e+00> : vector<256x128xf32>
    %2 = tpu.matmul %0, %1, %cst {dimension_numbers = #tpu.dot_dimension_numbers<[1], [0], [0], [1], [0, 0, 1, 1], [], []>} : vector<256x36xbf16>, vector<36x128xbf16>, vector<256x128xf32> -> vector<256x128xf32>
    %3 = arith.truncf %2 : vector<256x128xf32> to vector<256x128xbf16>
    %c0_3 = arith.constant 0 : index
    %c0_4 = arith.constant 0 : index
    %4 = vector.load %arg3[%c0_3, %c0_4] : memref<256x128xbf16, #tpu.memory_space<vmem>>, vector<256x128xbf16>
    tpu.vector_store %arg3[%c0_3, %c0_4], %3 {strides = array<i32>} : memref<256x128xbf16, #tpu.memory_space<vmem>>, vector<256x128xbf16>,
    %cst_5 = arith.constant dense<0.000000e+00> : vector<128xf32>
    %5 = vector.multi_reduction <add>, %2, %cst_5 [0] : vector<256x128xf32> to vector<128xf32>
    %6 = vector.shape_cast %5 : vector<128xf32> to vector<1x128xf32>
    %7 = arith.mulf %2, %2 : vector<256x128xf32>
    %cst_6 = arith.constant dense<0.000000e+00> : vector<128xf32>
    %8 = vector.multi_reduction <add>, %7, %cst_6 [0] : vector<256x128xf32> to vector<128xf32>
    %9 = vector.shape_cast %8 : vector<128xf32> to vector<1x128xf32>
    %10 = tpu.concatenate %6, %9 in 0 : vector<1x128xf32>, vector<1x128xf32> -> vector<2x128xf32>
    %11 = vector.shape_cast %10 : vector<2x128xf32> to vector<1x2x128xf32>
    %c0_7 = arith.constant 0 : index
    %c0_8 = arith.constant 0 : index
    %c0_9 = arith.constant 0 : index
    %12 = vector.load %arg4[%c0_7, %c0_8, %c0_9] : memref<1x2x128xf32, #tpu.memory_space<vmem>>, vector<1x2x128xf32>
    tpu.vector_store %arg4[%c0_7, %c0_8, %c0_9], %11 {strides = array<i32>} : memref<1x2x128xf32, #tpu.memory_space<vmem>>, vector<1x2x128xf32>,
    return
  }
  func.func @transform_0(%arg0: i32) -> (i32, i32) {
    %c0_i32 = arith.constant 0 : i32
    %c0_i32_0 = arith.constant 0 : i32
    return %arg0, %c0_i32 : i32, i32
  }
  func.func @transform_1(%arg0: i32) -> (i32, i32) {
    %c0_i32 = arith.constant 0 : i32
    %c0_i32_0 = arith.constant 0 : i32
    %c0_i32_1 = arith.constant 0 : i32
    return %c0_i32, %c0_i32_0 : i32, i32
  }
  func.func @transform_2(%arg0: i32) -> (i32, i32) {
    %c0_i32 = arith.constant 0 : i32
    %c0_i32_0 = arith.constant 0 : i32
    return %arg0, %c0_i32 : i32, i32
  }
  func.func @transform_3(%arg0: i32) -> (i32, i32, i32) {
    %c0_i32 = arith.constant 0 : i32
    %c0_i32_0 = arith.constant 0 : i32
    %c0_i32_1 = arith.constant 0 : i32
    return %arg0, %c0_i32, %c0_i32_0 : i32, i32, i32
  }
}

module attributes {stable_mosaic.version = 11 : i64} {
  func.func @_bn_relu_kernel(%arg0: i32, %arg1: memref<256x128xbf16, #tpu.memory_space<vmem>>, %arg2: memref<1x128xf32, #tpu.memory_space<vmem>>, %arg3: memref<1x128xf32, #tpu.memory_space<vmem>>, %arg4: memref<256x128xbf16, #tpu.memory_space<vmem>>) attributes {dimension_semantics = [#tpu.dimension_semantics<parallel>], iteration_bounds = array<i64: 1>, scalar_prefetch = 0 : i64, scratch_operands = 0 : i64, tpu.core_type = #tpu.core_type<tc>, window_params = [{transform_indices = @transform_0, window_bounds = array<i64: 256, 128>}, {pipeline_mode = #tpu.pipeline_mode<synchronous>, transform_indices = @transform_1, window_bounds = array<i64: 1, 128>}, {pipeline_mode = #tpu.pipeline_mode<synchronous>, transform_indices = @transform_2, window_bounds = array<i64: 1, 128>}, {transform_indices = @transform_3, window_bounds = array<i64: 256, 128>}]} {
    %c0 = arith.constant 0 : index
    %c0_0 = arith.constant 0 : index
    %0 = vector.load %arg1[%c0, %c0_0] : memref<256x128xbf16, #tpu.memory_space<vmem>>, vector<256x128xbf16>
    %1 = arith.extf %0 : vector<256x128xbf16> to vector<256x128xf32>
    %c0_1 = arith.constant 0 : index
    %c0_2 = arith.constant 0 : index
    %2 = vector.load %arg2[%c0_1, %c0_2] : memref<1x128xf32, #tpu.memory_space<vmem>>, vector<1x128xf32>
    %3 = vector.broadcast %2 : vector<1x128xf32> to vector<256x128xf32>
    %4 = arith.mulf %1, %3 : vector<256x128xf32>
    %c0_3 = arith.constant 0 : index
    %c0_4 = arith.constant 0 : index
    %5 = vector.load %arg3[%c0_3, %c0_4] : memref<1x128xf32, #tpu.memory_space<vmem>>, vector<1x128xf32>
    %6 = vector.broadcast %5 : vector<1x128xf32> to vector<256x128xf32>
    %7 = arith.addf %4, %6 : vector<256x128xf32>
    %cst = arith.constant 0.000000e+00 : f32
    %8 = vector.broadcast %cst : f32 to vector<256x128xf32>
    %9 = arith.maximumf %7, %8 : vector<256x128xf32>
    %10 = arith.truncf %9 : vector<256x128xf32> to vector<256x128xbf16>
    %c0_5 = arith.constant 0 : index
    %c0_6 = arith.constant 0 : index
    %11 = vector.load %arg4[%c0_5, %c0_6] : memref<256x128xbf16, #tpu.memory_space<vmem>>, vector<256x128xbf16>
    tpu.vector_store %arg4[%c0_5, %c0_6], %10 {strides = array<i32>} : memref<256x128xbf16, #tpu.memory_space<vmem>>, vector<256x128xbf16>,
    return
  }
  func.func @transform_0(%arg0: i32) -> (i32, i32) {
    %c0_i32 = arith.constant 0 : i32
    %c0_i32_0 = arith.constant 0 : i32
    return %arg0, %c0_i32 : i32, i32
  }
  func.func @transform_1(%arg0: i32) -> (i32, i32) {
    %c0_i32 = arith.constant 0 : i32
    %c0_i32_0 = arith.constant 0 : i32
    %c0_i32_1 = arith.constant 0 : i32
    return %c0_i32, %c0_i32_0 : i32, i32
  }
  func.func @transform_2(%arg0: i32) -> (i32, i32) {
    %c0_i32 = arith.constant 0 : i32
    %c0_i32_0 = arith.constant 0 : i32
    %c0_i32_1 = arith.constant 0 : i32
    return %c0_i32, %c0_i32_0 : i32, i32
  }
  func.func @transform_3(%arg0: i32) -> (i32, i32) {
    %c0_i32 = arith.constant 0 : i32
    %c0_i32_0 = arith.constant 0 : i32
    return %arg0, %c0_i32 : i32, i32
  }
}

module attributes {stable_mosaic.version = 11 : i64} {
  func.func @_conv_stats_kernel_single_k(%arg0: i32, %arg1: memref<256x1152xbf16, #tpu.memory_space<vmem>>, %arg2: memref<1152x128xbf16, #tpu.memory_space<vmem>>, %arg3: memref<256x128xbf16, #tpu.memory_space<vmem>>, %arg4: memref<1x2x128xf32, #tpu.memory_space<vmem>>) attributes {dimension_semantics = [#tpu.dimension_semantics<parallel>], iteration_bounds = array<i64: 1>, scalar_prefetch = 0 : i64, scratch_operands = 0 : i64, tpu.core_type = #tpu.core_type<tc>, window_params = [{transform_indices = @transform_0, window_bounds = array<i64: 256, 1152>}, {pipeline_mode = #tpu.pipeline_mode<synchronous>, transform_indices = @transform_1, window_bounds = array<i64: 1152, 128>}, {transform_indices = @transform_2, window_bounds = array<i64: 256, 128>}, {transform_indices = @transform_3, window_bounds = array<i64: 1, 2, 128>}]} {
    %c0 = arith.constant 0 : index
    %c0_0 = arith.constant 0 : index
    %0 = vector.load %arg1[%c0, %c0_0] : memref<256x1152xbf16, #tpu.memory_space<vmem>>, vector<256x1152xbf16>
    %c0_1 = arith.constant 0 : index
    %c0_2 = arith.constant 0 : index
    %1 = vector.load %arg2[%c0_1, %c0_2] : memref<1152x128xbf16, #tpu.memory_space<vmem>>, vector<1152x128xbf16>
    %cst = arith.constant dense<0.000000e+00> : vector<256x128xf32>
    %2 = tpu.matmul %0, %1, %cst {dimension_numbers = #tpu.dot_dimension_numbers<[1], [0], [0], [1], [0, 0, 1, 1], [], []>} : vector<256x1152xbf16>, vector<1152x128xbf16>, vector<256x128xf32> -> vector<256x128xf32>
    %3 = arith.truncf %2 : vector<256x128xf32> to vector<256x128xbf16>
    %c0_3 = arith.constant 0 : index
    %c0_4 = arith.constant 0 : index
    %4 = vector.load %arg3[%c0_3, %c0_4] : memref<256x128xbf16, #tpu.memory_space<vmem>>, vector<256x128xbf16>
    tpu.vector_store %arg3[%c0_3, %c0_4], %3 {strides = array<i32>} : memref<256x128xbf16, #tpu.memory_space<vmem>>, vector<256x128xbf16>,
    %cst_5 = arith.constant dense<0.000000e+00> : vector<128xf32>
    %5 = vector.multi_reduction <add>, %2, %cst_5 [0] : vector<256x128xf32> to vector<128xf32>
    %6 = vector.shape_cast %5 : vector<128xf32> to vector<1x128xf32>
    %7 = arith.mulf %2, %2 : vector<256x128xf32>
    %cst_6 = arith.constant dense<0.000000e+00> : vector<128xf32>
    %8 = vector.multi_reduction <add>, %7, %cst_6 [0] : vector<256x128xf32> to vector<128xf32>
    %9 = vector.shape_cast %8 : vector<128xf32> to vector<1x128xf32>
    %10 = tpu.concatenate %6, %9 in 0 : vector<1x128xf32>, vector<1x128xf32> -> vector<2x128xf32>
    %11 = vector.shape_cast %10 : vector<2x128xf32> to vector<1x2x128xf32>
    %c0_7 = arith.constant 0 : index
    %c0_8 = arith.constant 0 : index
    %c0_9 = arith.constant 0 : index
    %12 = vector.load %arg4[%c0_7, %c0_8, %c0_9] : memref<1x2x128xf32, #tpu.memory_space<vmem>>, vector<1x2x128xf32>
    tpu.vector_store %arg4[%c0_7, %c0_8, %c0_9], %11 {strides = array<i32>} : memref<1x2x128xf32, #tpu.memory_space<vmem>>, vector<1x2x128xf32>,
    return
  }
  func.func @transform_0(%arg0: i32) -> (i32, i32) {
    %c0_i32 = arith.constant 0 : i32
    %c0_i32_0 = arith.constant 0 : i32
    return %arg0, %c0_i32 : i32, i32
  }
  func.func @transform_1(%arg0: i32) -> (i32, i32) {
    %c0_i32 = arith.constant 0 : i32
    %c0_i32_0 = arith.constant 0 : i32
    %c0_i32_1 = arith.constant 0 : i32
    return %c0_i32, %c0_i32_0 : i32, i32
  }
  func.func @transform_2(%arg0: i32) -> (i32, i32) {
    %c0_i32 = arith.constant 0 : i32
    %c0_i32_0 = arith.constant 0 : i32
    return %arg0, %c0_i32 : i32, i32
  }
  func.func @transform_3(%arg0: i32) -> (i32, i32, i32) {
    %c0_i32 = arith.constant 0 : i32
    %c0_i32_0 = arith.constant 0 : i32
    %c0_i32_1 = arith.constant 0 : i32
    return %arg0, %c0_i32, %c0_i32_0 : i32, i32, i32
  }
}

module attributes {stable_mosaic.version = 11 : i64} {
  func.func @_conv_stats_kernel_single_k(%arg0: i32, %arg1: memref<256x4xbf16, #tpu.memory_space<vmem>>, %arg2: memref<4x128xbf16, #tpu.memory_space<vmem>>, %arg3: memref<256x128xbf16, #tpu.memory_space<vmem>>, %arg4: memref<1x2x128xf32, #tpu.memory_space<vmem>>) attributes {dimension_semantics = [#tpu.dimension_semantics<parallel>], iteration_bounds = array<i64: 1>, scalar_prefetch = 0 : i64, scratch_operands = 0 : i64, tpu.core_type = #tpu.core_type<tc>, window_params = [{transform_indices = @transform_0, window_bounds = array<i64: 256, 4>}, {pipeline_mode = #tpu.pipeline_mode<synchronous>, transform_indices = @transform_1, window_bounds = array<i64: 4, 128>}, {transform_indices = @transform_2, window_bounds = array<i64: 256, 128>}, {transform_indices = @transform_3, window_bounds = array<i64: 1, 2, 128>}]} {
    %c0 = arith.constant 0 : index
    %c0_0 = arith.constant 0 : index
    %0 = vector.load %arg1[%c0, %c0_0] : memref<256x4xbf16, #tpu.memory_space<vmem>>, vector<256x4xbf16>
    %c0_1 = arith.constant 0 : index
    %c0_2 = arith.constant 0 : index
    %1 = vector.load %arg2[%c0_1, %c0_2] : memref<4x128xbf16, #tpu.memory_space<vmem>>, vector<4x128xbf16>
    %cst = arith.constant dense<0.000000e+00> : vector<256x128xf32>
    %2 = tpu.matmul %0, %1, %cst {dimension_numbers = #tpu.dot_dimension_numbers<[1], [0], [0], [1], [0, 0, 1, 1], [], []>} : vector<256x4xbf16>, vector<4x128xbf16>, vector<256x128xf32> -> vector<256x128xf32>
    %3 = arith.truncf %2 : vector<256x128xf32> to vector<256x128xbf16>
    %c0_3 = arith.constant 0 : index
    %c0_4 = arith.constant 0 : index
    %4 = vector.load %arg3[%c0_3, %c0_4] : memref<256x128xbf16, #tpu.memory_space<vmem>>, vector<256x128xbf16>
    tpu.vector_store %arg3[%c0_3, %c0_4], %3 {strides = array<i32>} : memref<256x128xbf16, #tpu.memory_space<vmem>>, vector<256x128xbf16>,
    %cst_5 = arith.constant dense<0.000000e+00> : vector<128xf32>
    %5 = vector.multi_reduction <add>, %2, %cst_5 [0] : vector<256x128xf32> to vector<128xf32>
    %6 = vector.shape_cast %5 : vector<128xf32> to vector<1x128xf32>
    %7 = arith.mulf %2, %2 : vector<256x128xf32>
    %cst_6 = arith.constant dense<0.000000e+00> : vector<128xf32>
    %8 = vector.multi_reduction <add>, %7, %cst_6 [0] : vector<256x128xf32> to vector<128xf32>
    %9 = vector.shape_cast %8 : vector<128xf32> to vector<1x128xf32>
    %10 = tpu.concatenate %6, %9 in 0 : vector<1x128xf32>, vector<1x128xf32> -> vector<2x128xf32>
    %11 = vector.shape_cast %10 : vector<2x128xf32> to vector<1x2x128xf32>
    %c0_7 = arith.constant 0 : index
    %c0_8 = arith.constant 0 : index
    %c0_9 = arith.constant 0 : index
    %12 = vector.load %arg4[%c0_7, %c0_8, %c0_9] : memref<1x2x128xf32, #tpu.memory_space<vmem>>, vector<1x2x128xf32>
    tpu.vector_store %arg4[%c0_7, %c0_8, %c0_9], %11 {strides = array<i32>} : memref<1x2x128xf32, #tpu.memory_space<vmem>>, vector<1x2x128xf32>,
    return
  }
  func.func @transform_0(%arg0: i32) -> (i32, i32) {
    %c0_i32 = arith.constant 0 : i32
    %c0_i32_0 = arith.constant 0 : i32
    return %arg0, %c0_i32 : i32, i32
  }
  func.func @transform_1(%arg0: i32) -> (i32, i32) {
    %c0_i32 = arith.constant 0 : i32
    %c0_i32_0 = arith.constant 0 : i32
    %c0_i32_1 = arith.constant 0 : i32
    return %c0_i32, %c0_i32_0 : i32, i32
  }
  func.func @transform_2(%arg0: i32) -> (i32, i32) {
    %c0_i32 = arith.constant 0 : i32
    %c0_i32_0 = arith.constant 0 : i32
    return %arg0, %c0_i32 : i32, i32
  }
  func.func @transform_3(%arg0: i32) -> (i32, i32, i32) {
    %c0_i32 = arith.constant 0 : i32
    %c0_i32_0 = arith.constant 0 : i32
    %c0_i32_1 = arith.constant 0 : i32
    return %arg0, %c0_i32, %c0_i32_0 : i32, i32, i32
  }
}

module attributes {stable_mosaic.version = 11 : i64} {
  func.func @_bn_add_bn_relu_kernel(%arg0: i32, %arg1: memref<256x128xbf16, #tpu.memory_space<vmem>>, %arg2: memref<1x128xf32, #tpu.memory_space<vmem>>, %arg3: memref<1x128xf32, #tpu.memory_space<vmem>>, %arg4: memref<256x128xbf16, #tpu.memory_space<vmem>>, %arg5: memref<1x128xf32, #tpu.memory_space<vmem>>, %arg6: memref<1x128xf32, #tpu.memory_space<vmem>>, %arg7: memref<256x128xf32, #tpu.memory_space<vmem>>) attributes {dimension_semantics = [#tpu.dimension_semantics<parallel>], iteration_bounds = array<i64: 1>, scalar_prefetch = 0 : i64, scratch_operands = 0 : i64, tpu.core_type = #tpu.core_type<tc>, window_params = [{transform_indices = @transform_0, window_bounds = array<i64: 256, 128>}, {pipeline_mode = #tpu.pipeline_mode<synchronous>, transform_indices = @transform_1, window_bounds = array<i64: 1, 128>}, {pipeline_mode = #tpu.pipeline_mode<synchronous>, transform_indices = @transform_2, window_bounds = array<i64: 1, 128>}, {transform_indices = @transform_3, window_bounds = array<i64: 256, 128>}, {pipeline_mode = #tpu.pipeline_mode<synchronous>, transform_indices = @transform_4, window_bounds = array<i64: 1, 128>}, {pipeline_mode = #tpu.pipeline_mode<synchronous>, transform_indices = @transform_5, window_bounds = array<i64: 1, 128>}, {transform_indices = @transform_6, window_bounds = array<i64: 256, 128>}]} {
    %c0 = arith.constant 0 : index
    %c0_0 = arith.constant 0 : index
    %0 = vector.load %arg1[%c0, %c0_0] : memref<256x128xbf16, #tpu.memory_space<vmem>>, vector<256x128xbf16>
    %1 = arith.extf %0 : vector<256x128xbf16> to vector<256x128xf32>
    %c0_1 = arith.constant 0 : index
    %c0_2 = arith.constant 0 : index
    %2 = vector.load %arg2[%c0_1, %c0_2] : memref<1x128xf32, #tpu.memory_space<vmem>>, vector<1x128xf32>
    %3 = vector.broadcast %2 : vector<1x128xf32> to vector<256x128xf32>
    %4 = arith.mulf %1, %3 : vector<256x128xf32>
    %c0_3 = arith.constant 0 : index
    %c0_4 = arith.constant 0 : index
    %5 = vector.load %arg3[%c0_3, %c0_4] : memref<1x128xf32, #tpu.memory_space<vmem>>, vector<1x128xf32>
    %6 = vector.broadcast %5 : vector<1x128xf32> to vector<256x128xf32>
    %7 = arith.addf %4, %6 : vector<256x128xf32>
    %c0_5 = arith.constant 0 : index
    %c0_6 = arith.constant 0 : index
    %8 = vector.load %arg4[%c0_5, %c0_6] : memref<256x128xbf16, #tpu.memory_space<vmem>>, vector<256x128xbf16>
    %9 = arith.extf %8 : vector<256x128xbf16> to vector<256x128xf32>
    %c0_7 = arith.constant 0 : index
    %c0_8 = arith.constant 0 : index
    %10 = vector.load %arg5[%c0_7, %c0_8] : memref<1x128xf32, #tpu.memory_space<vmem>>, vector<1x128xf32>
    %11 = vector.broadcast %10 : vector<1x128xf32> to vector<256x128xf32>
    %12 = arith.mulf %9, %11 : vector<256x128xf32>
    %c0_9 = arith.constant 0 : index
    %c0_10 = arith.constant 0 : index
    %13 = vector.load %arg6[%c0_9, %c0_10] : memref<1x128xf32, #tpu.memory_space<vmem>>, vector<1x128xf32>
    %14 = vector.broadcast %13 : vector<1x128xf32> to vector<256x128xf32>
    %15 = arith.addf %12, %14 : vector<256x128xf32>
    %16 = arith.addf %7, %15 : vector<256x128xf32>
    %cst = arith.constant 0.000000e+00 : f32
    %17 = vector.broadcast %cst : f32 to vector<256x128xf32>
    %18 = arith.maximumf %16, %17 : vector<256x128xf32>
    %c0_11 = arith.constant 0 : index
    %c0_12 = arith.constant 0 : index
    %19 = vector.load %arg7[%c0_11, %c0_12] : memref<256x128xf32, #tpu.memory_space<vmem>>, vector<256x128xf32>
    tpu.vector_store %arg7[%c0_11, %c0_12], %18 {strides = array<i32>} : memref<256x128xf32, #tpu.memory_space<vmem>>, vector<256x128xf32>,
    return
  }
  func.func @transform_0(%arg0: i32) -> (i32, i32) {
    %c0_i32 = arith.constant 0 : i32
    %c0_i32_0 = arith.constant 0 : i32
    return %arg0, %c0_i32 : i32, i32
  }
  func.func @transform_1(%arg0: i32) -> (i32, i32) {
    %c0_i32 = arith.constant 0 : i32
    %c0_i32_0 = arith.constant 0 : i32
    %c0_i32_1 = arith.constant 0 : i32
    return %c0_i32, %c0_i32_0 : i32, i32
  }
  func.func @transform_2(%arg0: i32) -> (i32, i32) {
    %c0_i32 = arith.constant 0 : i32
    %c0_i32_0 = arith.constant 0 : i32
    %c0_i32_1 = arith.constant 0 : i32
    return %c0_i32, %c0_i32_0 : i32, i32
  }
  func.func @transform_3(%arg0: i32) -> (i32, i32) {
    %c0_i32 = arith.constant 0 : i32
    %c0_i32_0 = arith.constant 0 : i32
    return %arg0, %c0_i32 : i32, i32
  }
  func.func @transform_4(%arg0: i32) -> (i32, i32) {
    %c0_i32 = arith.constant 0 : i32
    %c0_i32_0 = arith.constant 0 : i32
    %c0_i32_1 = arith.constant 0 : i32
    return %c0_i32, %c0_i32_0 : i32, i32
  }
  func.func @transform_5(%arg0: i32) -> (i32, i32) {
    %c0_i32 = arith.constant 0 : i32
    %c0_i32_0 = arith.constant 0 : i32
    %c0_i32_1 = arith.constant 0 : i32
    return %c0_i32, %c0_i32_0 : i32, i32
  }
  func.func @transform_6(%arg0: i32) -> (i32, i32) {
    %c0_i32 = arith.constant 0 : i32
    %c0_i32_0 = arith.constant 0 : i32
    return %arg0, %c0_i32 : i32, i32
  }
}

</mosaic_0001>

<llo_original>
// kernel: residual_block.6
$region0: #{residual_block.6}
  #allocation0 [shape = 'u32[]', space=smem, size = 0x4, offset = 0x4, fixed_abs, tag = 'smem constant byte address 0x4 - core index']
  #allocation1 [shape = 'u32[72,128]{1,0:T(1,128)}', space=vmem, size = 0x9000, scoped, tag = 'internal scratch']
  %s0 = inlined_call_operand.vmem [shape: bf16[256,128], index: 0, kind: input, shape index: {}]
  %s1 = inlined_call_operand.vmem [shape: f32[1,128], index: 1, kind: input, shape index: {}]
  %s2 = inlined_call_operand.vmem [shape: f32[1,128], index: 2, kind: input, shape index: {}]
  %s3 = inlined_call_operand.vmem [shape: bf16[256,128], index: 3, kind: output, shape index: {}]
  %s4 = sld [smem:[#allocation0]]
  $region22: #{residual_block.6} parent=0
    _
  %s6 = ssub.s32 1, %s4
  %s7 = scalar_select 0, %s6, %s4
  // Predicated region
  $region2: #{residual_block.6} parent=0 // pred_check
    _
  $region3: #{residual_block.6} parent=0 // pred_check_branch
    %9 = sbr.rel (0) target = $region5
  $region4: #{residual_block.6} parent=0 // pred_region
    _
  $region5: #{residual_block.6} parent=0 // pred_fallthru
    _
  // Predicated region
  $region6: #{residual_block.6} parent=0 // pred_check
    _
  $region7: #{residual_block.6} parent=0 // pred_check_branch
    %11 = sbr.rel (0) target = $region9
  $region8: #{residual_block.6} parent=0 // pred_region
    _
  $region9: #{residual_block.6} parent=0 // pred_fallthru
    _
  // Predicated region
  $region10: #{residual_block.6} parent=0 // pred_check
    _
  $region11: #{residual_block.6} parent=0 // pred_check_branch
    %13 = sbr.rel (0) target = $region13
  $region12: #{residual_block.6} parent=0 // pred_region
    _
  $region13: #{residual_block.6} parent=0 // pred_fallthru
    _
  %v14 = vld [vmem:[%s0] sm:$0xf]
  %v15 = vld [vmem:[%s0 + $0x4] sm:$0xf]
  %v16 = vld [vmem:[%s0 + $0x8] sm:$0xf]
  %v17 = vld [vmem:[%s0 + $0xc] sm:$0xf]
  %v18 = vld [vmem:[%s0 + $0x10] sm:$0xf]
  %v19 = vld [vmem:[%s0 + $0x14] sm:$0xf]
  %v20 = vld [vmem:[%s0 + $0x18] sm:$0xf]
  %v21 = vld [vmem:[%s0 + $0x1c] sm:$0xf]
  %v22 = vld [vmem:[%s0 + $0x20] sm:$0xf]
  %v23 = vld [vmem:[%s0 + $0x24] sm:$0xf]
  %v24 = vld [vmem:[%s0 + $0x28] sm:$0xf]
  %v25 = vld [vmem:[%s0 + $0x2c] sm:$0xf]
  %v26 = vld [vmem:[%s0 + $0x30] sm:$0xf]
  %v27 = vld [vmem:[%s0 + $0x34] sm:$0xf]
  %v28 = vld [vmem:[%s0 + $0x38] sm:$0xf]
  %v29 = vld [vmem:[%s0 + $0x3c] sm:$0xf]
  %v30 = vld [vmem:[%s0 + $0x40] sm:$0xf]
  %v31 = vld [vmem:[%s0 + $0x44] sm:$0xf]
  %v32 = vld [vmem:[%s0 + $0x48] sm:$0xf]
  %v33 = vld [vmem:[%s0 + $0x4c] sm:$0xf]
  %v34 = vld [vmem:[%s0 + $0x50] sm:$0xf]
  %v35 = vld [vmem:[%s0 + $0x54] sm:$0xf]
  %v36 = vld [vmem:[%s0 + $0x58] sm:$0xf]
  %v37 = vld [vmem:[%s0 + $0x5c] sm:$0xf]
  %v38 = vld [vmem:[%s0 + $0x60] sm:$0xf]
  %v39 = vld [vmem:[%s0 + $0x64] sm:$0xf]
  %v40 = vld [vmem:[%s0 + $0x68] sm:$0xf]
  %v41 = vld [vmem:[%s0 + $0x6c] sm:$0xf]
  %v42 = vld [vmem:[%s0 + $0x70] sm:$0xf]
  %v43 = vld [vmem:[%s0 + $0x74] sm:$0xf]
  %v44 = vld [vmem:[%s0 + $0x78] sm:$0xf]
  %v45 = vld [vmem:[%s0 + $0x7c] sm:$0xf]
  %v46 = vunpack.c.l.bf16 %v14
  %v47 = vunpack.c.l.bf16 %v15
  %v48 = vunpack.c.l.bf16 %v16
  %v49 = vunpack.c.l.bf16 %v17
  %v50 = vunpack.c.l.bf16 %v18
  %v51 = vunpack.c.l.bf16 %v19
  %v52 = vunpack.c.l.bf16 %v20
  %v53 = vunpack.c.l.bf16 %v21
  %v54 = vunpack.c.l.bf16 %v22
  %v55 = vunpack.c.l.bf16 %v23
  %v56 = vunpack.c.l.bf16 %v24
  %v57 = vunpack.c.l.bf16 %v25
  %v58 = vunpack.c.l.bf16 %v26
  %v59 = vunpack.c.l.bf16 %v27
  %v60 = vunpack.c.l.bf16 %v28
  %v61 = vunpack.c.l.bf16 %v29
  %v62 = vunpack.c.l.bf16 %v30
  %v63 = vunpack.c.l.bf16 %v31
  %v64 = vunpack.c.l.bf16 %v32
  %v65 = vunpack.c.l.bf16 %v33
  %v66 = vunpack.c.l.bf16 %v34
  %v67 = vunpack.c.l.bf16 %v35
  %v68 = vunpack.c.l.bf16 %v36
  %v69 = vunpack.c.l.bf16 %v37
  %v70 = vunpack.c.l.bf16 %v38
  %v71 = vunpack.c.l.bf16 %v39
  %v72 = vunpack.c.l.bf16 %v40
  %v73 = vunpack.c.l.bf16 %v41
  %v74 = vunpack.c.l.bf16 %v42
  %v75 = vunpack.c.l.bf16 %v43
  %v76 = vunpack.c.l.bf16 %v44
  %v77 = vunpack.c.l.bf16 %v45
  %v78 = vld [vmem:[%s1] sm:$0x1]
  %v80 = vperm.slane %v78, 0
  %v82 = vmul.f32 %v46, %v80
  %v83 = vmul.f32 %v47, %v80
  %v84 = vmul.f32 %v48, %v80
  %v85 = vmul.f32 %v49, %v80
  %v86 = vmul.f32 %v50, %v80
  %v87 = vmul.f32 %v51, %v80
  %v88 = vmul.f32 %v52, %v80
  %v89 = vmul.f32 %v53, %v80
  %v90 = vmul.f32 %v54, %v80
  %v91 = vmul.f32 %v55, %v80
  %v92 = vmul.f32 %v56, %v80
  %v93 = vmul.f32 %v57, %v80
  %v94 = vmul.f32 %v58, %v80
  %v95 = vmul.f32 %v59, %v80
  %v96 = vmul.f32 %v60, %v80
  %v97 = vmul.f32 %v61, %v80
  %v98 = vmul.f32 %v62, %v80
  %v99 = vmul.f32 %v63, %v80
  %v100 = vmul.f32 %v64, %v80
  %v101 = vmul.f32 %v65, %v80
  %v102 = vmul.f32 %v66, %v80
  %v103 = vmul.f32 %v67, %v80
  %v104 = vmul.f32 %v68, %v80
  %v105 = vmul.f32 %v69, %v80
  %v106 = vmul.f32 %v70, %v80
  %v107 = vmul.f32 %v71, %v80
  %v108 = vmul.f32 %v72, %v80
  %v109 = vmul.f32 %v73, %v80
  %v110 = vmul.f32 %v74, %v80
  %v111 = vmul.f32 %v75, %v80
  %v112 = vmul.f32 %v76, %v80
  %v113 = vmul.f32 %v77, %v80
  %v114 = vld [vmem:[%s2] sm:$0x1]
  %v116 = vperm.slane %v114, 0
  %v118 = vadd.f32 %v82, %v116
  %v119 = vadd.f32 %v83, %v116
  %v120 = vadd.f32 %v84, %v116
  %v121 = vadd.f32 %v85, %v116
  %v122 = vadd.f32 %v86, %v116
  %v123 = vadd.f32 %v87, %v116
  %v124 = vadd.f32 %v88, %v116
  %v125 = vadd.f32 %v89, %v116
  %v126 = vadd.f32 %v90, %v116
  %v127 = vadd.f32 %v91, %v116
  %v128 = vadd.f32 %v92, %v116
  %v129 = vadd.f32 %v93, %v116
  %v130 = vadd.f32 %v94, %v116
  %v131 = vadd.f32 %v95, %v116
  %v132 = vadd.f32 %v96, %v116
  %v133 = vadd.f32 %v97, %v116
  %v134 = vadd.f32 %v98, %v116
  %v135 = vadd.f32 %v99, %v116
  %v136 = vadd.f32 %v100, %v116
  %v137 = vadd.f32 %v101, %v116
  %v138 = vadd.f32 %v102, %v116
  %v139 = vadd.f32 %v103, %v116
  %v140 = vadd.f32 %v104, %v116
  %v141 = vadd.f32 %v105, %v116
  %v142 = vadd.f32 %v106, %v116
  %v143 = vadd.f32 %v107, %v116
  %v144 = vadd.f32 %v108, %v116
  %v145 = vadd.f32 %v109, %v116
  %v146 = vadd.f32 %v110, %v116
  %v147 = vadd.f32 %v111, %v116
  %v148 = vadd.f32 %v112, %v116
  %v149 = vadd.f32 %v113, %v116
  %v150 = vmax.f32 %v118, 0.0
  %v151 = vmax.f32 %v119, 0.0
  %v152 = vmax.f32 %v120, 0.0
  %v153 = vmax.f32 %v121, 0.0
  %v154 = vmax.f32 %v122, 0.0
  %v155 = vmax.f32 %v123, 0.0
  %v156 = vmax.f32 %v124, 0.0
  %v157 = vmax.f32 %v125, 0.0
  %v158 = vmax.f32 %v126, 0.0
  %v159 = vmax.f32 %v127, 0.0
  %v160 = vmax.f32 %v128, 0.0
  %v161 = vmax.f32 %v129, 0.0
  %v162 = vmax.f32 %v130, 0.0
  %v163 = vmax.f32 %v131, 0.0
  %v164 = vmax.f32 %v132, 0.0
  %v165 = vmax.f32 %v133, 0.0
  %v166 = vmax.f32 %v134, 0.0
  %v167 = vmax.f32 %v135, 0.0
  %v168 = vmax.f32 %v136, 0.0
  %v169 = vmax.f32 %v137, 0.0
  %v170 = vmax.f32 %v138, 0.0
  %v171 = vmax.f32 %v139, 0.0
  %v172 = vmax.f32 %v140, 0.0
  %v173 = vmax.f32 %v141, 0.0
  %v174 = vmax.f32 %v142, 0.0
  %v175 = vmax.f32 %v143, 0.0
  %v176 = vmax.f32 %v144, 0.0
  %v177 = vmax.f32 %v145, 0.0
  %v178 = vmax.f32 %v146, 0.0
  %v179 = vmax.f32 %v147, 0.0
  %v180 = vmax.f32 %v148, 0.0
  %v181 = vmax.f32 %v149, 0.0
  %v182 = vpack.c.bf16 %v150, %v150
  %v183 = vpack.c.bf16 %v151, %v151
  %v184 = vpack.c.bf16 %v152, %v152
  %v185 = vpack.c.bf16 %v153, %v153
  %v186 = vpack.c.bf16 %v154, %v154
  %v187 = vpack.c.bf16 %v155, %v155
  %v188 = vpack.c.bf16 %v156, %v156
  %v189 = vpack.c.bf16 %v157, %v157
  %v190 = vpack.c.bf16 %v158, %v158
  %v191 = vpack.c.bf16 %v159, %v159
  %v192 = vpack.c.bf16 %v160, %v160
  %v193 = vpack.c.bf16 %v161, %v161
  %v194 = vpack.c.bf16 %v162, %v162
  %v195 = vpack.c.bf16 %v163, %v163
  %v196 = vpack.c.bf16 %v164, %v164
  %v197 = vpack.c.bf16 %v165, %v165
  %v198 = vpack.c.bf16 %v166, %v166
  %v199 = vpack.c.bf16 %v167, %v167
  %v200 = vpack.c.bf16 %v168, %v168
  %v201 = vpack.c.bf16 %v169, %v169
  %v202 = vpack.c.bf16 %v170, %v170
  %v203 = vpack.c.bf16 %v171, %v171
  %v204 = vpack.c.bf16 %v172, %v172
  %v205 = vpack.c.bf16 %v173, %v173
  %v206 = vpack.c.bf16 %v174, %v174
  %v207 = vpack.c.bf16 %v175, %v175
  %v208 = vpack.c.bf16 %v176, %v176
  %v209 = vpack.c.bf16 %v177, %v177
  %v210 = vpack.c.bf16 %v178, %v178
  %v211 = vpack.c.bf16 %v179, %v179
  %v212 = vpack.c.bf16 %v180, %v180
  %v213 = vpack.c.bf16 %v181, %v181
  %214 = vst [vmem:[%s3] sm:$0xf] %v182
  %215 = vst [vmem:[%s3 + $0x4] sm:$0xf] %v183
  %216 = vst [vmem:[%s3 + $0x8] sm:$0xf] %v184
  %217 = vst [vmem:[%s3 + $0xc] sm:$0xf] %v185
  %218 = vst [vmem:[%s3 + $0x10] sm:$0xf] %v186
  %219 = vst [vmem:[%s3 + $0x14] sm:$0xf] %v187
  %220 = vst [vmem:[%s3 + $0x18] sm:$0xf] %v188
  %221 = vst [vmem:[%s3 + $0x1c] sm:$0xf] %v189
  %222 = vst [vmem:[%s3 + $0x20] sm:$0xf] %v190
  %223 = vst [vmem:[%s3 + $0x24] sm:$0xf] %v191
  %224 = vst [vmem:[%s3 + $0x28] sm:$0xf] %v192
  %225 = vst [vmem:[%s3 + $0x2c] sm:$0xf] %v193
  %226 = vst [vmem:[%s3 + $0x30] sm:$0xf] %v194
  %227 = vst [vmem:[%s3 + $0x34] sm:$0xf] %v195
  %228 = vst [vmem:[%s3 + $0x38] sm:$0xf] %v196
  %229 = vst [vmem:[%s3 + $0x3c] sm:$0xf] %v197
  %230 = vst [vmem:[%s3 + $0x40] sm:$0xf] %v198
  %231 = vst [vmem:[%s3 + $0x44] sm:$0xf] %v199
  %232 = vst [vmem:[%s3 + $0x48] sm:$0xf] %v200
  %233 = vst [vmem:[%s3 + $0x4c] sm:$0xf] %v201
  %234 = vst [vmem:[%s3 + $0x50] sm:$0xf] %v202
  %235 = vst [vmem:[%s3 + $0x54] sm:$0xf] %v203
  %236 = vst [vmem:[%s3 + $0x58] sm:$0xf] %v204
  %237 = vst [vmem:[%s3 + $0x5c] sm:$0xf] %v205
  %238 = vst [vmem:[%s3 + $0x60] sm:$0xf] %v206
  %239 = vst [vmem:[%s3 + $0x64] sm:$0xf] %v207
  %240 = vst [vmem:[%s3 + $0x68] sm:$0xf] %v208
  %241 = vst [vmem:[%s3 + $0x6c] sm:$0xf] %v209
  %242 = vst [vmem:[%s3 + $0x70] sm:$0xf] %v210
  %243 = vst [vmem:[%s3 + $0x74] sm:$0xf] %v211
  %244 = vst [vmem:[%s3 + $0x78] sm:$0xf] %v212
  %245 = vst [vmem:[%s3 + $0x7c] sm:$0xf] %v213
  // Predicated region
  $region14: #{residual_block.6} parent=0 // pred_check
    _
  $region15: #{residual_block.6} parent=0 // pred_check_branch
    %247 = sbr.rel (0) target = $region17
  $region16: #{residual_block.6} parent=0 // pred_region
    _
  $region17: #{residual_block.6} parent=0 // pred_fallthru
    _
  // Predicated region
  $region18: #{residual_block.6} parent=0 // pred_check
    _
  $region19: #{residual_block.6} parent=0 // pred_check_branch
    %249 = sbr.rel (0) target = $region21
  $region20: #{residual_block.6} parent=0 // pred_region
    _
  $region21: #{residual_block.6} parent=0 // pred_fallthru
    _

// kernel: residual_block.5
$region0: #{residual_block.5}
  #allocation0 [shape = 'u32[]', space=smem, size = 0x4, offset = 0x4, fixed_abs, tag = 'smem constant byte address 0x4 - core index']
  #allocation1 [shape = 'u32[72,128]{1,0:T(1,128)}', space=vmem, size = 0x9000, scoped, tag = 'internal scratch']
  %s0 = inlined_call_operand.vmem [shape: bf16[256,36], index: 0, kind: input, shape index: {}]
  %s1 = inlined_call_operand.vmem [shape: bf16[36,128], index: 1, kind: input, shape index: {}]
  %s2 = inlined_call_operand.vmem [shape: bf16[256,128], index: 2, kind: output, shape index: {0}]
  %s3 = inlined_call_operand.vmem [shape: f32[1,2,128], index: 3, kind: output, shape index: {1}]
  %4 = xla_tuple %s2, %s3
  %s5 = sld [smem:[#allocation0]]
  $region26: #{residual_block.5} parent=0
    _
  %s7 = ssub.s32 1, %s5
  %s8 = scalar_select 0, %s7, %s5
  // Predicated region
  $region2: #{residual_block.5} parent=0 // pred_check
    _
  $region3: #{residual_block.5} parent=0 // pred_check_branch
    %10 = sbr.rel (0) target = $region5
  $region4: #{residual_block.5} parent=0 // pred_region
    _
  $region5: #{residual_block.5} parent=0 // pred_fallthru
    _
  // Predicated region
  $region6: #{residual_block.5} parent=0 // pred_check
    _
  $region7: #{residual_block.5} parent=0 // pred_check_branch
    %12 = sbr.rel (0) target = $region9
  $region8: #{residual_block.5} parent=0 // pred_region
    _
  $region9: #{residual_block.5} parent=0 // pred_fallthru
    _
  %v14 = vld [vmem:[%s0] sm:$0xf]
  %v15 = vld [vmem:[%s0 + $0x4] sm:$0xf]
  %v16 = vld [vmem:[%s0 + $0x8] sm:$0xf]
  %v17 = vld [vmem:[%s0 + $0xc] sm:$0xf]
  %v18 = vld [vmem:[%s0 + $0x10] sm:$0xf]
  %v19 = vld [vmem:[%s0 + $0x14] sm:$0xf]
  %v20 = vld [vmem:[%s0 + $0x18] sm:$0xf]
  %v21 = vld [vmem:[%s0 + $0x1c] sm:$0xf]
  %v22 = vld [vmem:[%s0 + $0x20] sm:$0xf]
  %v23 = vld [vmem:[%s0 + $0x24] sm:$0xf]
  %v24 = vld [vmem:[%s0 + $0x28] sm:$0xf]
  %v25 = vld [vmem:[%s0 + $0x2c] sm:$0xf]
  %v26 = vld [vmem:[%s0 + $0x30] sm:$0xf]
  %v27 = vld [vmem:[%s0 + $0x34] sm:$0xf]
  %v28 = vld [vmem:[%s0 + $0x38] sm:$0xf]
  %v29 = vld [vmem:[%s0 + $0x3c] sm:$0xf]
  %v30 = vld [vmem:[%s0 + $0x40] sm:$0xf]
  %v31 = vld [vmem:[%s0 + $0x44] sm:$0xf]
  %v32 = vld [vmem:[%s0 + $0x48] sm:$0xf]
  %v33 = vld [vmem:[%s0 + $0x4c] sm:$0xf]
  %v34 = vld [vmem:[%s0 + $0x50] sm:$0xf]
  %v35 = vld [vmem:[%s0 + $0x54] sm:$0xf]
  %v36 = vld [vmem:[%s0 + $0x58] sm:$0xf]
  %v37 = vld [vmem:[%s0 + $0x5c] sm:$0xf]
  %v38 = vld [vmem:[%s0 + $0x60] sm:$0xf]
  %v39 = vld [vmem:[%s0 + $0x64] sm:$0xf]
  %v40 = vld [vmem:[%s0 + $0x68] sm:$0xf]
  %v41 = vld [vmem:[%s0 + $0x6c] sm:$0xf]
  %v42 = vld [vmem:[%s0 + $0x70] sm:$0xf]
  %v43 = vld [vmem:[%s0 + $0x74] sm:$0xf]
  %v44 = vld [vmem:[%s0 + $0x78] sm:$0xf]
  %v45 = vld [vmem:[%s0 + $0x7c] sm:$0xf]
  %v46 = vld [vmem:[%s1] sm:$0xf]
  %v47 = vld [vmem:[%s1 + $0x4] sm:$0xf]
  %v48 = vld [vmem:[%s1 + $0x8] sm:$0xf]
  %v49 = vld [vmem:[%s1 + $0xc] sm:$0xf]
  %v50 = vld [vmem:[%s1 + $0x10] sm:$0x3]
  %v83 = vunpack.c.l.b16 %v14
  %v84 = vunpack.c.l.b16 %v15
  %v85 = vunpack.c.l.b16 %v16
  %v86 = vunpack.c.l.b16 %v17
  %v87 = vunpack.c.l.b16 %v18
  %v88 = vunpack.c.l.b16 %v19
  %v89 = vunpack.c.l.b16 %v20
  %v90 = vunpack.c.l.b16 %v21
  %v91 = vunpack.c.l.b16 %v22
  %v92 = vunpack.c.l.b16 %v23
  %v93 = vunpack.c.l.b16 %v24
  %v94 = vunpack.c.l.b16 %v25
  %v95 = vunpack.c.l.b16 %v26
  %v96 = vunpack.c.l.b16 %v27
  %v97 = vunpack.c.l.b16 %v28
  %v98 = vunpack.c.l.b16 %v29
  %v99 = vunpack.c.l.b16 %v30
  %v100 = vunpack.c.l.b16 %v31
  %v101 = vunpack.c.l.b16 %v32
  %v102 = vunpack.c.l.b16 %v33
  %v103 = vunpack.c.l.b16 %v34
  %v104 = vunpack.c.l.b16 %v35
  %v105 = vunpack.c.l.b16 %v36
  %v106 = vunpack.c.l.b16 %v37
  %v107 = vunpack.c.l.b16 %v38
  %v108 = vunpack.c.l.b16 %v39
  %v109 = vunpack.c.l.b16 %v40
  %v110 = vunpack.c.l.b16 %v41
  %v111 = vunpack.c.l.b16 %v42
  %v112 = vunpack.c.l.b16 %v43
  %v113 = vunpack.c.l.b16 %v44
  %v114 = vunpack.c.l.b16 %v45
  %v115 = vpack.c.b16 %v84, %v83
  %v116 = vpack.c.b16 %v86, %v85
  %v117 = vpack.c.b16 %v88, %v87
  %v118 = vpack.c.b16 %v90, %v89
  %v119 = vpack.c.b16 %v92, %v91
  %v120 = vpack.c.b16 %v94, %v93
  %v121 = vpack.c.b16 %v96, %v95
  %v122 = vpack.c.b16 %v98, %v97
  %v123 = vpack.c.b16 %v100, %v99
  %v124 = vpack.c.b16 %v102, %v101
  %v125 = vpack.c.b16 %v104, %v103
  %v126 = vpack.c.b16 %v106, %v105
  %v127 = vpack.c.b16 %v108, %v107
  %v128 = vpack.c.b16 %v110, %v109
  %v129 = vpack.c.b16 %v112, %v111
  %v130 = vpack.c.b16 %v114, %v113
  %v136 = vunpack.c.l.b16 %v46
  %v137 = vunpack.c.l.b16 %v47
  %v138 = vunpack.c.l.b16 %v48
  %v139 = vunpack.c.l.b16 %v49
  %v140 = vunpack.c.l.b16 %v50
  %v141 = vpack.c.b16 %v137, %v136
  %v142 = vpack.c.b16 %v139, %v138
  %v143 = vpack.c.b16 %v140, %v140
  %vm146 = vcmask 293888
  %v148 = vsel %vm146, %v115, 0
  %v151 = vsel %vm146, %v116, 0
  %v154 = vsel %vm146, %v117, 0
  %v157 = vsel %vm146, %v118, 0
  %v160 = vsel %vm146, %v119, 0
  %v163 = vsel %vm146, %v120, 0
  %v166 = vsel %vm146, %v121, 0
  %v169 = vsel %vm146, %v122, 0
  %v172 = vsel %vm146, %v123, 0
  %v175 = vsel %vm146, %v124, 0
  %v178 = vsel %vm146, %v125, 0
  %v181 = vsel %vm146, %v126, 0
  %v184 = vsel %vm146, %v127, 0
  %v187 = vsel %vm146, %v128, 0
  %v190 = vsel %vm146, %v129, 0
  %v193 = vsel %vm146, %v130, 0
  %vm195 = vcmask 1041408
  %v197 = vsel %vm195, %v143, 0
  %199 = vmatpush.bf16.msra.mxu0 0
  %200 = vmatpush.bf16.msra.mxu0 0
  %201 = vmatpush.bf16.msra.mxu0 0
  %202 = vmatpush.bf16.msra.mxu0 0
  %203 = vmatpush.bf16.msra.mxu0 0
  %204 = vmatpush.bf16.msra.mxu0 %v197
  %205 = vmatpush.bf16.msra.mxu0 %v142
  %206 = vmatpush.bf16.msra.mxu0 %v141
  %207 = vmatmul.bf16.gmra.mxu0 %v148
  %v208 = vpop.f32.mrf.mxu0
  %v209 = vadd.f32 0.0, %v208
  %v210 = vpop.f32.mrf.mxu0
  %v211 = vadd.f32 0.0, %v210
  %212 = vmatmul.bf16.gmra.mxu0 %v151
  %v213 = vpop.f32.mrf.mxu0
  %v214 = vadd.f32 0.0, %v213
  %v215 = vpop.f32.mrf.mxu0
  %v216 = vadd.f32 0.0, %v215
  %217 = vmatmul.bf16.gmra.mxu0 %v154
  %v218 = vpop.f32.mrf.mxu0
  %v219 = vadd.f32 0.0, %v218
  %v220 = vpop.f32.mrf.mxu0
  %v221 = vadd.f32 0.0, %v220
  %222 = vmatmul.bf16.gmra.mxu0 %v157
  %v223 = vpop.f32.mrf.mxu0
  %v224 = vadd.f32 0.0, %v223
  %v225 = vpop.f32.mrf.mxu0
  %v226 = vadd.f32 0.0, %v225
  %227 = vmatmul.bf16.gmra.mxu0 %v160
  %v228 = vpop.f32.mrf.mxu0
  %v229 = vadd.f32 0.0, %v228
  %v230 = vpop.f32.mrf.mxu0
  %v231 = vadd.f32 0.0, %v230
  %232 = vmatmul.bf16.gmra.mxu0 %v163
  %v233 = vpop.f32.mrf.mxu0
  %v234 = vadd.f32 0.0, %v233
  %v235 = vpop.f32.mrf.mxu0
  %v236 = vadd.f32 0.0, %v235
  %237 = vmatmul.bf16.gmra.mxu0 %v166
  %v238 = vpop.f32.mrf.mxu0
  %v239 = vadd.f32 0.0, %v238
  %v240 = vpop.f32.mrf.mxu0
  %v241 = vadd.f32 0.0, %v240
  %242 = vmatmul.bf16.gmra.mxu0 %v169
  %v243 = vpop.f32.mrf.mxu0
  %v244 = vadd.f32 0.0, %v243
  %v245 = vpop.f32.mrf.mxu0
  %v246 = vadd.f32 0.0, %v245
  %247 = vmatmul.bf16.gmra.mxu0 %v172
  %v248 = vpop.f32.mrf.mxu0
  %v249 = vadd.f32 0.0, %v248
  %v250 = vpop.f32.mrf.mxu0
  %v251 = vadd.f32 0.0, %v250
  %252 = vmatmul.bf16.gmra.mxu0 %v175
  %v253 = vpop.f32.mrf.mxu0
  %v254 = vadd.f32 0.0, %v253
  %v255 = vpop.f32.mrf.mxu0
  %v256 = vadd.f32 0.0, %v255
  %257 = vmatmul.bf16.gmra.mxu0 %v178
  %v258 = vpop.f32.mrf.mxu0
  %v259 = vadd.f32 0.0, %v258
  %v260 = vpop.f32.mrf.mxu0
  %v261 = vadd.f32 0.0, %v260
  %262 = vmatmul.bf16.gmra.mxu0 %v181
  %v263 = vpop.f32.mrf.mxu0
  %v264 = vadd.f32 0.0, %v263
  %v265 = vpop.f32.mrf.mxu0
  %v266 = vadd.f32 0.0, %v265
  %267 = vmatmul.bf16.gmra.mxu0 %v184
  %v268 = vpop.f32.mrf.mxu0
  %v269 = vadd.f32 0.0, %v268
  %v270 = vpop.f32.mrf.mxu0
  %v271 = vadd.f32 0.0, %v270
  %272 = vmatmul.bf16.gmra.mxu0 %v187
  %v273 = vpop.f32.mrf.mxu0
  %v274 = vadd.f32 0.0, %v273
  %v275 = vpop.f32.mrf.mxu0
  %v276 = vadd.f32 0.0, %v275
  %277 = vmatmul.bf16.gmra.mxu0 %v190
  %v278 = vpop.f32.mrf.mxu0
  %v279 = vadd.f32 0.0, %v278
  %v280 = vpop.f32.mrf.mxu0
  %v281 = vadd.f32 0.0, %v280
  %282 = vmatmul.bf16.gmra.mxu0 %v193
  %v283 = vpop.f32.mrf.mxu0
  %v284 = vadd.f32 0.0, %v283
  %v285 = vpop.f32.mrf.mxu0
  %v286 = vadd.f32 0.0, %v285
  %287 = vdwg.mxu0
  %v288 = vpack.c.bf16 %v209, %v209
  %v289 = vpack.c.bf16 %v211, %v211
  %v290 = vpack.c.bf16 %v214, %v214
  %v291 = vpack.c.bf16 %v216, %v216
  %v292 = vpack.c.bf16 %v219, %v219
  %v293 = vpack.c.bf16 %v221, %v221
  %v294 = vpack.c.bf16 %v224, %v224
  %v295 = vpack.c.bf16 %v226, %v226
  %v296 = vpack.c.bf16 %v229, %v229
  %v297 = vpack.c.bf16 %v231, %v231
  %v298 = vpack.c.bf16 %v234, %v234
  %v299 = vpack.c.bf16 %v236, %v236
  %v300 = vpack.c.bf16 %v239, %v239
  %v301 = vpack.c.bf16 %v241, %v241
  %v302 = vpack.c.bf16 %v244, %v244
  %v303 = vpack.c.bf16 %v246, %v246
  %v304 = vpack.c.bf16 %v249, %v249
  %v305 = vpack.c.bf16 %v251, %v251
  %v306 = vpack.c.bf16 %v254, %v254
  %v307 = vpack.c.bf16 %v256, %v256
  %v308 = vpack.c.bf16 %v259, %v259
  %v309 = vpack.c.bf16 %v261, %v261
  %v310 = vpack.c.bf16 %v264, %v264
  %v311 = vpack.c.bf16 %v266, %v266
  %v312 = vpack.c.bf16 %v269, %v269
  %v313 = vpack.c.bf16 %v271, %v271
  %v314 = vpack.c.bf16 %v274, %v274
  %v315 = vpack.c.bf16 %v276, %v276
  %v316 = vpack.c.bf16 %v279, %v279
  %v317 = vpack.c.bf16 %v281, %v281
  %v318 = vpack.c.bf16 %v284, %v284
  %v319 = vpack.c.bf16 %v286, %v286
  %320 = vst [vmem:[%s2] sm:$0xf] %v288
  %321 = vst [vmem:[%s2 + $0x4] sm:$0xf] %v289
  %322 = vst [vmem:[%s2 + $0x8] sm:$0xf] %v290
  %323 = vst [vmem:[%s2 + $0xc] sm:$0xf] %v291
  %324 = vst [vmem:[%s2 + $0x10] sm:$0xf] %v292
  %325 = vst [vmem:[%s2 + $0x14] sm:$0xf] %v293
  %326 = vst [vmem:[%s2 + $0x18] sm:$0xf] %v294
  %327 = vst [vmem:[%s2 + $0x1c] sm:$0xf] %v295
  %328 = vst [vmem:[%s2 + $0x20] sm:$0xf] %v296
  %329 = vst [vmem:[%s2 + $0x24] sm:$0xf] %v297
  %330 = vst [vmem:[%s2 + $0x28] sm:$0xf] %v298
  %331 = vst [vmem:[%s2 + $0x2c] sm:$0xf] %v299
  %332 = vst [vmem:[%s2 + $0x30] sm:$0xf] %v300
  %333 = vst [vmem:[%s2 + $0x34] sm:$0xf] %v301
  %334 = vst [vmem:[%s2 + $0x38] sm:$0xf] %v302
  %335 = vst [vmem:[%s2 + $0x3c] sm:$0xf] %v303
  %336 = vst [vmem:[%s2 + $0x40] sm:$0xf] %v304
  %337 = vst [vmem:[%s2 + $0x44] sm:$0xf] %v305
  %338 = vst [vmem:[%s2 + $0x48] sm:$0xf] %v306
  %339 = vst [vmem:[%s2 + $0x4c] sm:$0xf] %v307
  %340 = vst [vmem:[%s2 + $0x50] sm:$0xf] %v308
  %341 = vst [vmem:[%s2 + $0x54] sm:$0xf] %v309
  %342 = vst [vmem:[%s2 + $0x58] sm:$0xf] %v310
  %343 = vst [vmem:[%s2 + $0x5c] sm:$0xf] %v311
  %344 = vst [vmem:[%s2 + $0x60] sm:$0xf] %v312
  %345 = vst [vmem:[%s2 + $0x64] sm:$0xf] %v313
  %346 = vst [vmem:[%s2 + $0x68] sm:$0xf] %v314
  %347 = vst [vmem:[%s2 + $0x6c] sm:$0xf] %v315
  %348 = vst [vmem:[%s2 + $0x70] sm:$0xf] %v316
  %349 = vst [vmem:[%s2 + $0x74] sm:$0xf] %v317
  %350 = vst [vmem:[%s2 + $0x78] sm:$0xf] %v318
  %351 = vst [vmem:[%s2 + $0x7c] sm:$0xf] %v319
  %v352 = vadd.f32 %v209, %v211
  %v353 = vadd.f32 %v352, %v214
  %v354 = vadd.f32 %v353, %v216
  %v355 = vadd.f32 %v354, %v219
  %v356 = vadd.f32 %v355, %v221
  %v357 = vadd.f32 %v356, %v224
  %v358 = vadd.f32 %v357, %v226
  %v359 = vadd.f32 %v358, %v229
  %v360 = vadd.f32 %v359, %v231
  %v361 = vadd.f32 %v360, %v234
  %v362 = vadd.f32 %v361, %v236
  %v363 = vadd.f32 %v362, %v239
  %v364 = vadd.f32 %v363, %v241
  %v365 = vadd.f32 %v364, %v244
  %v366 = vadd.f32 %v365, %v246
  %v367 = vadd.f32 %v366, %v249
  %v368 = vadd.f32 %v367, %v251
  %v369 = vadd.f32 %v368, %v254
  %v370 = vadd.f32 %v369, %v256
  %v371 = vadd.f32 %v370, %v259
  %v372 = vadd.f32 %v371, %v261
  %v373 = vadd.f32 %v372, %v264
  %v374 = vadd.f32 %v373, %v266
  %v375 = vadd.f32 %v374, %v269
  %v376 = vadd.f32 %v375, %v271
  %v377 = vadd.f32 %v376, %v274
  %v378 = vadd.f32 %v377, %v276
  %v379 = vadd.f32 %v378, %v279
  %v380 = vadd.f32 %v379, %v281
  %v381 = vadd.f32 %v380, %v284
  %v382 = vadd.f32 %v381, %v286
  %v383 = vrot.slane %v382, 4
  %v384 = vadd.f32 %v382, %v383
  %v385 = vrot.slane %v384, 2
  %v386 = vadd.f32 %v384, %v385
  %v387 = vrot.slane %v386, 1
  %v388 = vadd.f32 %v386, %v387
  %v389 = vmul.f32 %v209, %v209
  %v390 = vmul.f32 %v211, %v211
  %v391 = vmul.f32 %v214, %v214
  %v392 = vmul.f32 %v216, %v216
  %v393 = vmul.f32 %v219, %v219
  %v394 = vmul.f32 %v221, %v221
  %v395 = vmul.f32 %v224, %v224
  %v396 = vmul.f32 %v226, %v226
  %v397 = vmul.f32 %v229, %v229
  %v398 = vmul.f32 %v231, %v231
  %v399 = vmul.f32 %v234, %v234
  %v400 = vmul.f32 %v236, %v236
  %v401 = vmul.f32 %v239, %v239
  %v402 = vmul.f32 %v241, %v241
  %v403 = vmul.f32 %v244, %v244
  %v404 = vmul.f32 %v246, %v246
  %v405 = vmul.f32 %v249, %v249
  %v406 = vmul.f32 %v251, %v251
  %v407 = vmul.f32 %v254, %v254
  %v408 = vmul.f32 %v256, %v256
  %v409 = vmul.f32 %v259, %v259
  %v410 = vmul.f32 %v261, %v261
  %v411 = vmul.f32 %v264, %v264
  %v412 = vmul.f32 %v266, %v266
  %v413 = vmul.f32 %v269, %v269
  %v414 = vmul.f32 %v271, %v271
  %v415 = vmul.f32 %v274, %v274
  %v416 = vmul.f32 %v276, %v276
  %v417 = vmul.f32 %v279, %v279
  %v418 = vmul.f32 %v281, %v281
  %v419 = vmul.f32 %v284, %v284
  %v420 = vmul.f32 %v286, %v286
  %v421 = vadd.f32 %v389, %v390
  %v422 = vadd.f32 %v421, %v391
  %v423 = vadd.f32 %v422, %v392
  %v424 = vadd.f32 %v423, %v393
  %v425 = vadd.f32 %v424, %v394
  %v426 = vadd.f32 %v425, %v395
  %v427 = vadd.f32 %v426, %v396
  %v428 = vadd.f32 %v427, %v397
  %v429 = vadd.f32 %v428, %v398
  %v430 = vadd.f32 %v429, %v399
  %v431 = vadd.f32 %v430, %v400
  %v432 = vadd.f32 %v431, %v401
  %v433 = vadd.f32 %v432, %v402
  %v434 = vadd.f32 %v433, %v403
  %v435 = vadd.f32 %v434, %v404
  %v436 = vadd.f32 %v435, %v405
  %v437 = vadd.f32 %v436, %v406
  %v438 = vadd.f32 %v437, %v407
  %v439 = vadd.f32 %v438, %v408
  %v440 = vadd.f32 %v439, %v409
  %v441 = vadd.f32 %v440, %v410
  %v442 = vadd.f32 %v441, %v411
  %v443 = vadd.f32 %v442, %v412
  %v444 = vadd.f32 %v443, %v413
  %v445 = vadd.f32 %v444, %v414
  %v446 = vadd.f32 %v445, %v415
  %v447 = vadd.f32 %v446, %v416
  %v448 = vadd.f32 %v447, %v417
  %v449 = vadd.f32 %v448, %v418
  %v450 = vadd.f32 %v449, %v419
  %v451 = vadd.f32 %v450, %v420
  %v452 = vrot.slane %v451, 4
  %v453 = vadd.f32 %v451, %v452
  %v454 = vrot.slane %v453, 2
  %v455 = vadd.f32 %v453, %v454
  %v456 = vrot.slane %v455, 1
  %v457 = vadd.f32 %v455, %v456
  %vm458 = vcmask 1040384
  %v459 = vsel %vm458, %v388, %v457
  %460 = vst [vmem:[%s3] sm:$0x3] %v459
  // Predicated region
  $region10: #{residual_block.5} parent=0 // pred_check
    _
  $region11: #{residual_block.5} parent=0 // pred_check_branch
    %462 = sbr.rel (0) target = $region13
  $region12: #{residual_block.5} parent=0 // pred_region
    _
  $region13: #{residual_block.5} parent=0 // pred_fallthru
    _
  // Predicated region
  $region14: #{residual_block.5} parent=0 // pred_check
    _
  $region15: #{residual_block.5} parent=0 // pred_check_branch
    %464 = sbr.rel (0) target = $region17
  $region16: #{residual_block.5} parent=0 // pred_region
    _
  $region17: #{residual_block.5} parent=0 // pred_fallthru
    _
  // Predicated region
  $region18: #{residual_block.5} parent=0 // pred_check
    _
  $region19: #{residual_block.5} parent=0 // pred_check_branch
    %466 = sbr.rel (0) target = $region21
  $region20: #{residual_block.5} parent=0 // pred_region
    _
  $region21: #{residual_block.5} parent=0 // pred_fallthru
    _
  // Predicated region
  $region22: #{residual_block.5} parent=0 // pred_check
    _
  $region23: #{residual_block.5} parent=0 // pred_check_branch
    %468 = sbr.rel (0) target = $region25
  $region24: #{residual_block.5} parent=0 // pred_region
    _
  $region25: #{residual_block.5} parent=0 // pred_fallthru
    _

// kernel: residual_block.8
$region0: #{residual_block.8}
  #allocation0 [shape = 'u32[]', space=smem, size = 0x4, offset = 0x4, fixed_abs, tag = 'smem constant byte address 0x4 - core index']
  #allocation1 [shape = 'u32[72,128]{1,0:T(1,128)}', space=vmem, size = 0x9000, scoped, tag = 'internal scratch']
  %s0 = inlined_call_operand.vmem [shape: bf16[256,4], index: 0, kind: input, shape index: {}]
  %s1 = inlined_call_operand.vmem [shape: bf16[4,128], index: 1, kind: input, shape index: {}]
  %s2 = inlined_call_operand.vmem [shape: bf16[256,128], index: 2, kind: output, shape index: {0}]
  %s3 = inlined_call_operand.vmem [shape: f32[1,2,128], index: 3, kind: output, shape index: {1}]
  %4 = xla_tuple %s2, %s3
  %s5 = sld [smem:[#allocation0]]
  $region26: #{residual_block.8} parent=0
    _
  %s7 = ssub.s32 1, %s5
  %s8 = scalar_select 0, %s7, %s5
  // Predicated region
  $region2: #{residual_block.8} parent=0 // pred_check
    _
  $region3: #{residual_block.8} parent=0 // pred_check_branch
    %10 = sbr.rel (0) target = $region5
  $region4: #{residual_block.8} parent=0 // pred_region
    _
  $region5: #{residual_block.8} parent=0 // pred_fallthru
    _
  // Predicated region
  $region6: #{residual_block.8} parent=0 // pred_check
    _
  $region7: #{residual_block.8} parent=0 // pred_check_branch
    %12 = sbr.rel (0) target = $region9
  $region8: #{residual_block.8} parent=0 // pred_region
    _
  $region9: #{residual_block.8} parent=0 // pred_fallthru
    _
  %v14 = vld [vmem:[%s0] sm:$0xf]
  %v15 = vld [vmem:[%s0 + $0x4] sm:$0xf]
  %v16 = vld [vmem:[%s0 + $0x8] sm:$0xf]
  %v17 = vld [vmem:[%s0 + $0xc] sm:$0xf]
  %v18 = vld [vmem:[%s0 + $0x10] sm:$0xf]
  %v19 = vld [vmem:[%s0 + $0x14] sm:$0xf]
  %v20 = vld [vmem:[%s0 + $0x18] sm:$0xf]
  %v21 = vld [vmem:[%s0 + $0x1c] sm:$0xf]
  %v22 = vld [vmem:[%s0 + $0x20] sm:$0xf]
  %v23 = vld [vmem:[%s0 + $0x24] sm:$0xf]
  %v24 = vld [vmem:[%s0 + $0x28] sm:$0xf]
  %v25 = vld [vmem:[%s0 + $0x2c] sm:$0xf]
  %v26 = vld [vmem:[%s0 + $0x30] sm:$0xf]
  %v27 = vld [vmem:[%s0 + $0x34] sm:$0xf]
  %v28 = vld [vmem:[%s0 + $0x38] sm:$0xf]
  %v29 = vld [vmem:[%s0 + $0x3c] sm:$0xf]
  %v30 = vld [vmem:[%s0 + $0x40] sm:$0xf]
  %v31 = vld [vmem:[%s0 + $0x44] sm:$0xf]
  %v32 = vld [vmem:[%s0 + $0x48] sm:$0xf]
  %v33 = vld [vmem:[%s0 + $0x4c] sm:$0xf]
  %v34 = vld [vmem:[%s0 + $0x50] sm:$0xf]
  %v35 = vld [vmem:[%s0 + $0x54] sm:$0xf]
  %v36 = vld [vmem:[%s0 + $0x58] sm:$0xf]
  %v37 = vld [vmem:[%s0 + $0x5c] sm:$0xf]
  %v38 = vld [vmem:[%s0 + $0x60] sm:$0xf]
  %v39 = vld [vmem:[%s0 + $0x64] sm:$0xf]
  %v40 = vld [vmem:[%s0 + $0x68] sm:$0xf]
  %v41 = vld [vmem:[%s0 + $0x6c] sm:$0xf]
  %v42 = vld [vmem:[%s0 + $0x70] sm:$0xf]
  %v43 = vld [vmem:[%s0 + $0x74] sm:$0xf]
  %v44 = vld [vmem:[%s0 + $0x78] sm:$0xf]
  %v45 = vld [vmem:[%s0 + $0x7c] sm:$0xf]
  %v46 = vld [vmem:[%s1] sm:$0x3]
  %v79 = vunpack.c.l.b16 %v14
  %v80 = vunpack.c.l.b16 %v15
  %v81 = vunpack.c.l.b16 %v16
  %v82 = vunpack.c.l.b16 %v17
  %v83 = vunpack.c.l.b16 %v18
  %v84 = vunpack.c.l.b16 %v19
  %v85 = vunpack.c.l.b16 %v20
  %v86 = vunpack.c.l.b16 %v21
  %v87 = vunpack.c.l.b16 %v22
  %v88 = vunpack.c.l.b16 %v23
  %v89 = vunpack.c.l.b16 %v24
  %v90 = vunpack.c.l.b16 %v25
  %v91 = vunpack.c.l.b16 %v26
  %v92 = vunpack.c.l.b16 %v27
  %v93 = vunpack.c.l.b16 %v28
  %v94 = vunpack.c.l.b16 %v29
  %v95 = vunpack.c.l.b16 %v30
  %v96 = vunpack.c.l.b16 %v31
  %v97 = vunpack.c.l.b16 %v32
  %v98 = vunpack.c.l.b16 %v33
  %v99 = vunpack.c.l.b16 %v34
  %v100 = vunpack.c.l.b16 %v35
  %v101 = vunpack.c.l.b16 %v36
  %v102 = vunpack.c.l.b16 %v37
  %v103 = vunpack.c.l.b16 %v38
  %v104 = vunpack.c.l.b16 %v39
  %v105 = vunpack.c.l.b16 %v40
  %v106 = vunpack.c.l.b16 %v41
  %v107 = vunpack.c.l.b16 %v42
  %v108 = vunpack.c.l.b16 %v43
  %v109 = vunpack.c.l.b16 %v44
  %v110 = vunpack.c.l.b16 %v45
  %v111 = vpack.c.b16 %v80, %v79
  %v112 = vpack.c.b16 %v82, %v81
  %v113 = vpack.c.b16 %v84, %v83
  %v114 = vpack.c.b16 %v86, %v85
  %v115 = vpack.c.b16 %v88, %v87
  %v116 = vpack.c.b16 %v90, %v89
  %v117 = vpack.c.b16 %v92, %v91
  %v118 = vpack.c.b16 %v94, %v93
  %v119 = vpack.c.b16 %v96, %v95
  %v120 = vpack.c.b16 %v98, %v97
  %v121 = vpack.c.b16 %v100, %v99
  %v122 = vpack.c.b16 %v102, %v101
  %v123 = vpack.c.b16 %v104, %v103
  %v124 = vpack.c.b16 %v106, %v105
  %v125 = vpack.c.b16 %v108, %v107
  %v126 = vpack.c.b16 %v110, %v109
  %vm127 = vcmask 31744
  %v129 = vsel %vm127, %v111, 0
  %v132 = vsel %vm127, %v112, 0
  %v135 = vsel %vm127, %v113, 0
  %v138 = vsel %vm127, %v114, 0
  %v141 = vsel %vm127, %v115, 0
  %v144 = vsel %vm127, %v116, 0
  %v147 = vsel %vm127, %v117, 0
  %v150 = vsel %vm127, %v118, 0
  %v153 = vsel %vm127, %v119, 0
  %v156 = vsel %vm127, %v120, 0
  %v159 = vsel %vm127, %v121, 0
  %v162 = vsel %vm127, %v122, 0
  %v165 = vsel %vm127, %v123, 0
  %v168 = vsel %vm127, %v124, 0
  %v171 = vsel %vm127, %v125, 0
  %v174 = vsel %vm127, %v126, 0
  %vm176 = vcmask 1041408
  %v178 = vsel %vm176, %v46, 0
  %180 = vmatpush.bf16.msra.mxu0 0
  %181 = vmatpush.bf16.msra.mxu0 0
  %182 = vmatpush.bf16.msra.mxu0 0
  %183 = vmatpush.bf16.msra.mxu0 0
  %184 = vmatpush.bf16.msra.mxu0 0
  %185 = vmatpush.bf16.msra.mxu0 0
  %186 = vmatpush.bf16.msra.mxu0 0
  %187 = vmatpush.bf16.msra.mxu0 %v178
  %188 = vmatmul.bf16.gmra.mxu0 %v129
  %v189 = vpop.f32.mrf.mxu0
  %v190 = vadd.f32 0.0, %v189
  %v191 = vpop.f32.mrf.mxu0
  %v192 = vadd.f32 0.0, %v191
  %193 = vmatmul.bf16.gmra.mxu0 %v132
  %v194 = vpop.f32.mrf.mxu0
  %v195 = vadd.f32 0.0, %v194
  %v196 = vpop.f32.mrf.mxu0
  %v197 = vadd.f32 0.0, %v196
  %198 = vmatmul.bf16.gmra.mxu0 %v135
  %v199 = vpop.f32.mrf.mxu0
  %v200 = vadd.f32 0.0, %v199
  %v201 = vpop.f32.mrf.mxu0
  %v202 = vadd.f32 0.0, %v201
  %203 = vmatmul.bf16.gmra.mxu0 %v138
  %v204 = vpop.f32.mrf.mxu0
  %v205 = vadd.f32 0.0, %v204
  %v206 = vpop.f32.mrf.mxu0
  %v207 = vadd.f32 0.0, %v206
  %208 = vmatmul.bf16.gmra.mxu0 %v141
  %v209 = vpop.f32.mrf.mxu0
  %v210 = vadd.f32 0.0, %v209
  %v211 = vpop.f32.mrf.mxu0
  %v212 = vadd.f32 0.0, %v211
  %213 = vmatmul.bf16.gmra.mxu0 %v144
  %v214 = vpop.f32.mrf.mxu0
  %v215 = vadd.f32 0.0, %v214
  %v216 = vpop.f32.mrf.mxu0
  %v217 = vadd.f32 0.0, %v216
  %218 = vmatmul.bf16.gmra.mxu0 %v147
  %v219 = vpop.f32.mrf.mxu0
  %v220 = vadd.f32 0.0, %v219
  %v221 = vpop.f32.mrf.mxu0
  %v222 = vadd.f32 0.0, %v221
  %223 = vmatmul.bf16.gmra.mxu0 %v150
  %v224 = vpop.f32.mrf.mxu0
  %v225 = vadd.f32 0.0, %v224
  %v226 = vpop.f32.mrf.mxu0
  %v227 = vadd.f32 0.0, %v226
  %228 = vmatmul.bf16.gmra.mxu0 %v153
  %v229 = vpop.f32.mrf.mxu0
  %v230 = vadd.f32 0.0, %v229
  %v231 = vpop.f32.mrf.mxu0
  %v232 = vadd.f32 0.0, %v231
  %233 = vmatmul.bf16.gmra.mxu0 %v156
  %v234 = vpop.f32.mrf.mxu0
  %v235 = vadd.f32 0.0, %v234
  %v236 = vpop.f32.mrf.mxu0
  %v237 = vadd.f32 0.0, %v236
  %238 = vmatmul.bf16.gmra.mxu0 %v159
  %v239 = vpop.f32.mrf.mxu0
  %v240 = vadd.f32 0.0, %v239
  %v241 = vpop.f32.mrf.mxu0
  %v242 = vadd.f32 0.0, %v241
  %243 = vmatmul.bf16.gmra.mxu0 %v162
  %v244 = vpop.f32.mrf.mxu0
  %v245 = vadd.f32 0.0, %v244
  %v246 = vpop.f32.mrf.mxu0
  %v247 = vadd.f32 0.0, %v246
  %248 = vmatmul.bf16.gmra.mxu0 %v165
  %v249 = vpop.f32.mrf.mxu0
  %v250 = vadd.f32 0.0, %v249
  %v251 = vpop.f32.mrf.mxu0
  %v252 = vadd.f32 0.0, %v251
  %253 = vmatmul.bf16.gmra.mxu0 %v168
  %v254 = vpop.f32.mrf.mxu0
  %v255 = vadd.f32 0.0, %v254
  %v256 = vpop.f32.mrf.mxu0
  %v257 = vadd.f32 0.0, %v256
  %258 = vmatmul.bf16.gmra.mxu0 %v171
  %v259 = vpop.f32.mrf.mxu0
  %v260 = vadd.f32 0.0, %v259
  %v261 = vpop.f32.mrf.mxu0
  %v262 = vadd.f32 0.0, %v261
  %263 = vmatmul.bf16.gmra.mxu0 %v174
  %v264 = vpop.f32.mrf.mxu0
  %v265 = vadd.f32 0.0, %v264
  %v266 = vpop.f32.mrf.mxu0
  %v267 = vadd.f32 0.0, %v266
  %268 = vdwg.mxu0
  %v269 = vpack.c.bf16 %v190, %v190
  %v270 = vpack.c.bf16 %v192, %v192
  %v271 = vpack.c.bf16 %v195, %v195
  %v272 = vpack.c.bf16 %v197, %v197
  %v273 = vpack.c.bf16 %v200, %v200
  %v274 = vpack.c.bf16 %v202, %v202
  %v275 = vpack.c.bf16 %v205, %v205
  %v276 = vpack.c.bf16 %v207, %v207
  %v277 = vpack.c.bf16 %v210, %v210
  %v278 = vpack.c.bf16 %v212, %v212
  %v279 = vpack.c.bf16 %v215, %v215
  %v280 = vpack.c.bf16 %v217, %v217
  %v281 = vpack.c.bf16 %v220, %v220
  %v282 = vpack.c.bf16 %v222, %v222
  %v283 = vpack.c.bf16 %v225, %v225
  %v284 = vpack.c.bf16 %v227, %v227
  %v285 = vpack.c.bf16 %v230, %v230
  %v286 = vpack.c.bf16 %v232, %v232
  %v287 = vpack.c.bf16 %v235, %v235
  %v288 = vpack.c.bf16 %v237, %v237
  %v289 = vpack.c.bf16 %v240, %v240
  %v290 = vpack.c.bf16 %v242, %v242
  %v291 = vpack.c.bf16 %v245, %v245
  %v292 = vpack.c.bf16 %v247, %v247
  %v293 = vpack.c.bf16 %v250, %v250
  %v294 = vpack.c.bf16 %v252, %v252
  %v295 = vpack.c.bf16 %v255, %v255
  %v296 = vpack.c.bf16 %v257, %v257
  %v297 = vpack.c.bf16 %v260, %v260
  %v298 = vpack.c.bf16 %v262, %v262
  %v299 = vpack.c.bf16 %v265, %v265
  %v300 = vpack.c.bf16 %v267, %v267
  %301 = vst [vmem:[%s2] sm:$0xf] %v269
  %302 = vst [vmem:[%s2 + $0x4] sm:$0xf] %v270
  %303 = vst [vmem:[%s2 + $0x8] sm:$0xf] %v271
  %304 = vst [vmem:[%s2 + $0xc] sm:$0xf] %v272
  %305 = vst [vmem:[%s2 + $0x10] sm:$0xf] %v273
  %306 = vst [vmem:[%s2 + $0x14] sm:$0xf] %v274
  %307 = vst [vmem:[%s2 + $0x18] sm:$0xf] %v275
  %308 = vst [vmem:[%s2 + $0x1c] sm:$0xf] %v276
  %309 = vst [vmem:[%s2 + $0x20] sm:$0xf] %v277
  %310 = vst [vmem:[%s2 + $0x24] sm:$0xf] %v278
  %311 = vst [vmem:[%s2 + $0x28] sm:$0xf] %v279
  %312 = vst [vmem:[%s2 + $0x2c] sm:$0xf] %v280
  %313 = vst [vmem:[%s2 + $0x30] sm:$0xf] %v281
  %314 = vst [vmem:[%s2 + $0x34] sm:$0xf] %v282
  %315 = vst [vmem:[%s2 + $0x38] sm:$0xf] %v283
  %316 = vst [vmem:[%s2 + $0x3c] sm:$0xf] %v284
  %317 = vst [vmem:[%s2 + $0x40] sm:$0xf] %v285
  %318 = vst [vmem:[%s2 + $0x44] sm:$0xf] %v286
  %319 = vst [vmem:[%s2 + $0x48] sm:$0xf] %v287
  %320 = vst [vmem:[%s2 + $0x4c] sm:$0xf] %v288
  %321 = vst [vmem:[%s2 + $0x50] sm:$0xf] %v289
  %322 = vst [vmem:[%s2 + $0x54] sm:$0xf] %v290
  %323 = vst [vmem:[%s2 + $0x58] sm:$0xf] %v291
  %324 = vst [vmem:[%s2 + $0x5c] sm:$0xf] %v292
  %325 = vst [vmem:[%s2 + $0x60] sm:$0xf] %v293
  %326 = vst [vmem:[%s2 + $0x64] sm:$0xf] %v294
  %327 = vst [vmem:[%s2 + $0x68] sm:$0xf] %v295
  %328 = vst [vmem:[%s2 + $0x6c] sm:$0xf] %v296
  %329 = vst [vmem:[%s2 + $0x70] sm:$0xf] %v297
  %330 = vst [vmem:[%s2 + $0x74] sm:$0xf] %v298
  %331 = vst [vmem:[%s2 + $0x78] sm:$0xf] %v299
  %332 = vst [vmem:[%s2 + $0x7c] sm:$0xf] %v300
  %v333 = vadd.f32 %v190, %v192
  %v334 = vadd.f32 %v333, %v195
  %v335 = vadd.f32 %v334, %v197
  %v336 = vadd.f32 %v335, %v200
  %v337 = vadd.f32 %v336, %v202
  %v338 = vadd.f32 %v337, %v205
  %v339 = vadd.f32 %v338, %v207
  %v340 = vadd.f32 %v339, %v210
  %v341 = vadd.f32 %v340, %v212
  %v342 = vadd.f32 %v341, %v215
  %v343 = vadd.f32 %v342, %v217
  %v344 = vadd.f32 %v343, %v220
  %v345 = vadd.f32 %v344, %v222
  %v346 = vadd.f32 %v345, %v225
  %v347 = vadd.f32 %v346, %v227
  %v348 = vadd.f32 %v347, %v230
  %v349 = vadd.f32 %v348, %v232
  %v350 = vadd.f32 %v349, %v235
  %v351 = vadd.f32 %v350, %v237
  %v352 = vadd.f32 %v351, %v240
  %v353 = vadd.f32 %v352, %v242
  %v354 = vadd.f32 %v353, %v245
  %v355 = vadd.f32 %v354, %v247
  %v356 = vadd.f32 %v355, %v250
  %v357 = vadd.f32 %v356, %v252
  %v358 = vadd.f32 %v357, %v255
  %v359 = vadd.f32 %v358, %v257
  %v360 = vadd.f32 %v359, %v260
  %v361 = vadd.f32 %v360, %v262
  %v362 = vadd.f32 %v361, %v265
  %v363 = vadd.f32 %v362, %v267
  %v364 = vrot.slane %v363, 4
  %v365 = vadd.f32 %v363, %v364
  %v366 = vrot.slane %v365, 2
  %v367 = vadd.f32 %v365, %v366
  %v368 = vrot.slane %v367, 1
  %v369 = vadd.f32 %v367, %v368
  %v370 = vmul.f32 %v190, %v190
  %v371 = vmul.f32 %v192, %v192
  %v372 = vmul.f32 %v195, %v195
  %v373 = vmul.f32 %v197, %v197
  %v374 = vmul.f32 %v200, %v200
  %v375 = vmul.f32 %v202, %v202
  %v376 = vmul.f32 %v205, %v205
  %v377 = vmul.f32 %v207, %v207
  %v378 = vmul.f32 %v210, %v210
  %v379 = vmul.f32 %v212, %v212
  %v380 = vmul.f32 %v215, %v215
  %v381 = vmul.f32 %v217, %v217
  %v382 = vmul.f32 %v220, %v220
  %v383 = vmul.f32 %v222, %v222
  %v384 = vmul.f32 %v225, %v225
  %v385 = vmul.f32 %v227, %v227
  %v386 = vmul.f32 %v230, %v230
  %v387 = vmul.f32 %v232, %v232
  %v388 = vmul.f32 %v235, %v235
  %v389 = vmul.f32 %v237, %v237
  %v390 = vmul.f32 %v240, %v240
  %v391 = vmul.f32 %v242, %v242
  %v392 = vmul.f32 %v245, %v245
  %v393 = vmul.f32 %v247, %v247
  %v394 = vmul.f32 %v250, %v250
  %v395 = vmul.f32 %v252, %v252
  %v396 = vmul.f32 %v255, %v255
  %v397 = vmul.f32 %v257, %v257
  %v398 = vmul.f32 %v260, %v260
  %v399 = vmul.f32 %v262, %v262
  %v400 = vmul.f32 %v265, %v265
  %v401 = vmul.f32 %v267, %v267
  %v402 = vadd.f32 %v370, %v371
  %v403 = vadd.f32 %v402, %v372
  %v404 = vadd.f32 %v403, %v373
  %v405 = vadd.f32 %v404, %v374
  %v406 = vadd.f32 %v405, %v375
  %v407 = vadd.f32 %v406, %v376
  %v408 = vadd.f32 %v407, %v377
  %v409 = vadd.f32 %v408, %v378
  %v410 = vadd.f32 %v409, %v379
  %v411 = vadd.f32 %v410, %v380
  %v412 = vadd.f32 %v411, %v381
  %v413 = vadd.f32 %v412, %v382
  %v414 = vadd.f32 %v413, %v383
  %v415 = vadd.f32 %v414, %v384
  %v416 = vadd.f32 %v415, %v385
  %v417 = vadd.f32 %v416, %v386
  %v418 = vadd.f32 %v417, %v387
  %v419 = vadd.f32 %v418, %v388
  %v420 = vadd.f32 %v419, %v389
  %v421 = vadd.f32 %v420, %v390
  %v422 = vadd.f32 %v421, %v391
  %v423 = vadd.f32 %v422, %v392
  %v424 = vadd.f32 %v423, %v393
  %v425 = vadd.f32 %v424, %v394
  %v426 = vadd.f32 %v425, %v395
  %v427 = vadd.f32 %v426, %v396
  %v428 = vadd.f32 %v427, %v397
  %v429 = vadd.f32 %v428, %v398
  %v430 = vadd.f32 %v429, %v399
  %v431 = vadd.f32 %v430, %v400
  %v432 = vadd.f32 %v431, %v401
  %v433 = vrot.slane %v432, 4
  %v434 = vadd.f32 %v432, %v433
  %v435 = vrot.slane %v434, 2
  %v436 = vadd.f32 %v434, %v435
  %v437 = vrot.slane %v436, 1
  %v438 = vadd.f32 %v436, %v437
  %vm439 = vcmask 1040384
  %v440 = vsel %vm439, %v369, %v438
  %441 = vst [vmem:[%s3] sm:$0x3] %v440
  // Predicated region
  $region10: #{residual_block.8} parent=0 // pred_check
    _
  $region11: #{residual_block.8} parent=0 // pred_check_branch
    %443 = sbr.rel (0) target = $region13
  $region12: #{residual_block.8} parent=0 // pred_region
    _
  $region13: #{residual_block.8} parent=0 // pred_fallthru
    _
  // Predicated region
  $region14: #{residual_block.8} parent=0 // pred_check
    _
  $region15: #{residual_block.8} parent=0 // pred_check_branch
    %445 = sbr.rel (0) target = $region17
  $region16: #{residual_block.8} parent=0 // pred_region
    _
  $region17: #{residual_block.8} parent=0 // pred_fallthru
    _
  // Predicated region
  $region18: #{residual_block.8} parent=0 // pred_check
    _
  $region19: #{residual_block.8} parent=0 // pred_check_branch
    %447 = sbr.rel (0) target = $region21
  $region20: #{residual_block.8} parent=0 // pred_region
    _
  $region21: #{residual_block.8} parent=0 // pred_fallthru
    _
  // Predicated region
  $region22: #{residual_block.8} parent=0 // pred_check
    _
  $region23: #{residual_block.8} parent=0 // pred_check_branch
    %449 = sbr.rel (0) target = $region25
  $region24: #{residual_block.8} parent=0 // pred_region
    _
  $region25: #{residual_block.8} parent=0 // pred_fallthru
    _

// kernel: residual_block.9
$region0: #{residual_block.9}
  #allocation0 [shape = 'u32[]', space=smem, size = 0x4, offset = 0x4, fixed_abs, tag = 'smem constant byte address 0x4 - core index']
  #allocation1 [shape = 'u32[72,128]{1,0:T(1,128)}', space=vmem, size = 0x9000, scoped, tag = 'internal scratch']
  %s0 = inlined_call_operand.vmem [shape: bf16[256,128], index: 0, kind: input, shape index: {}]
  %s1 = inlined_call_operand.vmem [shape: f32[1,128], index: 1, kind: input, shape index: {}]
  %s2 = inlined_call_operand.vmem [shape: f32[1,128], index: 2, kind: input, shape index: {}]
  %s3 = inlined_call_operand.vmem [shape: bf16[256,128], index: 3, kind: input, shape index: {}]
  %s4 = inlined_call_operand.vmem [shape: f32[1,128], index: 4, kind: input, shape index: {}]
  %s5 = inlined_call_operand.vmem [shape: f32[1,128], index: 5, kind: input, shape index: {}]
  %s6 = inlined_call_operand.vmem [shape: f32[256,128], index: 6, kind: output, shape index: {}]
  %s7 = sld [smem:[#allocation0]]
  $region34: #{residual_block.9} parent=0
    _
  %s9 = ssub.s32 1, %s7
  %s10 = scalar_select 0, %s9, %s7
  // Predicated region
  $region2: #{residual_block.9} parent=0 // pred_check
    _
  $region3: #{residual_block.9} parent=0 // pred_check_branch
    %12 = sbr.rel (0) target = $region5
  $region4: #{residual_block.9} parent=0 // pred_region
    _
  $region5: #{residual_block.9} parent=0 // pred_fallthru
    _
  // Predicated region
  $region6: #{residual_block.9} parent=0 // pred_check
    _
  $region7: #{residual_block.9} parent=0 // pred_check_branch
    %14 = sbr.rel (0) target = $region9
  $region8: #{residual_block.9} parent=0 // pred_region
    _
  $region9: #{residual_block.9} parent=0 // pred_fallthru
    _
  // Predicated region
  $region10: #{residual_block.9} parent=0 // pred_check
    _
  $region11: #{residual_block.9} parent=0 // pred_check_branch
    %16 = sbr.rel (0) target = $region13
  $region12: #{residual_block.9} parent=0 // pred_region
    _
  $region13: #{residual_block.9} parent=0 // pred_fallthru
    _
  // Predicated region
  $region14: #{residual_block.9} parent=0 // pred_check
    _
  $region15: #{residual_block.9} parent=0 // pred_check_branch
    %18 = sbr.rel (0) target = $region17
  $region16: #{residual_block.9} parent=0 // pred_region
    _
  $region17: #{residual_block.9} parent=0 // pred_fallthru
    _
  // Predicated region
  $region18: #{residual_block.9} parent=0 // pred_check
    _
  $region19: #{residual_block.9} parent=0 // pred_check_branch
    %20 = sbr.rel (0) target = $region21
  $region20: #{residual_block.9} parent=0 // pred_region
    _
  $region21: #{residual_block.9} parent=0 // pred_fallthru
    _
  // Predicated region
  $region22: #{residual_block.9} parent=0 // pred_check
    _
  $region23: #{residual_block.9} parent=0 // pred_check_branch
    %22 = sbr.rel (0) target = $region25
  $region24: #{residual_block.9} parent=0 // pred_region
    _
  $region25: #{residual_block.9} parent=0 // pred_fallthru
    _
  %v23 = vld [vmem:[%s0] sm:$0xf]
  %v24 = vld [vmem:[%s0 + $0x4] sm:$0xf]
  %v25 = vld [vmem:[%s0 + $0x8] sm:$0xf]
  %v26 = vld [vmem:[%s0 + $0xc] sm:$0xf]
  %v27 = vld [vmem:[%s0 + $0x10] sm:$0xf]
  %v28 = vld [vmem:[%s0 + $0x14] sm:$0xf]
  %v29 = vld [vmem:[%s0 + $0x18] sm:$0xf]
  %v30 = vld [vmem:[%s0 + $0x1c] sm:$0xf]
  %v31 = vld [vmem:[%s0 + $0x20] sm:$0xf]
  %v32 = vld [vmem:[%s0 + $0x24] sm:$0xf]
  %v33 = vld [vmem:[%s0 + $0x28] sm:$0xf]
  %v34 = vld [vmem:[%s0 + $0x2c] sm:$0xf]
  %v35 = vld [vmem:[%s0 + $0x30] sm:$0xf]
  %v36 = vld [vmem:[%s0 + $0x34] sm:$0xf]
  %v37 = vld [vmem:[%s0 + $0x38] sm:$0xf]
  %v38 = vld [vmem:[%s0 + $0x3c] sm:$0xf]
  %v39 = vld [vmem:[%s0 + $0x40] sm:$0xf]
  %v40 = vld [vmem:[%s0 + $0x44] sm:$0xf]
  %v41 = vld [vmem:[%s0 + $0x48] sm:$0xf]
  %v42 = vld [vmem:[%s0 + $0x4c] sm:$0xf]
  %v43 = vld [vmem:[%s0 + $0x50] sm:$0xf]
  %v44 = vld [vmem:[%s0 + $0x54] sm:$0xf]
  %v45 = vld [vmem:[%s0 + $0x58] sm:$0xf]
  %v46 = vld [vmem:[%s0 + $0x5c] sm:$0xf]
  %v47 = vld [vmem:[%s0 + $0x60] sm:$0xf]
  %v48 = vld [vmem:[%s0 + $0x64] sm:$0xf]
  %v49 = vld [vmem:[%s0 + $0x68] sm:$0xf]
  %v50 = vld [vmem:[%s0 + $0x6c] sm:$0xf]
  %v51 = vld [vmem:[%s0 + $0x70] sm:$0xf]
  %v52 = vld [vmem:[%s0 + $0x74] sm:$0xf]
  %v53 = vld [vmem:[%s0 + $0x78] sm:$0xf]
  %v54 = vld [vmem:[%s0 + $0x7c] sm:$0xf]
  %v55 = vunpack.c.l.bf16 %v23
  %v56 = vunpack.c.l.bf16 %v24
  %v57 = vunpack.c.l.bf16 %v25
  %v58 = vunpack.c.l.bf16 %v26
  %v59 = vunpack.c.l.bf16 %v27
  %v60 = vunpack.c.l.bf16 %v28
  %v61 = vunpack.c.l.bf16 %v29
  %v62 = vunpack.c.l.bf16 %v30
  %v63 = vunpack.c.l.bf16 %v31
  %v64 = vunpack.c.l.bf16 %v32
  %v65 = vunpack.c.l.bf16 %v33
  %v66 = vunpack.c.l.bf16 %v34
  %v67 = vunpack.c.l.bf16 %v35
  %v68 = vunpack.c.l.bf16 %v36
  %v69 = vunpack.c.l.bf16 %v37
  %v70 = vunpack.c.l.bf16 %v38
  %v71 = vunpack.c.l.bf16 %v39
  %v72 = vunpack.c.l.bf16 %v40
  %v73 = vunpack.c.l.bf16 %v41
  %v74 = vunpack.c.l.bf16 %v42
  %v75 = vunpack.c.l.bf16 %v43
  %v76 = vunpack.c.l.bf16 %v44
  %v77 = vunpack.c.l.bf16 %v45
  %v78 = vunpack.c.l.bf16 %v46
  %v79 = vunpack.c.l.bf16 %v47
  %v80 = vunpack.c.l.bf16 %v48
  %v81 = vunpack.c.l.bf16 %v49
  %v82 = vunpack.c.l.bf16 %v50
  %v83 = vunpack.c.l.bf16 %v51
  %v84 = vunpack.c.l.bf16 %v52
  %v85 = vunpack.c.l.bf16 %v53
  %v86 = vunpack.c.l.bf16 %v54
  %v87 = vld [vmem:[%s1] sm:$0x1]
  %v89 = vperm.slane %v87, 0
  %v91 = vmul.f32 %v55, %v89
  %v92 = vmul.f32 %v56, %v89
  %v93 = vmul.f32 %v57, %v89
  %v94 = vmul.f32 %v58, %v89
  %v95 = vmul.f32 %v59, %v89
  %v96 = vmul.f32 %v60, %v89
  %v97 = vmul.f32 %v61, %v89
  %v98 = vmul.f32 %v62, %v89
  %v99 = vmul.f32 %v63, %v89
  %v100 = vmul.f32 %v64, %v89
  %v101 = vmul.f32 %v65, %v89
  %v102 = vmul.f32 %v66, %v89
  %v103 = vmul.f32 %v67, %v89
  %v104 = vmul.f32 %v68, %v89
  %v105 = vmul.f32 %v69, %v89
  %v106 = vmul.f32 %v70, %v89
  %v107 = vmul.f32 %v71, %v89
  %v108 = vmul.f32 %v72, %v89
  %v109 = vmul.f32 %v73, %v89
  %v110 = vmul.f32 %v74, %v89
  %v111 = vmul.f32 %v75, %v89
  %v112 = vmul.f32 %v76, %v89
  %v113 = vmul.f32 %v77, %v89
  %v114 = vmul.f32 %v78, %v89
  %v115 = vmul.f32 %v79, %v89
  %v116 = vmul.f32 %v80, %v89
  %v117 = vmul.f32 %v81, %v89
  %v118 = vmul.f32 %v82, %v89
  %v119 = vmul.f32 %v83, %v89
  %v120 = vmul.f32 %v84, %v89
  %v121 = vmul.f32 %v85, %v89
  %v122 = vmul.f32 %v86, %v89
  %v123 = vld [vmem:[%s2] sm:$0x1]
  %v125 = vperm.slane %v123, 0
  %v127 = vadd.f32 %v91, %v125
  %v128 = vadd.f32 %v92, %v125
  %v129 = vadd.f32 %v93, %v125
  %v130 = vadd.f32 %v94, %v125
  %v131 = vadd.f32 %v95, %v125
  %v132 = vadd.f32 %v96, %v125
  %v133 = vadd.f32 %v97, %v125
  %v134 = vadd.f32 %v98, %v125
  %v135 = vadd.f32 %v99, %v125
  %v136 = vadd.f32 %v100, %v125
  %v137 = vadd.f32 %v101, %v125
  %v138 = vadd.f32 %v102, %v125
  %v139 = vadd.f32 %v103, %v125
  %v140 = vadd.f32 %v104, %v125
  %v141 = vadd.f32 %v105, %v125
  %v142 = vadd.f32 %v106, %v125
  %v143 = vadd.f32 %v107, %v125
  %v144 = vadd.f32 %v108, %v125
  %v145 = vadd.f32 %v109, %v125
  %v146 = vadd.f32 %v110, %v125
  %v147 = vadd.f32 %v111, %v125
  %v148 = vadd.f32 %v112, %v125
  %v149 = vadd.f32 %v113, %v125
  %v150 = vadd.f32 %v114, %v125
  %v151 = vadd.f32 %v115, %v125
  %v152 = vadd.f32 %v116, %v125
  %v153 = vadd.f32 %v117, %v125
  %v154 = vadd.f32 %v118, %v125
  %v155 = vadd.f32 %v119, %v125
  %v156 = vadd.f32 %v120, %v125
  %v157 = vadd.f32 %v121, %v125
  %v158 = vadd.f32 %v122, %v125
  %v159 = vld [vmem:[%s3] sm:$0xf]
  %v160 = vld [vmem:[%s3 + $0x4] sm:$0xf]
  %v161 = vld [vmem:[%s3 + $0x8] sm:$0xf]
  %v162 = vld [vmem:[%s3 + $0xc] sm:$0xf]
  %v163 = vld [vmem:[%s3 + $0x10] sm:$0xf]
  %v164 = vld [vmem:[%s3 + $0x14] sm:$0xf]
  %v165 = vld [vmem:[%s3 + $0x18] sm:$0xf]
  %v166 = vld [vmem:[%s3 + $0x1c] sm:$0xf]
  %v167 = vld [vmem:[%s3 + $0x20] sm:$0xf]
  %v168 = vld [vmem:[%s3 + $0x24] sm:$0xf]
  %v169 = vld [vmem:[%s3 + $0x28] sm:$0xf]
  %v170 = vld [vmem:[%s3 + $0x2c] sm:$0xf]
  %v171 = vld [vmem:[%s3 + $0x30] sm:$0xf]
  %v172 = vld [vmem:[%s3 + $0x34] sm:$0xf]
  %v173 = vld [vmem:[%s3 + $0x38] sm:$0xf]
  %v174 = vld [vmem:[%s3 + $0x3c] sm:$0xf]
  %v175 = vld [vmem:[%s3 + $0x40] sm:$0xf]
  %v176 = vld [vmem:[%s3 + $0x44] sm:$0xf]
  %v177 = vld [vmem:[%s3 + $0x48] sm:$0xf]
  %v178 = vld [vmem:[%s3 + $0x4c] sm:$0xf]
  %v179 = vld [vmem:[%s3 + $0x50] sm:$0xf]
  %v180 = vld [vmem:[%s3 + $0x54] sm:$0xf]
  %v181 = vld [vmem:[%s3 + $0x58] sm:$0xf]
  %v182 = vld [vmem:[%s3 + $0x5c] sm:$0xf]
  %v183 = vld [vmem:[%s3 + $0x60] sm:$0xf]
  %v184 = vld [vmem:[%s3 + $0x64] sm:$0xf]
  %v185 = vld [vmem:[%s3 + $0x68] sm:$0xf]
  %v186 = vld [vmem:[%s3 + $0x6c] sm:$0xf]
  %v187 = vld [vmem:[%s3 + $0x70] sm:$0xf]
  %v188 = vld [vmem:[%s3 + $0x74] sm:$0xf]
  %v189 = vld [vmem:[%s3 + $0x78] sm:$0xf]
  %v190 = vld [vmem:[%s3 + $0x7c] sm:$0xf]
  %v191 = vunpack.c.l.bf16 %v159
  %v192 = vunpack.c.l.bf16 %v160
  %v193 = vunpack.c.l.bf16 %v161
  %v194 = vunpack.c.l.bf16 %v162
  %v195 = vunpack.c.l.bf16 %v163
  %v196 = vunpack.c.l.bf16 %v164
  %v197 = vunpack.c.l.bf16 %v165
  %v198 = vunpack.c.l.bf16 %v166
  %v199 = vunpack.c.l.bf16 %v167
  %v200 = vunpack.c.l.bf16 %v168
  %v201 = vunpack.c.l.bf16 %v169
  %v202 = vunpack.c.l.bf16 %v170
  %v203 = vunpack.c.l.bf16 %v171
  %v204 = vunpack.c.l.bf16 %v172
  %v205 = vunpack.c.l.bf16 %v173
  %v206 = vunpack.c.l.bf16 %v174
  %v207 = vunpack.c.l.bf16 %v175
  %v208 = vunpack.c.l.bf16 %v176
  %v209 = vunpack.c.l.bf16 %v177
  %v210 = vunpack.c.l.bf16 %v178
  %v211 = vunpack.c.l.bf16 %v179
  %v212 = vunpack.c.l.bf16 %v180
  %v213 = vunpack.c.l.bf16 %v181
  %v214 = vunpack.c.l.bf16 %v182
  %v215 = vunpack.c.l.bf16 %v183
  %v216 = vunpack.c.l.bf16 %v184
  %v217 = vunpack.c.l.bf16 %v185
  %v218 = vunpack.c.l.bf16 %v186
  %v219 = vunpack.c.l.bf16 %v187
  %v220 = vunpack.c.l.bf16 %v188
  %v221 = vunpack.c.l.bf16 %v189
  %v222 = vunpack.c.l.bf16 %v190
  %v223 = vld [vmem:[%s4] sm:$0x1]
  %v225 = vperm.slane %v223, 0
  %v227 = vmul.f32 %v191, %v225
  %v228 = vmul.f32 %v192, %v225
  %v229 = vmul.f32 %v193, %v225
  %v230 = vmul.f32 %v194, %v225
  %v231 = vmul.f32 %v195, %v225
  %v232 = vmul.f32 %v196, %v225
  %v233 = vmul.f32 %v197, %v225
  %v234 = vmul.f32 %v198, %v225
  %v235 = vmul.f32 %v199, %v225
  %v236 = vmul.f32 %v200, %v225
  %v237 = vmul.f32 %v201, %v225
  %v238 = vmul.f32 %v202, %v225
  %v239 = vmul.f32 %v203, %v225
  %v240 = vmul.f32 %v204, %v225
  %v241 = vmul.f32 %v205, %v225
  %v242 = vmul.f32 %v206, %v225
  %v243 = vmul.f32 %v207, %v225
  %v244 = vmul.f32 %v208, %v225
  %v245 = vmul.f32 %v209, %v225
  %v246 = vmul.f32 %v210, %v225
  %v247 = vmul.f32 %v211, %v225
  %v248 = vmul.f32 %v212, %v225
  %v249 = vmul.f32 %v213, %v225
  %v250 = vmul.f32 %v214, %v225
  %v251 = vmul.f32 %v215, %v225
  %v252 = vmul.f32 %v216, %v225
  %v253 = vmul.f32 %v217, %v225
  %v254 = vmul.f32 %v218, %v225
  %v255 = vmul.f32 %v219, %v225
  %v256 = vmul.f32 %v220, %v225
  %v257 = vmul.f32 %v221, %v225
  %v258 = vmul.f32 %v222, %v225
  %v259 = vld [vmem:[%s5] sm:$0x1]
  %v261 = vperm.slane %v259, 0
  %v263 = vadd.f32 %v227, %v261
  %v264 = vadd.f32 %v228, %v261
  %v265 = vadd.f32 %v229, %v261
  %v266 = vadd.f32 %v230, %v261
  %v267 = vadd.f32 %v231, %v261
  %v268 = vadd.f32 %v232, %v261
  %v269 = vadd.f32 %v233, %v261
  %v270 = vadd.f32 %v234, %v261
  %v271 = vadd.f32 %v235, %v261
  %v272 = vadd.f32 %v236, %v261
  %v273 = vadd.f32 %v237, %v261
  %v274 = vadd.f32 %v238, %v261
  %v275 = vadd.f32 %v239, %v261
  %v276 = vadd.f32 %v240, %v261
  %v277 = vadd.f32 %v241, %v261
  %v278 = vadd.f32 %v242, %v261
  %v279 = vadd.f32 %v243, %v261
  %v280 = vadd.f32 %v244, %v261
  %v281 = vadd.f32 %v245, %v261
  %v282 = vadd.f32 %v246, %v261
  %v283 = vadd.f32 %v247, %v261
  %v284 = vadd.f32 %v248, %v261
  %v285 = vadd.f32 %v249, %v261
  %v286 = vadd.f32 %v250, %v261
  %v287 = vadd.f32 %v251, %v261
  %v288 = vadd.f32 %v252, %v261
  %v289 = vadd.f32 %v253, %v261
  %v290 = vadd.f32 %v254, %v261
  %v291 = vadd.f32 %v255, %v261
  %v292 = vadd.f32 %v256, %v261
  %v293 = vadd.f32 %v257, %v261
  %v294 = vadd.f32 %v258, %v261
  %v295 = vadd.f32 %v127, %v263
  %v296 = vadd.f32 %v128, %v264
  %v297 = vadd.f32 %v129, %v265
  %v298 = vadd.f32 %v130, %v266
  %v299 = vadd.f32 %v131, %v267
  %v300 = vadd.f32 %v132, %v268
  %v301 = vadd.f32 %v133, %v269
  %v302 = vadd.f32 %v134, %v270
  %v303 = vadd.f32 %v135, %v271
  %v304 = vadd.f32 %v136, %v272
  %v305 = vadd.f32 %v137, %v273
  %v306 = vadd.f32 %v138, %v274
  %v307 = vadd.f32 %v139, %v275
  %v308 = vadd.f32 %v140, %v276
  %v309 = vadd.f32 %v141, %v277
  %v310 = vadd.f32 %v142, %v278
  %v311 = vadd.f32 %v143, %v279
  %v312 = vadd.f32 %v144, %v280
  %v313 = vadd.f32 %v145, %v281
  %v314 = vadd.f32 %v146, %v282
  %v315 = vadd.f32 %v147, %v283
  %v316 = vadd.f32 %v148, %v284
  %v317 = vadd.f32 %v149, %v285
  %v318 = vadd.f32 %v150, %v286
  %v319 = vadd.f32 %v151, %v287
  %v320 = vadd.f32 %v152, %v288
  %v321 = vadd.f32 %v153, %v289
  %v322 = vadd.f32 %v154, %v290
  %v323 = vadd.f32 %v155, %v291
  %v324 = vadd.f32 %v156, %v292
  %v325 = vadd.f32 %v157, %v293
  %v326 = vadd.f32 %v158, %v294
  %v327 = vmax.f32 %v295, 0.0
  %v328 = vmax.f32 %v296, 0.0
  %v329 = vmax.f32 %v297, 0.0
  %v330 = vmax.f32 %v298, 0.0
  %v331 = vmax.f32 %v299, 0.0
  %v332 = vmax.f32 %v300, 0.0
  %v333 = vmax.f32 %v301, 0.0
  %v334 = vmax.f32 %v302, 0.0
  %v335 = vmax.f32 %v303, 0.0
  %v336 = vmax.f32 %v304, 0.0
  %v337 = vmax.f32 %v305, 0.0
  %v338 = vmax.f32 %v306, 0.0
  %v339 = vmax.f32 %v307, 0.0
  %v340 = vmax.f32 %v308, 0.0
  %v341 = vmax.f32 %v309, 0.0
  %v342 = vmax.f32 %v310, 0.0
  %v343 = vmax.f32 %v311, 0.0
  %v344 = vmax.f32 %v312, 0.0
  %v345 = vmax.f32 %v313, 0.0
  %v346 = vmax.f32 %v314, 0.0
  %v347 = vmax.f32 %v315, 0.0
  %v348 = vmax.f32 %v316, 0.0
  %v349 = vmax.f32 %v317, 0.0
  %v350 = vmax.f32 %v318, 0.0
  %v351 = vmax.f32 %v319, 0.0
  %v352 = vmax.f32 %v320, 0.0
  %v353 = vmax.f32 %v321, 0.0
  %v354 = vmax.f32 %v322, 0.0
  %v355 = vmax.f32 %v323, 0.0
  %v356 = vmax.f32 %v324, 0.0
  %v357 = vmax.f32 %v325, 0.0
  %v358 = vmax.f32 %v326, 0.0
  %359 = vst [vmem:[%s6] sm:$0xff] %v327
  %360 = vst [vmem:[%s6 + $0x8] sm:$0xff] %v328
  %361 = vst [vmem:[%s6 + $0x10] sm:$0xff] %v329
  %362 = vst [vmem:[%s6 + $0x18] sm:$0xff] %v330
  %363 = vst [vmem:[%s6 + $0x20] sm:$0xff] %v331
  %364 = vst [vmem:[%s6 + $0x28] sm:$0xff] %v332
  %365 = vst [vmem:[%s6 + $0x30] sm:$0xff] %v333
  %366 = vst [vmem:[%s6 + $0x38] sm:$0xff] %v334
  %367 = vst [vmem:[%s6 + $0x40] sm:$0xff] %v335
  %368 = vst [vmem:[%s6 + $0x48] sm:$0xff] %v336
  %369 = vst [vmem:[%s6 + $0x50] sm:$0xff] %v337
  %370 = vst [vmem:[%s6 + $0x58] sm:$0xff] %v338
  %371 = vst [vmem:[%s6 + $0x60] sm:$0xff] %v339
  %372 = vst [vmem:[%s6 + $0x68] sm:$0xff] %v340
  %373 = vst [vmem:[%s6 + $0x70] sm:$0xff] %v341
  %374 = vst [vmem:[%s6 + $0x78] sm:$0xff] %v342
  %375 = vst [vmem:[%s6 + $0x80] sm:$0xff] %v343
  %376 = vst [vmem:[%s6 + $0x88] sm:$0xff] %v344
  %377 = vst [vmem:[%s6 + $0x90] sm:$0xff] %v345
  %378 = vst [vmem:[%s6 + $0x98] sm:$0xff] %v346
  %379 = vst [vmem:[%s6 + $0xa0] sm:$0xff] %v347
  %380 = vst [vmem:[%s6 + $0xa8] sm:$0xff] %v348
  %381 = vst [vmem:[%s6 + $0xb0] sm:$0xff] %v349
  %382 = vst [vmem:[%s6 + $0xb8] sm:$0xff] %v350
  %383 = vst [vmem:[%s6 + $0xc0] sm:$0xff] %v351
  %384 = vst [vmem:[%s6 + $0xc8] sm:$0xff] %v352
  %385 = vst [vmem:[%s6 + $0xd0] sm:$0xff] %v353
  %386 = vst [vmem:[%s6 + $0xd8] sm:$0xff] %v354
  %387 = vst [vmem:[%s6 + $0xe0] sm:$0xff] %v355
  %388 = vst [vmem:[%s6 + $0xe8] sm:$0xff] %v356
  %389 = vst [vmem:[%s6 + $0xf0] sm:$0xff] %v357
  %390 = vst [vmem:[%s6 + $0xf8] sm:$0xff] %v358
  // Predicated region
  $region26: #{residual_block.9} parent=0 // pred_check
    _
  $region27: #{residual_block.9} parent=0 // pred_check_branch
    %392 = sbr.rel (0) target = $region29
  $region28: #{residual_block.9} parent=0 // pred_region
    _
  $region29: #{residual_block.9} parent=0 // pred_fallthru
    _
  // Predicated region
  $region30: #{residual_block.9} parent=0 // pred_check
    _
  $region31: #{residual_block.9} parent=0 // pred_check_branch
    %394 = sbr.rel (0) target = $region33
  $region32: #{residual_block.9} parent=0 // pred_region
    _
  $region33: #{residual_block.9} parent=0 // pred_fallthru
    _

// kernel: residual_block.7
$region0: #{residual_block.7}
  #allocation0 [shape = 'u32[]', space=smem, size = 0x4, offset = 0x4, fixed_abs, tag = 'smem constant byte address 0x4 - core index']
  #allocation1 [shape = 'u32[72,128]{1,0:T(1,128)}', space=vmem, size = 0x9000, scoped, tag = 'internal scratch']
  %s0 = inlined_call_operand.vmem [shape: bf16[256,1152], index: 0, kind: input, shape index: {}]
  %s1 = inlined_call_operand.vmem [shape: bf16[1152,128], index: 1, kind: input, shape index: {}]
  %s2 = inlined_call_operand.vmem [shape: bf16[256,128], index: 2, kind: output, shape index: {0}]
  %s3 = inlined_call_operand.vmem [shape: f32[1,2,128], index: 3, kind: output, shape index: {1}]
  %4 = xla_tuple %s2, %s3
  %s5 = sld [smem:[#allocation0]]
  $region26: #{residual_block.7} parent=0
    _
  %s7 = ssub.s32 1, %s5
  %s8 = scalar_select 0, %s7, %s5
  // Predicated region
  $region2: #{residual_block.7} parent=0 // pred_check
    _
  $region3: #{residual_block.7} parent=0 // pred_check_branch
    %10 = sbr.rel (0) target = $region5
  $region4: #{residual_block.7} parent=0 // pred_region
    _
  $region5: #{residual_block.7} parent=0 // pred_fallthru
    _
  // Predicated region
  $region6: #{residual_block.7} parent=0 // pred_check
    _
  $region7: #{residual_block.7} parent=0 // pred_check_branch
    %12 = sbr.rel (0) target = $region9
  $region8: #{residual_block.7} parent=0 // pred_region
    _
  $region9: #{residual_block.7} parent=0 // pred_fallthru
    _
  %v13 = vld [vmem:[%s0] sm:$0xff]
  %v14 = vld [vmem:[%s0 + $0x8] sm:$0xff]
  %v15 = vld [vmem:[%s0 + $0x10] sm:$0xff]
  %v16 = vld [vmem:[%s0 + $0x18] sm:$0xff]
  %v17 = vld [vmem:[%s0 + $0x20] sm:$0xf]
  %v18 = vld [vmem:[%s0 + $0x24] sm:$0xff]
  %v19 = vld [vmem:[%s0 + $0x2c] sm:$0xff]
  %v20 = vld [vmem:[%s0 + $0x34] sm:$0xff]
  %v21 = vld [vmem:[%s0 + $0x3c] sm:$0xff]
  %v22 = vld [vmem:[%s0 + $0x44] sm:$0xf]
  %v23 = vld [vmem:[%s0 + $0x48] sm:$0xff]
  %v24 = vld [vmem:[%s0 + $0x50] sm:$0xff]
  %v25 = vld [vmem:[%s0 + $0x58] sm:$0xff]
  %v26 = vld [vmem:[%s0 + $0x60] sm:$0xff]
  %v27 = vld [vmem:[%s0 + $0x68] sm:$0xf]
  %v28 = vld [vmem:[%s0 + $0x6c] sm:$0xff]
  %v29 = vld [vmem:[%s0 + $0x74] sm:$0xff]
  %v30 = vld [vmem:[%s0 + $0x7c] sm:$0xff]
  %v31 = vld [vmem:[%s0 + $0x84] sm:$0xff]
  %v32 = vld [vmem:[%s0 + $0x8c] sm:$0xf]
  %v33 = vld [vmem:[%s0 + $0x90] sm:$0xff]
  %v34 = vld [vmem:[%s0 + $0x98] sm:$0xff]
  %v35 = vld [vmem:[%s0 + $0xa0] sm:$0xff]
  %v36 = vld [vmem:[%s0 + $0xa8] sm:$0xff]
  %v37 = vld [vmem:[%s0 + $0xb0] sm:$0xf]
  %v38 = vld [vmem:[%s0 + $0xb4] sm:$0xff]
  %v39 = vld [vmem:[%s0 + $0xbc] sm:$0xff]
  %v40 = vld [vmem:[%s0 + $0xc4] sm:$0xff]
  %v41 = vld [vmem:[%s0 + $0xcc] sm:$0xff]
  %v42 = vld [vmem:[%s0 + $0xd4] sm:$0xf]
  %v43 = vld [vmem:[%s0 + $0xd8] sm:$0xff]
  %v44 = vld [vmem:[%s0 + $0xe0] sm:$0xff]
  %v45 = vld [vmem:[%s0 + $0xe8] sm:$0xff]
  %v46 = vld [vmem:[%s0 + $0xf0] sm:$0xff]
  %v47 = vld [vmem:[%s0 + $0xf8] sm:$0xf]
  %v48 = vld [vmem:[%s0 + $0xfc] sm:$0xff]
  %v49 = vld [vmem:[%s0 + $0x104] sm:$0xff]
  %v50 = vld [vmem:[%s0 + $0x10c] sm:$0xff]
  %v51 = vld [vmem:[%s0 + $0x114] sm:$0xff]
  %v52 = vld [vmem:[%s0 + $0x11c] sm:$0xf]
  %v53 = vld [vmem:[%s0 + $0x120] sm:$0xff]
  %v54 = vld [vmem:[%s0 + $0x128] sm:$0xff]
  %v55 = vld [vmem:[%s0 + $0x130] sm:$0xff]
  %v56 = vld [vmem:[%s0 + $0x138] sm:$0xff]
  %v57 = vld [vmem:[%s0 + $0x140] sm:$0xf]
  %v58 = vld [vmem:[%s0 + $0x144] sm:$0xff]
  %v59 = vld [vmem:[%s0 + $0x14c] sm:$0xff]
  %v60 = vld [vmem:[%s0 + $0x154] sm:$0xff]
  %v61 = vld [vmem:[%s0 + $0x15c] sm:$0xff]
  %v62 = vld [vmem:[%s0 + $0x164] sm:$0xf]
  %v63 = vld [vmem:[%s0 + $0x168] sm:$0xff]
  %v64 = vld [vmem:[%s0 + $0x170] sm:$0xff]
  %v65 = vld [vmem:[%s0 + $0x178] sm:$0xff]
  %v66 = vld [vmem:[%s0 + $0x180] sm:$0xff]
  %v67 = vld [vmem:[%s0 + $0x188] sm:$0xf]
  %v68 = vld [vmem:[%s0 + $0x18c] sm:$0xff]
  %v69 = vld [vmem:[%s0 + $0x194] sm:$0xff]
  %v70 = vld [vmem:[%s0 + $0x19c] sm:$0xff]
  %v71 = vld [vmem:[%s0 + $0x1a4] sm:$0xff]
  %v72 = vld [vmem:[%s0 + $0x1ac] sm:$0xf]
  %v73 = vld [vmem:[%s0 + $0x1b0] sm:$0xff]
  %v74 = vld [vmem:[%s0 + $0x1b8] sm:$0xff]
  %v75 = vld [vmem:[%s0 + $0x1c0] sm:$0xff]
  %v76 = vld [vmem:[%s0 + $0x1c8] sm:$0xff]
  %v77 = vld [vmem:[%s0 + $0x1d0] sm:$0xf]
  %v78 = vld [vmem:[%s0 + $0x1d4] sm:$0xff]
  %v79 = vld [vmem:[%s0 + $0x1dc] sm:$0xff]
  %v80 = vld [vmem:[%s0 + $0x1e4] sm:$0xff]
  %v81 = vld [vmem:[%s0 + $0x1ec] sm:$0xff]
  %v82 = vld [vmem:[%s0 + $0x1f4] sm:$0xf]
  %v83 = vld [vmem:[%s0 + $0x1f8] sm:$0xff]
  %v84 = vld [vmem:[%s0 + $0x200] sm:$0xff]
  %v85 = vld [vmem:[%s0 + $0x208] sm:$0xff]
  %v86 = vld [vmem:[%s0 + $0x210] sm:$0xff]
  %v87 = vld [vmem:[%s0 + $0x218] sm:$0xf]
  %v88 = vld [vmem:[%s0 + $0x21c] sm:$0xff]
  %v89 = vld [vmem:[%s0 + $0x224] sm:$0xff]
  %v90 = vld [vmem:[%s0 + $0x22c] sm:$0xff]
  %v91 = vld [vmem:[%s0 + $0x234] sm:$0xff]
  %v92 = vld [vmem:[%s0 + $0x23c] sm:$0xf]
  %v93 = vld [vmem:[%s0 + $0x240] sm:$0xff]
  %v94 = vld [vmem:[%s0 + $0x248] sm:$0xff]
  %v95 = vld [vmem:[%s0 + $0x250] sm:$0xff]
  %v96 = vld [vmem:[%s0 + $0x258] sm:$0xff]
  %v97 = vld [vmem:[%s0 + $0x260] sm:$0xf]
  %v98 = vld [vmem:[%s0 + $0x264] sm:$0xff]
  %v99 = vld [vmem:[%s0 + $0x26c] sm:$0xff]
  %v100 = vld [vmem:[%s0 + $0x274] sm:$0xff]
  %v101 = vld [vmem:[%s0 + $0x27c] sm:$0xff]
  %v102 = vld [vmem:[%s0 + $0x284] sm:$0xf]
  %v103 = vld [vmem:[%s0 + $0x288] sm:$0xff]
  %v104 = vld [vmem:[%s0 + $0x290] sm:$0xff]
  %v105 = vld [vmem:[%s0 + $0x298] sm:$0xff]
  %v106 = vld [vmem:[%s0 + $0x2a0] sm:$0xff]
  %v107 = vld [vmem:[%s0 + $0x2a8] sm:$0xf]
  %v108 = vld [vmem:[%s0 + $0x2ac] sm:$0xff]
  %v109 = vld [vmem:[%s0 + $0x2b4] sm:$0xff]
  %v110 = vld [vmem:[%s0 + $0x2bc] sm:$0xff]
  %v111 = vld [vmem:[%s0 + $0x2c4] sm:$0xff]
  %v112 = vld [vmem:[%s0 + $0x2cc] sm:$0xf]
  %v113 = vld [vmem:[%s0 + $0x2d0] sm:$0xff]
  %v114 = vld [vmem:[%s0 + $0x2d8] sm:$0xff]
  %v115 = vld [vmem:[%s0 + $0x2e0] sm:$0xff]
  %v116 = vld [vmem:[%s0 + $0x2e8] sm:$0xff]
  %v117 = vld [vmem:[%s0 + $0x2f0] sm:$0xf]
  %v118 = vld [vmem:[%s0 + $0x2f4] sm:$0xff]
  %v119 = vld [vmem:[%s0 + $0x2fc] sm:$0xff]
  %v120 = vld [vmem:[%s0 + $0x304] sm:$0xff]
  %v121 = vld [vmem:[%s0 + $0x30c] sm:$0xff]
  %v122 = vld [vmem:[%s0 + $0x314] sm:$0xf]
  %v123 = vld [vmem:[%s0 + $0x318] sm:$0xff]
  %v124 = vld [vmem:[%s0 + $0x320] sm:$0xff]
  %v125 = vld [vmem:[%s0 + $0x328] sm:$0xff]
  %v126 = vld [vmem:[%s0 + $0x330] sm:$0xff]
  %v127 = vld [vmem:[%s0 + $0x338] sm:$0xf]
  %v128 = vld [vmem:[%s0 + $0x33c] sm:$0xff]
  %v129 = vld [vmem:[%s0 + $0x344] sm:$0xff]
  %v130 = vld [vmem:[%s0 + $0x34c] sm:$0xff]
  %v131 = vld [vmem:[%s0 + $0x354] sm:$0xff]
  %v132 = vld [vmem:[%s0 + $0x35c] sm:$0xf]
  %v133 = vld [vmem:[%s0 + $0x360] sm:$0xff]
  %v134 = vld [vmem:[%s0 + $0x368] sm:$0xff]
  %v135 = vld [vmem:[%s0 + $0x370] sm:$0xff]
  %v136 = vld [vmem:[%s0 + $0x378] sm:$0xff]
  %v137 = vld [vmem:[%s0 + $0x380] sm:$0xf]
  %v138 = vld [vmem:[%s0 + $0x384] sm:$0xff]
  %v139 = vld [vmem:[%s0 + $0x38c] sm:$0xff]
  %v140 = vld [vmem:[%s0 + $0x394] sm:$0xff]
  %v141 = vld [vmem:[%s0 + $0x39c] sm:$0xff]
  %v142 = vld [vmem:[%s0 + $0x3a4] sm:$0xf]
  %v143 = vld [vmem:[%s0 + $0x3a8] sm:$0xff]
  %v144 = vld [vmem:[%s0 + $0x3b0] sm:$0xff]
  %v145 = vld [vmem:[%s0 + $0x3b8] sm:$0xff]
  %v146 = vld [vmem:[%s0 + $0x3c0] sm:$0xff]
  %v147 = vld [vmem:[%s0 + $0x3c8] sm:$0xf]
  %v148 = vld [vmem:[%s0 + $0x3cc] sm:$0xff]
  %v149 = vld [vmem:[%s0 + $0x3d4] sm:$0xff]
  %v150 = vld [vmem:[%s0 + $0x3dc] sm:$0xff]
  %v151 = vld [vmem:[%s0 + $0x3e4] sm:$0xff]
  %v152 = vld [vmem:[%s0 + $0x3ec] sm:$0xf]
  %v153 = vld [vmem:[%s0 + $0x3f0] sm:$0xff]
  %v154 = vld [vmem:[%s0 + $0x3f8] sm:$0xff]
  %v155 = vld [vmem:[%s0 + $0x400] sm:$0xff]
  %v156 = vld [vmem:[%s0 + $0x408] sm:$0xff]
  %v157 = vld [vmem:[%s0 + $0x410] sm:$0xf]
  %v158 = vld [vmem:[%s0 + $0x414] sm:$0xff]
  %v159 = vld [vmem:[%s0 + $0x41c] sm:$0xff]
  %v160 = vld [vmem:[%s0 + $0x424] sm:$0xff]
  %v161 = vld [vmem:[%s0 + $0x42c] sm:$0xff]
  %v162 = vld [vmem:[%s0 + $0x434] sm:$0xf]
  %v163 = vld [vmem:[%s0 + $0x438] sm:$0xff]
  %v164 = vld [vmem:[%s0 + $0x440] sm:$0xff]
  %v165 = vld [vmem:[%s0 + $0x448] sm:$0xff]
  %v166 = vld [vmem:[%s0 + $0x450] sm:$0xff]
  %v167 = vld [vmem:[%s0 + $0x458] sm:$0xf]
  %v168 = vld [vmem:[%s0 + $0x45c] sm:$0xff]
  %v169 = vld [vmem:[%s0 + $0x464] sm:$0xff]
  %v170 = vld [vmem:[%s0 + $0x46c] sm:$0xff]
  %v171 = vld [vmem:[%s0 + $0x474] sm:$0xff]
  %v172 = vld [vmem:[%s0 + $0x47c] sm:$0xf]
  %v173 = vld [vmem:[%s1] sm:$0xf]
  %v174 = vld [vmem:[%s1 + $0x4] sm:$0xf]
  %v175 = vld [vmem:[%s1 + $0x8] sm:$0xf]
  %v176 = vld [vmem:[%s1 + $0xc] sm:$0xf]
  %v177 = vld [vmem:[%s1 + $0x10] sm:$0xf]
  %v178 = vld [vmem:[%s1 + $0x14] sm:$0xf]
  %v179 = vld [vmem:[%s1 + $0x18] sm:$0xf]
  %v180 = vld [vmem:[%s1 + $0x1c] sm:$0xf]
  %v181 = vld [vmem:[%s1 + $0x20] sm:$0xf]
  %v182 = vld [vmem:[%s1 + $0x24] sm:$0xf]
  %v183 = vld [vmem:[%s1 + $0x28] sm:$0xf]
  %v184 = vld [vmem:[%s1 + $0x2c] sm:$0xf]
  %v185 = vld [vmem:[%s1 + $0x30] sm:$0xf]
  %v186 = vld [vmem:[%s1 + $0x34] sm:$0xf]
  %v187 = vld [vmem:[%s1 + $0x38] sm:$0xf]
  %v188 = vld [vmem:[%s1 + $0x3c] sm:$0xf]
  %v189 = vld [vmem:[%s1 + $0x40] sm:$0xf]
  %v190 = vld [vmem:[%s1 + $0x44] sm:$0xf]
  %v191 = vld [vmem:[%s1 + $0x48] sm:$0xf]
  %v192 = vld [vmem:[%s1 + $0x4c] sm:$0xf]
  %v193 = vld [vmem:[%s1 + $0x50] sm:$0xf]
  %v194 = vld [vmem:[%s1 + $0x54] sm:$0xf]
  %v195 = vld [vmem:[%s1 + $0x58] sm:$0xf]
  %v196 = vld [vmem:[%s1 + $0x5c] sm:$0xf]
  %v197 = vld [vmem:[%s1 + $0x60] sm:$0xf]
  %v198 = vld [vmem:[%s1 + $0x64] sm:$0xf]
  %v199 = vld [vmem:[%s1 + $0x68] sm:$0xf]
  %v200 = vld [vmem:[%s1 + $0x6c] sm:$0xf]
  %v201 = vld [vmem:[%s1 + $0x70] sm:$0xf]
  %v202 = vld [vmem:[%s1 + $0x74] sm:$0xf]
  %v203 = vld [vmem:[%s1 + $0x78] sm:$0xf]
  %v204 = vld [vmem:[%s1 + $0x7c] sm:$0xf]
  %v205 = vld [vmem:[%s1 + $0x80] sm:$0xf]
  %v206 = vld [vmem:[%s1 + $0x84] sm:$0xf]
  %v207 = vld [vmem:[%s1 + $0x88] sm:$0xf]
  %v208 = vld [vmem:[%s1 + $0x8c] sm:$0xf]
  %v209 = vld [vmem:[%s1 + $0x90] sm:$0xf]
  %v210 = vld [vmem:[%s1 + $0x94] sm:$0xf]
  %v211 = vld [vmem:[%s1 + $0x98] sm:$0xf]
  %v212 = vld [vmem:[%s1 + $0x9c] sm:$0xf]
  %v213 = vld [vmem:[%s1 + $0xa0] sm:$0xf]
  %v214 = vld [vmem:[%s1 + $0xa4] sm:$0xf]
  %v215 = vld [vmem:[%s1 + $0xa8] sm:$0xf]
  %v216 = vld [vmem:[%s1 + $0xac] sm:$0xf]
  %v217 = vld [vmem:[%s1 + $0xb0] sm:$0xf]
  %v218 = vld [vmem:[%s1 + $0xb4] sm:$0xf]
  %v219 = vld [vmem:[%s1 + $0xb8] sm:$0xf]
  %v220 = vld [vmem:[%s1 + $0xbc] sm:$0xf]
  %v221 = vld [vmem:[%s1 + $0xc0] sm:$0xf]
  %v222 = vld [vmem:[%s1 + $0xc4] sm:$0xf]
  %v223 = vld [vmem:[%s1 + $0xc8] sm:$0xf]
  %v224 = vld [vmem:[%s1 + $0xcc] sm:$0xf]
  %v225 = vld [vmem:[%s1 + $0xd0] sm:$0xf]
  %v226 = vld [vmem:[%s1 + $0xd4] sm:$0xf]
  %v227 = vld [vmem:[%s1 + $0xd8] sm:$0xf]
  %v228 = vld [vmem:[%s1 + $0xdc] sm:$0xf]
  %v229 = vld [vmem:[%s1 + $0xe0] sm:$0xf]
  %v230 = vld [vmem:[%s1 + $0xe4] sm:$0xf]
  %v231 = vld [vmem:[%s1 + $0xe8] sm:$0xf]
  %v232 = vld [vmem:[%s1 + $0xec] sm:$0xf]
  %v233 = vld [vmem:[%s1 + $0xf0] sm:$0xf]
  %v234 = vld [vmem:[%s1 + $0xf4] sm:$0xf]
  %v235 = vld [vmem:[%s1 + $0xf8] sm:$0xf]
  %v236 = vld [vmem:[%s1 + $0xfc] sm:$0xf]
  %v237 = vld [vmem:[%s1 + $0x100] sm:$0xf]
  %v238 = vld [vmem:[%s1 + $0x104] sm:$0xf]
  %v239 = vld [vmem:[%s1 + $0x108] sm:$0xf]
  %v240 = vld [vmem:[%s1 + $0x10c] sm:$0xf]
  %v241 = vld [vmem:[%s1 + $0x110] sm:$0xf]
  %v242 = vld [vmem:[%s1 + $0x114] sm:$0xf]
  %v243 = vld [vmem:[%s1 + $0x118] sm:$0xf]
  %v244 = vld [vmem:[%s1 + $0x11c] sm:$0xf]
  %v245 = vld [vmem:[%s1 + $0x120] sm:$0xf]
  %v246 = vld [vmem:[%s1 + $0x124] sm:$0xf]
  %v247 = vld [vmem:[%s1 + $0x128] sm:$0xf]
  %v248 = vld [vmem:[%s1 + $0x12c] sm:$0xf]
  %v249 = vld [vmem:[%s1 + $0x130] sm:$0xf]
  %v250 = vld [vmem:[%s1 + $0x134] sm:$0xf]
  %v251 = vld [vmem:[%s1 + $0x138] sm:$0xf]
  %v252 = vld [vmem:[%s1 + $0x13c] sm:$0xf]
  %v253 = vld [vmem:[%s1 + $0x140] sm:$0xf]
  %v254 = vld [vmem:[%s1 + $0x144] sm:$0xf]
  %v255 = vld [vmem:[%s1 + $0x148] sm:$0xf]
  %v256 = vld [vmem:[%s1 + $0x14c] sm:$0xf]
  %v257 = vld [vmem:[%s1 + $0x150] sm:$0xf]
  %v258 = vld [vmem:[%s1 + $0x154] sm:$0xf]
  %v259 = vld [vmem:[%s1 + $0x158] sm:$0xf]
  %v260 = vld [vmem:[%s1 + $0x15c] sm:$0xf]
  %v261 = vld [vmem:[%s1 + $0x160] sm:$0xf]
  %v262 = vld [vmem:[%s1 + $0x164] sm:$0xf]
  %v263 = vld [vmem:[%s1 + $0x168] sm:$0xf]
  %v264 = vld [vmem:[%s1 + $0x16c] sm:$0xf]
  %v265 = vld [vmem:[%s1 + $0x170] sm:$0xf]
  %v266 = vld [vmem:[%s1 + $0x174] sm:$0xf]
  %v267 = vld [vmem:[%s1 + $0x178] sm:$0xf]
  %v268 = vld [vmem:[%s1 + $0x17c] sm:$0xf]
  %v269 = vld [vmem:[%s1 + $0x180] sm:$0xf]
  %v270 = vld [vmem:[%s1 + $0x184] sm:$0xf]
  %v271 = vld [vmem:[%s1 + $0x188] sm:$0xf]
  %v272 = vld [vmem:[%s1 + $0x18c] sm:$0xf]
  %v273 = vld [vmem:[%s1 + $0x190] sm:$0xf]
  %v274 = vld [vmem:[%s1 + $0x194] sm:$0xf]
  %v275 = vld [vmem:[%s1 + $0x198] sm:$0xf]
  %v276 = vld [vmem:[%s1 + $0x19c] sm:$0xf]
  %v277 = vld [vmem:[%s1 + $0x1a0] sm:$0xf]
  %v278 = vld [vmem:[%s1 + $0x1a4] sm:$0xf]
  %v279 = vld [vmem:[%s1 + $0x1a8] sm:$0xf]
  %v280 = vld [vmem:[%s1 + $0x1ac] sm:$0xf]
  %v281 = vld [vmem:[%s1 + $0x1b0] sm:$0xf]
  %v282 = vld [vmem:[%s1 + $0x1b4] sm:$0xf]
  %v283 = vld [vmem:[%s1 + $0x1b8] sm:$0xf]
  %v284 = vld [vmem:[%s1 + $0x1bc] sm:$0xf]
  %v285 = vld [vmem:[%s1 + $0x1c0] sm:$0xf]
  %v286 = vld [vmem:[%s1 + $0x1c4] sm:$0xf]
  %v287 = vld [vmem:[%s1 + $0x1c8] sm:$0xf]
  %v288 = vld [vmem:[%s1 + $0x1cc] sm:$0xf]
  %v289 = vld [vmem:[%s1 + $0x1d0] sm:$0xf]
  %v290 = vld [vmem:[%s1 + $0x1d4] sm:$0xf]
  %v291 = vld [vmem:[%s1 + $0x1d8] sm:$0xf]
  %v292 = vld [vmem:[%s1 + $0x1dc] sm:$0xf]
  %v293 = vld [vmem:[%s1 + $0x1e0] sm:$0xf]
  %v294 = vld [vmem:[%s1 + $0x1e4] sm:$0xf]
  %v295 = vld [vmem:[%s1 + $0x1e8] sm:$0xf]
  %v296 = vld [vmem:[%s1 + $0x1ec] sm:$0xf]
  %v297 = vld [vmem:[%s1 + $0x1f0] sm:$0xf]
  %v298 = vld [vmem:[%s1 + $0x1f4] sm:$0xf]
  %v299 = vld [vmem:[%s1 + $0x1f8] sm:$0xf]
  %v300 = vld [vmem:[%s1 + $0x1fc] sm:$0xf]
  %v301 = vld [vmem:[%s1 + $0x200] sm:$0xf]
  %v302 = vld [vmem:[%s1 + $0x204] sm:$0xf]
  %v303 = vld [vmem:[%s1 + $0x208] sm:$0xf]
  %v304 = vld [vmem:[%s1 + $0x20c] sm:$0xf]
  %v305 = vld [vmem:[%s1 + $0x210] sm:$0xf]
  %v306 = vld [vmem:[%s1 + $0x214] sm:$0xf]
  %v307 = vld [vmem:[%s1 + $0x218] sm:$0xf]
  %v308 = vld [vmem:[%s1 + $0x21c] sm:$0xf]
  %v309 = vld [vmem:[%s1 + $0x220] sm:$0xf]
  %v310 = vld [vmem:[%s1 + $0x224] sm:$0xf]
  %v311 = vld [vmem:[%s1 + $0x228] sm:$0xf]
  %v312 = vld [vmem:[%s1 + $0x22c] sm:$0xf]
  %v313 = vld [vmem:[%s1 + $0x230] sm:$0xf]
  %v314 = vld [vmem:[%s1 + $0x234] sm:$0xf]
  %v315 = vld [vmem:[%s1 + $0x238] sm:$0xf]
  %v316 = vld [vmem:[%s1 + $0x23c] sm:$0xf]
  %v477 = vunpack.c.l.b16 %v13
  %v478 = vunpack.c.h.b16 %v13
  %v479 = vunpack.c.l.b16 %v14
  %v480 = vunpack.c.h.b16 %v14
  %v481 = vunpack.c.l.b16 %v15
  %v482 = vunpack.c.h.b16 %v15
  %v483 = vunpack.c.l.b16 %v16
  %v484 = vunpack.c.h.b16 %v16
  %v485 = vunpack.c.l.b16 %v17
  %v486 = vunpack.c.l.b16 %v18
  %v487 = vunpack.c.h.b16 %v18
  %v488 = vunpack.c.l.b16 %v19
  %v489 = vunpack.c.h.b16 %v19
  %v490 = vunpack.c.l.b16 %v20
  %v491 = vunpack.c.h.b16 %v20
  %v492 = vunpack.c.l.b16 %v21
  %v493 = vunpack.c.h.b16 %v21
  %v494 = vunpack.c.l.b16 %v22
  %v495 = vunpack.c.l.b16 %v23
  %v496 = vunpack.c.h.b16 %v23
  %v497 = vunpack.c.l.b16 %v24
  %v498 = vunpack.c.h.b16 %v24
  %v499 = vunpack.c.l.b16 %v25
  %v500 = vunpack.c.h.b16 %v25
  %v501 = vunpack.c.l.b16 %v26
  %v502 = vunpack.c.h.b16 %v26
  %v503 = vunpack.c.l.b16 %v27
  %v504 = vunpack.c.l.b16 %v28
  %v505 = vunpack.c.h.b16 %v28
  %v506 = vunpack.c.l.b16 %v29
  %v507 = vunpack.c.h.b16 %v29
  %v508 = vunpack.c.l.b16 %v30
  %v509 = vunpack.c.h.b16 %v30
  %v510 = vunpack.c.l.b16 %v31
  %v511 = vunpack.c.h.b16 %v31
  %v512 = vunpack.c.l.b16 %v32
  %v513 = vunpack.c.l.b16 %v33
  %v514 = vunpack.c.h.b16 %v33
  %v515 = vunpack.c.l.b16 %v34
  %v516 = vunpack.c.h.b16 %v34
  %v517 = vunpack.c.l.b16 %v35
  %v518 = vunpack.c.h.b16 %v35
  %v519 = vunpack.c.l.b16 %v36
  %v520 = vunpack.c.h.b16 %v36
  %v521 = vunpack.c.l.b16 %v37
  %v522 = vunpack.c.l.b16 %v38
  %v523 = vunpack.c.h.b16 %v38
  %v524 = vunpack.c.l.b16 %v39
  %v525 = vunpack.c.h.b16 %v39
  %v526 = vunpack.c.l.b16 %v40
  %v527 = vunpack.c.h.b16 %v40
  %v528 = vunpack.c.l.b16 %v41
  %v529 = vunpack.c.h.b16 %v41
  %v530 = vunpack.c.l.b16 %v42
  %v531 = vunpack.c.l.b16 %v43
  %v532 = vunpack.c.h.b16 %v43
  %v533 = vunpack.c.l.b16 %v44
  %v534 = vunpack.c.h.b16 %v44
  %v535 = vunpack.c.l.b16 %v45
  %v536 = vunpack.c.h.b16 %v45
  %v537 = vunpack.c.l.b16 %v46
  %v538 = vunpack.c.h.b16 %v46
  %v539 = vunpack.c.l.b16 %v47
  %v540 = vunpack.c.l.b16 %v48
  %v541 = vunpack.c.h.b16 %v48
  %v542 = vunpack.c.l.b16 %v49
  %v543 = vunpack.c.h.b16 %v49
  %v544 = vunpack.c.l.b16 %v50
  %v545 = vunpack.c.h.b16 %v50
  %v546 = vunpack.c.l.b16 %v51
  %v547 = vunpack.c.h.b16 %v51
  %v548 = vunpack.c.l.b16 %v52
  %v549 = vunpack.c.l.b16 %v53
  %v550 = vunpack.c.h.b16 %v53
  %v551 = vunpack.c.l.b16 %v54
  %v552 = vunpack.c.h.b16 %v54
  %v553 = vunpack.c.l.b16 %v55
  %v554 = vunpack.c.h.b16 %v55
  %v555 = vunpack.c.l.b16 %v56
  %v556 = vunpack.c.h.b16 %v56
  %v557 = vunpack.c.l.b16 %v57
  %v558 = vunpack.c.l.b16 %v58
  %v559 = vunpack.c.h.b16 %v58
  %v560 = vunpack.c.l.b16 %v59
  %v561 = vunpack.c.h.b16 %v59
  %v562 = vunpack.c.l.b16 %v60
  %v563 = vunpack.c.h.b16 %v60
  %v564 = vunpack.c.l.b16 %v61
  %v565 = vunpack.c.h.b16 %v61
  %v566 = vunpack.c.l.b16 %v62
  %v567 = vunpack.c.l.b16 %v63
  %v568 = vunpack.c.h.b16 %v63
  %v569 = vunpack.c.l.b16 %v64
  %v570 = vunpack.c.h.b16 %v64
  %v571 = vunpack.c.l.b16 %v65
  %v572 = vunpack.c.h.b16 %v65
  %v573 = vunpack.c.l.b16 %v66
  %v574 = vunpack.c.h.b16 %v66
  %v575 = vunpack.c.l.b16 %v67
  %v576 = vunpack.c.l.b16 %v68
  %v577 = vunpack.c.h.b16 %v68
  %v578 = vunpack.c.l.b16 %v69
  %v579 = vunpack.c.h.b16 %v69
  %v580 = vunpack.c.l.b16 %v70
  %v581 = vunpack.c.h.b16 %v70
  %v582 = vunpack.c.l.b16 %v71
  %v583 = vunpack.c.h.b16 %v71
  %v584 = vunpack.c.l.b16 %v72
  %v585 = vunpack.c.l.b16 %v73
  %v586 = vunpack.c.h.b16 %v73
  %v587 = vunpack.c.l.b16 %v74
  %v588 = vunpack.c.h.b16 %v74
  %v589 = vunpack.c.l.b16 %v75
  %v590 = vunpack.c.h.b16 %v75
  %v591 = vunpack.c.l.b16 %v76
  %v592 = vunpack.c.h.b16 %v76
  %v593 = vunpack.c.l.b16 %v77
  %v594 = vunpack.c.l.b16 %v78
  %v595 = vunpack.c.h.b16 %v78
  %v596 = vunpack.c.l.b16 %v79
  %v597 = vunpack.c.h.b16 %v79
  %v598 = vunpack.c.l.b16 %v80
  %v599 = vunpack.c.h.b16 %v80
  %v600 = vunpack.c.l.b16 %v81
  %v601 = vunpack.c.h.b16 %v81
  %v602 = vunpack.c.l.b16 %v82
  %v603 = vunpack.c.l.b16 %v83
  %v604 = vunpack.c.h.b16 %v83
  %v605 = vunpack.c.l.b16 %v84
  %v606 = vunpack.c.h.b16 %v84
  %v607 = vunpack.c.l.b16 %v85
  %v608 = vunpack.c.h.b16 %v85
  %v609 = vunpack.c.l.b16 %v86
  %v610 = vunpack.c.h.b16 %v86
  %v611 = vunpack.c.l.b16 %v87
  %v612 = vunpack.c.l.b16 %v88
  %v613 = vunpack.c.h.b16 %v88
  %v614 = vunpack.c.l.b16 %v89
  %v615 = vunpack.c.h.b16 %v89
  %v616 = vunpack.c.l.b16 %v90
  %v617 = vunpack.c.h.b16 %v90
  %v618 = vunpack.c.l.b16 %v91
  %v619 = vunpack.c.h.b16 %v91
  %v620 = vunpack.c.l.b16 %v92
  %v621 = vunpack.c.l.b16 %v93
  %v622 = vunpack.c.h.b16 %v93
  %v623 = vunpack.c.l.b16 %v94
  %v624 = vunpack.c.h.b16 %v94
  %v625 = vunpack.c.l.b16 %v95
  %v626 = vunpack.c.h.b16 %v95
  %v627 = vunpack.c.l.b16 %v96
  %v628 = vunpack.c.h.b16 %v96
  %v629 = vunpack.c.l.b16 %v97
  %v630 = vunpack.c.l.b16 %v98
  %v631 = vunpack.c.h.b16 %v98
  %v632 = vunpack.c.l.b16 %v99
  %v633 = vunpack.c.h.b16 %v99
  %v634 = vunpack.c.l.b16 %v100
  %v635 = vunpack.c.h.b16 %v100
  %v636 = vunpack.c.l.b16 %v101
  %v637 = vunpack.c.h.b16 %v101
  %v638 = vunpack.c.l.b16 %v102
  %v639 = vunpack.c.l.b16 %v103
  %v640 = vunpack.c.h.b16 %v103
  %v641 = vunpack.c.l.b16 %v104
  %v642 = vunpack.c.h.b16 %v104
  %v643 = vunpack.c.l.b16 %v105
  %v644 = vunpack.c.h.b16 %v105
  %v645 = vunpack.c.l.b16 %v106
  %v646 = vunpack.c.h.b16 %v106
  %v647 = vunpack.c.l.b16 %v107
  %v648 = vunpack.c.l.b16 %v108
  %v649 = vunpack.c.h.b16 %v108
  %v650 = vunpack.c.l.b16 %v109
  %v651 = vunpack.c.h.b16 %v109
  %v652 = vunpack.c.l.b16 %v110
  %v653 = vunpack.c.h.b16 %v110
  %v654 = vunpack.c.l.b16 %v111
  %v655 = vunpack.c.h.b16 %v111
  %v656 = vunpack.c.l.b16 %v112
  %v657 = vunpack.c.l.b16 %v113
  %v658 = vunpack.c.h.b16 %v113
  %v659 = vunpack.c.l.b16 %v114
  %v660 = vunpack.c.h.b16 %v114
  %v661 = vunpack.c.l.b16 %v115
  %v662 = vunpack.c.h.b16 %v115
  %v663 = vunpack.c.l.b16 %v116
  %v664 = vunpack.c.h.b16 %v116
  %v665 = vunpack.c.l.b16 %v117
  %v666 = vunpack.c.l.b16 %v118
  %v667 = vunpack.c.h.b16 %v118
  %v668 = vunpack.c.l.b16 %v119
  %v669 = vunpack.c.h.b16 %v119
  %v670 = vunpack.c.l.b16 %v120
  %v671 = vunpack.c.h.b16 %v120
  %v672 = vunpack.c.l.b16 %v121
  %v673 = vunpack.c.h.b16 %v121
  %v674 = vunpack.c.l.b16 %v122
  %v675 = vunpack.c.l.b16 %v123
  %v676 = vunpack.c.h.b16 %v123
  %v677 = vunpack.c.l.b16 %v124
  %v678 = vunpack.c.h.b16 %v124
  %v679 = vunpack.c.l.b16 %v125
  %v680 = vunpack.c.h.b16 %v125
  %v681 = vunpack.c.l.b16 %v126
  %v682 = vunpack.c.h.b16 %v126
  %v683 = vunpack.c.l.b16 %v127
  %v684 = vunpack.c.l.b16 %v128
  %v685 = vunpack.c.h.b16 %v128
  %v686 = vunpack.c.l.b16 %v129
  %v687 = vunpack.c.h.b16 %v129
  %v688 = vunpack.c.l.b16 %v130
  %v689 = vunpack.c.h.b16 %v130
  %v690 = vunpack.c.l.b16 %v131
  %v691 = vunpack.c.h.b16 %v131
  %v692 = vunpack.c.l.b16 %v132
  %v693 = vunpack.c.l.b16 %v133
  %v694 = vunpack.c.h.b16 %v133
  %v695 = vunpack.c.l.b16 %v134
  %v696 = vunpack.c.h.b16 %v134
  %v697 = vunpack.c.l.b16 %v135
  %v698 = vunpack.c.h.b16 %v135
  %v699 = vunpack.c.l.b16 %v136
  %v700 = vunpack.c.h.b16 %v136
  %v701 = vunpack.c.l.b16 %v137
  %v702 = vunpack.c.l.b16 %v138
  %v703 = vunpack.c.h.b16 %v138
  %v704 = vunpack.c.l.b16 %v139
  %v705 = vunpack.c.h.b16 %v139
  %v706 = vunpack.c.l.b16 %v140
  %v707 = vunpack.c.h.b16 %v140
  %v708 = vunpack.c.l.b16 %v141
  %v709 = vunpack.c.h.b16 %v141
  %v710 = vunpack.c.l.b16 %v142
  %v711 = vunpack.c.l.b16 %v143
  %v712 = vunpack.c.h.b16 %v143
  %v713 = vunpack.c.l.b16 %v144
  %v714 = vunpack.c.h.b16 %v144
  %v715 = vunpack.c.l.b16 %v145
  %v716 = vunpack.c.h.b16 %v145
  %v717 = vunpack.c.l.b16 %v146
  %v718 = vunpack.c.h.b16 %v146
  %v719 = vunpack.c.l.b16 %v147
  %v720 = vunpack.c.l.b16 %v148
  %v721 = vunpack.c.h.b16 %v148
  %v722 = vunpack.c.l.b16 %v149
  %v723 = vunpack.c.h.b16 %v149
  %v724 = vunpack.c.l.b16 %v150
  %v725 = vunpack.c.h.b16 %v150
  %v726 = vunpack.c.l.b16 %v151
  %v727 = vunpack.c.h.b16 %v151
  %v728 = vunpack.c.l.b16 %v152
  %v729 = vunpack.c.l.b16 %v153
  %v730 = vunpack.c.h.b16 %v153
  %v731 = vunpack.c.l.b16 %v154
  %v732 = vunpack.c.h.b16 %v154
  %v733 = vunpack.c.l.b16 %v155
  %v734 = vunpack.c.h.b16 %v155
  %v735 = vunpack.c.l.b16 %v156
  %v736 = vunpack.c.h.b16 %v156
  %v737 = vunpack.c.l.b16 %v157
  %v738 = vunpack.c.l.b16 %v158
  %v739 = vunpack.c.h.b16 %v158
  %v740 = vunpack.c.l.b16 %v159
  %v741 = vunpack.c.h.b16 %v159
  %v742 = vunpack.c.l.b16 %v160
  %v743 = vunpack.c.h.b16 %v160
  %v744 = vunpack.c.l.b16 %v161
  %v745 = vunpack.c.h.b16 %v161
  %v746 = vunpack.c.l.b16 %v162
  %v747 = vunpack.c.l.b16 %v163
  %v748 = vunpack.c.h.b16 %v163
  %v749 = vunpack.c.l.b16 %v164
  %v750 = vunpack.c.h.b16 %v164
  %v751 = vunpack.c.l.b16 %v165
  %v752 = vunpack.c.h.b16 %v165
  %v753 = vunpack.c.l.b16 %v166
  %v754 = vunpack.c.h.b16 %v166
  %v755 = vunpack.c.l.b16 %v167
  %v756 = vunpack.c.l.b16 %v168
  %v757 = vunpack.c.h.b16 %v168
  %v758 = vunpack.c.l.b16 %v169
  %v759 = vunpack.c.h.b16 %v169
  %v760 = vunpack.c.l.b16 %v170
  %v761 = vunpack.c.h.b16 %v170
  %v762 = vunpack.c.l.b16 %v171
  %v763 = vunpack.c.h.b16 %v171
  %v764 = vunpack.c.l.b16 %v172
  %v765 = vpack.c.b16 %v486, %v477
  %v766 = vpack.c.b16 %v487, %v478
  %v767 = vpack.c.b16 %v488, %v479
  %v768 = vpack.c.b16 %v489, %v480
  %v769 = vpack.c.b16 %v490, %v481
  %v770 = vpack.c.b16 %v491, %v482
  %v771 = vpack.c.b16 %v492, %v483
  %v772 = vpack.c.b16 %v493, %v484
  %v773 = vpack.c.b16 %v494, %v485
  %v774 = vpack.c.b16 %v504, %v495
  %v775 = vpack.c.b16 %v505, %v496
  %v776 = vpack.c.b16 %v506, %v497
  %v777 = vpack.c.b16 %v507, %v498
  %v778 = vpack.c.b16 %v508, %v499
  %v779 = vpack.c.b16 %v509, %v500
  %v780 = vpack.c.b16 %v510, %v501
  %v781 = vpack.c.b16 %v511, %v502
  %v782 = vpack.c.b16 %v512, %v503
  %v783 = vpack.c.b16 %v522, %v513
  %v784 = vpack.c.b16 %v523, %v514
  %v785 = vpack.c.b16 %v524, %v515
  %v786 = vpack.c.b16 %v525, %v516
  %v787 = vpack.c.b16 %v526, %v517
  %v788 = vpack.c.b16 %v527, %v518
  %v789 = vpack.c.b16 %v528, %v519
  %v790 = vpack.c.b16 %v529, %v520
  %v791 = vpack.c.b16 %v530, %v521
  %v792 = vpack.c.b16 %v540, %v531
  %v793 = vpack.c.b16 %v541, %v532
  %v794 = vpack.c.b16 %v542, %v533
  %v795 = vpack.c.b16 %v543, %v534
  %v796 = vpack.c.b16 %v544, %v535
  %v797 = vpack.c.b16 %v545, %v536
  %v798 = vpack.c.b16 %v546, %v537
  %v799 = vpack.c.b16 %v547, %v538
  %v800 = vpack.c.b16 %v548, %v539
  %v801 = vpack.c.b16 %v558, %v549
  %v802 = vpack.c.b16 %v559, %v550
  %v803 = vpack.c.b16 %v560, %v551
  %v804 = vpack.c.b16 %v561, %v552
  %v805 = vpack.c.b16 %v562, %v553
  %v806 = vpack.c.b16 %v563, %v554
  %v807 = vpack.c.b16 %v564, %v555
  %v808 = vpack.c.b16 %v565, %v556
  %v809 = vpack.c.b16 %v566, %v557
  %v810 = vpack.c.b16 %v576, %v567
  %v811 = vpack.c.b16 %v577, %v568
  %v812 = vpack.c.b16 %v578, %v569
  %v813 = vpack.c.b16 %v579, %v570
  %v814 = vpack.c.b16 %v580, %v571
  %v815 = vpack.c.b16 %v581, %v572
  %v816 = vpack.c.b16 %v582, %v573
  %v817 = vpack.c.b16 %v583, %v574
  %v818 = vpack.c.b16 %v584, %v575
  %v819 = vpack.c.b16 %v594, %v585
  %v820 = vpack.c.b16 %v595, %v586
  %v821 = vpack.c.b16 %v596, %v587
  %v822 = vpack.c.b16 %v597, %v588
  %v823 = vpack.c.b16 %v598, %v589
  %v824 = vpack.c.b16 %v599, %v590
  %v825 = vpack.c.b16 %v600, %v591
  %v826 = vpack.c.b16 %v601, %v592
  %v827 = vpack.c.b16 %v602, %v593
  %v828 = vpack.c.b16 %v612, %v603
  %v829 = vpack.c.b16 %v613, %v604
  %v830 = vpack.c.b16 %v614, %v605
  %v831 = vpack.c.b16 %v615, %v606
  %v832 = vpack.c.b16 %v616, %v607
  %v833 = vpack.c.b16 %v617, %v608
  %v834 = vpack.c.b16 %v618, %v609
  %v835 = vpack.c.b16 %v619, %v610
  %v836 = vpack.c.b16 %v620, %v611
  %v837 = vpack.c.b16 %v630, %v621
  %v838 = vpack.c.b16 %v631, %v622
  %v839 = vpack.c.b16 %v632, %v623
  %v840 = vpack.c.b16 %v633, %v624
  %v841 = vpack.c.b16 %v634, %v625
  %v842 = vpack.c.b16 %v635, %v626
  %v843 = vpack.c.b16 %v636, %v627
  %v844 = vpack.c.b16 %v637, %v628
  %v845 = vpack.c.b16 %v638, %v629
  %v846 = vpack.c.b16 %v648, %v639
  %v847 = vpack.c.b16 %v649, %v640
  %v848 = vpack.c.b16 %v650, %v641
  %v849 = vpack.c.b16 %v651, %v642
  %v850 = vpack.c.b16 %v652, %v643
  %v851 = vpack.c.b16 %v653, %v644
  %v852 = vpack.c.b16 %v654, %v645
  %v853 = vpack.c.b16 %v655, %v646
  %v854 = vpack.c.b16 %v656, %v647
  %v855 = vpack.c.b16 %v666, %v657
  %v856 = vpack.c.b16 %v667, %v658
  %v857 = vpack.c.b16 %v668, %v659
  %v858 = vpack.c.b16 %v669, %v660
  %v859 = vpack.c.b16 %v670, %v661
  %v860 = vpack.c.b16 %v671, %v662
  %v861 = vpack.c.b16 %v672, %v663
  %v862 = vpack.c.b16 %v673, %v664
  %v863 = vpack.c.b16 %v674, %v665
  %v864 = vpack.c.b16 %v684, %v675
  %v865 = vpack.c.b16 %v685, %v676
  %v866 = vpack.c.b16 %v686, %v677
  %v867 = vpack.c.b16 %v687, %v678
  %v868 = vpack.c.b16 %v688, %v679
  %v869 = vpack.c.b16 %v689, %v680
  %v870 = vpack.c.b16 %v690, %v681
  %v871 = vpack.c.b16 %v691, %v682
  %v872 = vpack.c.b16 %v692, %v683
  %v873 = vpack.c.b16 %v702, %v693
  %v874 = vpack.c.b16 %v703, %v694
  %v875 = vpack.c.b16 %v704, %v695
  %v876 = vpack.c.b16 %v705, %v696
  %v877 = vpack.c.b16 %v706, %v697
  %v878 = vpack.c.b16 %v707, %v698
  %v879 = vpack.c.b16 %v708, %v699
  %v880 = vpack.c.b16 %v709, %v700
  %v881 = vpack.c.b16 %v710, %v701
  %v882 = vpack.c.b16 %v720, %v711
  %v883 = vpack.c.b16 %v721, %v712
  %v884 = vpack.c.b16 %v722, %v713
  %v885 = vpack.c.b16 %v723, %v714
  %v886 = vpack.c.b16 %v724, %v715
  %v887 = vpack.c.b16 %v725, %v716
  %v888 = vpack.c.b16 %v726, %v717
  %v889 = vpack.c.b16 %v727, %v718
  %v890 = vpack.c.b16 %v728, %v719
  %v891 = vpack.c.b16 %v738, %v729
  %v892 = vpack.c.b16 %v739, %v730
  %v893 = vpack.c.b16 %v740, %v731
  %v894 = vpack.c.b16 %v741, %v732
  %v895 = vpack.c.b16 %v742, %v733
  %v896 = vpack.c.b16 %v743, %v734
  %v897 = vpack.c.b16 %v744, %v735
  %v898 = vpack.c.b16 %v745, %v736
  %v899 = vpack.c.b16 %v746, %v737
  %v900 = vpack.c.b16 %v756, %v747
  %v901 = vpack.c.b16 %v757, %v748
  %v902 = vpack.c.b16 %v758, %v749
  %v903 = vpack.c.b16 %v759, %v750
  %v904 = vpack.c.b16 %v760, %v751
  %v905 = vpack.c.b16 %v761, %v752
  %v906 = vpack.c.b16 %v762, %v753
  %v907 = vpack.c.b16 %v763, %v754
  %v908 = vpack.c.b16 %v764, %v755
  %v1197 = vunpack.c.l.b16 %v173
  %v1198 = vunpack.c.l.b16 %v174
  %v1199 = vunpack.c.l.b16 %v175
  %v1200 = vunpack.c.l.b16 %v176
  %v1201 = vunpack.c.l.b16 %v177
  %v1202 = vunpack.c.l.b16 %v178
  %v1203 = vunpack.c.l.b16 %v179
  %v1204 = vunpack.c.l.b16 %v180
  %v1205 = vunpack.c.l.b16 %v181
  %v1206 = vunpack.c.l.b16 %v182
  %v1207 = vunpack.c.l.b16 %v183
  %v1208 = vunpack.c.l.b16 %v184
  %v1209 = vunpack.c.l.b16 %v185
  %v1210 = vunpack.c.l.b16 %v186
  %v1211 = vunpack.c.l.b16 %v187
  %v1212 = vunpack.c.l.b16 %v188
  %v1213 = vunpack.c.l.b16 %v189
  %v1214 = vunpack.c.l.b16 %v190
  %v1215 = vunpack.c.l.b16 %v191
  %v1216 = vunpack.c.l.b16 %v192
  %v1217 = vunpack.c.l.b16 %v193
  %v1218 = vunpack.c.l.b16 %v194
  %v1219 = vunpack.c.l.b16 %v195
  %v1220 = vunpack.c.l.b16 %v196
  %v1221 = vunpack.c.l.b16 %v197
  %v1222 = vunpack.c.l.b16 %v198
  %v1223 = vunpack.c.l.b16 %v199
  %v1224 = vunpack.c.l.b16 %v200
  %v1225 = vunpack.c.l.b16 %v201
  %v1226 = vunpack.c.l.b16 %v202
  %v1227 = vunpack.c.l.b16 %v203
  %v1228 = vunpack.c.l.b16 %v204
  %v1229 = vunpack.c.l.b16 %v205
  %v1230 = vunpack.c.l.b16 %v206
  %v1231 = vunpack.c.l.b16 %v207
  %v1232 = vunpack.c.l.b16 %v208
  %v1233 = vunpack.c.l.b16 %v209
  %v1234 = vunpack.c.l.b16 %v210
  %v1235 = vunpack.c.l.b16 %v211
  %v1236 = vunpack.c.l.b16 %v212
  %v1237 = vunpack.c.l.b16 %v213
  %v1238 = vunpack.c.l.b16 %v214
  %v1239 = vunpack.c.l.b16 %v215
  %v1240 = vunpack.c.l.b16 %v216
  %v1241 = vunpack.c.l.b16 %v217
  %v1242 = vunpack.c.l.b16 %v218
  %v1243 = vunpack.c.l.b16 %v219
  %v1244 = vunpack.c.l.b16 %v220
  %v1245 = vunpack.c.l.b16 %v221
  %v1246 = vunpack.c.l.b16 %v222
  %v1247 = vunpack.c.l.b16 %v223
  %v1248 = vunpack.c.l.b16 %v224
  %v1249 = vunpack.c.l.b16 %v225
  %v1250 = vunpack.c.l.b16 %v226
  %v1251 = vunpack.c.l.b16 %v227
  %v1252 = vunpack.c.l.b16 %v228
  %v1253 = vunpack.c.l.b16 %v229
  %v1254 = vunpack.c.l.b16 %v230
  %v1255 = vunpack.c.l.b16 %v231
  %v1256 = vunpack.c.l.b16 %v232
  %v1257 = vunpack.c.l.b16 %v233
  %v1258 = vunpack.c.l.b16 %v234
  %v1259 = vunpack.c.l.b16 %v235
  %v1260 = vunpack.c.l.b16 %v236
  %v1261 = vunpack.c.l.b16 %v237
  %v1262 = vunpack.c.l.b16 %v238
  %v1263 = vunpack.c.l.b16 %v239
  %v1264 = vunpack.c.l.b16 %v240
  %v1265 = vunpack.c.l.b16 %v241
  %v1266 = vunpack.c.l.b16 %v242
  %v1267 = vunpack.c.l.b16 %v243
  %v1268 = vunpack.c.l.b16 %v244
  %v1269 = vunpack.c.l.b16 %v245
  %v1270 = vunpack.c.l.b16 %v246
  %v1271 = vunpack.c.l.b16 %v247
  %v1272 = vunpack.c.l.b16 %v248
  %v1273 = vunpack.c.l.b16 %v249
  %v1274 = vunpack.c.l.b16 %v250
  %v1275 = vunpack.c.l.b16 %v251
  %v1276 = vunpack.c.l.b16 %v252
  %v1277 = vunpack.c.l.b16 %v253
  %v1278 = vunpack.c.l.b16 %v254
  %v1279 = vunpack.c.l.b16 %v255
  %v1280 = vunpack.c.l.b16 %v256
  %v1281 = vunpack.c.l.b16 %v257
  %v1282 = vunpack.c.l.b16 %v258
  %v1283 = vunpack.c.l.b16 %v259
  %v1284 = vunpack.c.l.b16 %v260
  %v1285 = vunpack.c.l.b16 %v261
  %v1286 = vunpack.c.l.b16 %v262
  %v1287 = vunpack.c.l.b16 %v263
  %v1288 = vunpack.c.l.b16 %v264
  %v1289 = vunpack.c.l.b16 %v265
  %v1290 = vunpack.c.l.b16 %v266
  %v1291 = vunpack.c.l.b16 %v267
  %v1292 = vunpack.c.l.b16 %v268
  %v1293 = vunpack.c.l.b16 %v269
  %v1294 = vunpack.c.l.b16 %v270
  %v1295 = vunpack.c.l.b16 %v271
  %v1296 = vunpack.c.l.b16 %v272
  %v1297 = vunpack.c.l.b16 %v273
  %v1298 = vunpack.c.l.b16 %v274
  %v1299 = vunpack.c.l.b16 %v275
  %v1300 = vunpack.c.l.b16 %v276
  %v1301 = vunpack.c.l.b16 %v277
  %v1302 = vunpack.c.l.b16 %v278
  %v1303 = vunpack.c.l.b16 %v279
  %v1304 = vunpack.c.l.b16 %v280
  %v1305 = vunpack.c.l.b16 %v281
  %v1306 = vunpack.c.l.b16 %v282
  %v1307 = vunpack.c.l.b16 %v283
  %v1308 = vunpack.c.l.b16 %v284
  %v1309 = vunpack.c.l.b16 %v285
  %v1310 = vunpack.c.l.b16 %v286
  %v1311 = vunpack.c.l.b16 %v287
  %v1312 = vunpack.c.l.b16 %v288
  %v1313 = vunpack.c.l.b16 %v289
  %v1314 = vunpack.c.l.b16 %v290
  %v1315 = vunpack.c.l.b16 %v291
  %v1316 = vunpack.c.l.b16 %v292
  %v1317 = vunpack.c.l.b16 %v293
  %v1318 = vunpack.c.l.b16 %v294
  %v1319 = vunpack.c.l.b16 %v295
  %v1320 = vunpack.c.l.b16 %v296
  %v1321 = vunpack.c.l.b16 %v297
  %v1322 = vunpack.c.l.b16 %v298
  %v1323 = vunpack.c.l.b16 %v299
  %v1324 = vunpack.c.l.b16 %v300
  %v1325 = vunpack.c.l.b16 %v301
  %v1326 = vunpack.c.l.b16 %v302
  %v1327 = vunpack.c.l.b16 %v303
  %v1328 = vunpack.c.l.b16 %v304
  %v1329 = vunpack.c.l.b16 %v305
  %v1330 = vunpack.c.l.b16 %v306
  %v1331 = vunpack.c.l.b16 %v307
  %v1332 = vunpack.c.l.b16 %v308
  %v1333 = vunpack.c.l.b16 %v309
  %v1334 = vunpack.c.l.b16 %v310
  %v1335 = vunpack.c.l.b16 %v311
  %v1336 = vunpack.c.l.b16 %v312
  %v1337 = vunpack.c.l.b16 %v313
  %v1338 = vunpack.c.l.b16 %v314
  %v1339 = vunpack.c.l.b16 %v315
  %v1340 = vunpack.c.l.b16 %v316
  %v1341 = vpack.c.b16 %v1198, %v1197
  %v1342 = vpack.c.b16 %v1200, %v1199
  %v1343 = vpack.c.b16 %v1202, %v1201
  %v1344 = vpack.c.b16 %v1204, %v1203
  %v1345 = vpack.c.b16 %v1206, %v1205
  %v1346 = vpack.c.b16 %v1208, %v1207
  %v1347 = vpack.c.b16 %v1210, %v1209
  %v1348 = vpack.c.b16 %v1212, %v1211
  %v1349 = vpack.c.b16 %v1214, %v1213
  %v1350 = vpack.c.b16 %v1216, %v1215
  %v1351 = vpack.c.b16 %v1218, %v1217
  %v1352 = vpack.c.b16 %v1220, %v1219
  %v1353 = vpack.c.b16 %v1222, %v1221
  %v1354 = vpack.c.b16 %v1224, %v1223
  %v1355 = vpack.c.b16 %v1226, %v1225
  %v1356 = vpack.c.b16 %v1228, %v1227
  %v1357 = vpack.c.b16 %v1230, %v1229
  %v1358 = vpack.c.b16 %v1232, %v1231
  %v1359 = vpack.c.b16 %v1234, %v1233
  %v1360 = vpack.c.b16 %v1236, %v1235
  %v1361 = vpack.c.b16 %v1238, %v1237
  %v1362 = vpack.c.b16 %v1240, %v1239
  %v1363 = vpack.c.b16 %v1242, %v1241
  %v1364 = vpack.c.b16 %v1244, %v1243
  %v1365 = vpack.c.b16 %v1246, %v1245
  %v1366 = vpack.c.b16 %v1248, %v1247
  %v1367 = vpack.c.b16 %v1250, %v1249
  %v1368 = vpack.c.b16 %v1252, %v1251
  %v1369 = vpack.c.b16 %v1254, %v1253
  %v1370 = vpack.c.b16 %v1256, %v1255
  %v1371 = vpack.c.b16 %v1258, %v1257
  %v1372 = vpack.c.b16 %v1260, %v1259
  %v1373 = vpack.c.b16 %v1262, %v1261
  %v1374 = vpack.c.b16 %v1264, %v1263
  %v1375 = vpack.c.b16 %v1266, %v1265
  %v1376 = vpack.c.b16 %v1268, %v1267
  %v1377 = vpack.c.b16 %v1270, %v1269
  %v1378 = vpack.c.b16 %v1272, %v1271
  %v1379 = vpack.c.b16 %v1274, %v1273
  %v1380 = vpack.c.b16 %v1276, %v1275
  %v1381 = vpack.c.b16 %v1278, %v1277
  %v1382 = vpack.c.b16 %v1280, %v1279
  %v1383 = vpack.c.b16 %v1282, %v1281
  %v1384 = vpack.c.b16 %v1284, %v1283
  %v1385 = vpack.c.b16 %v1286, %v1285
  %v1386 = vpack.c.b16 %v1288, %v1287
  %v1387 = vpack.c.b16 %v1290, %v1289
  %v1388 = vpack.c.b16 %v1292, %v1291
  %v1389 = vpack.c.b16 %v1294, %v1293
  %v1390 = vpack.c.b16 %v1296, %v1295
  %v1391 = vpack.c.b16 %v1298, %v1297
  %v1392 = vpack.c.b16 %v1300, %v1299
  %v1393 = vpack.c.b16 %v1302, %v1301
  %v1394 = vpack.c.b16 %v1304, %v1303
  %v1395 = vpack.c.b16 %v1306, %v1305
  %v1396 = vpack.c.b16 %v1308, %v1307
  %v1397 = vpack.c.b16 %v1310, %v1309
  %v1398 = vpack.c.b16 %v1312, %v1311
  %v1399 = vpack.c.b16 %v1314, %v1313
  %v1400 = vpack.c.b16 %v1316, %v1315
  %v1401 = vpack.c.b16 %v1318, %v1317
  %v1402 = vpack.c.b16 %v1320, %v1319
  %v1403 = vpack.c.b16 %v1322, %v1321
  %v1404 = vpack.c.b16 %v1324, %v1323
  %v1405 = vpack.c.b16 %v1326, %v1325
  %v1406 = vpack.c.b16 %v1328, %v1327
  %v1407 = vpack.c.b16 %v1330, %v1329
  %v1408 = vpack.c.b16 %v1332, %v1331
  %v1409 = vpack.c.b16 %v1334, %v1333
  %v1410 = vpack.c.b16 %v1336, %v1335
  %v1411 = vpack.c.b16 %v1338, %v1337
  %v1412 = vpack.c.b16 %v1340, %v1339
  %1485 = vmatpush.bf16.msra.mxu0 %v1348
  %1486 = vmatpush.bf16.msra.mxu0 %v1347
  %1487 = vmatpush.bf16.msra.mxu0 %v1346
  %1488 = vmatpush.bf16.msra.mxu0 %v1345
  %1489 = vmatpush.bf16.msra.mxu0 %v1344
  %1490 = vmatpush.bf16.msra.mxu0 %v1343
  %1491 = vmatpush.bf16.msra.mxu0 %v1342
  %1492 = vmatpush.bf16.msra.mxu0 %v1341
  %1493 = vmatmul.bf16.gmra.mxu0 %v765
  %v1494 = vpop.f32.mrf.mxu0
  %v1495 = vadd.f32 0.0, %v1494
  %v1496 = vpop.f32.mrf.mxu0
  %v1497 = vadd.f32 0.0, %v1496
  %1498 = vmatmul.bf16.gmra.mxu0 %v774
  %v1499 = vpop.f32.mrf.mxu0
  %v1500 = vadd.f32 0.0, %v1499
  %v1501 = vpop.f32.mrf.mxu0
  %v1502 = vadd.f32 0.0, %v1501
  %1503 = vmatmul.bf16.gmra.mxu0 %v783
  %v1504 = vpop.f32.mrf.mxu0
  %v1505 = vadd.f32 0.0, %v1504
  %v1506 = vpop.f32.mrf.mxu0
  %v1507 = vadd.f32 0.0, %v1506
  %1508 = vmatmul.bf16.gmra.mxu0 %v792
  %v1509 = vpop.f32.mrf.mxu0
  %v1510 = vadd.f32 0.0, %v1509
  %v1511 = vpop.f32.mrf.mxu0
  %v1512 = vadd.f32 0.0, %v1511
  %1513 = vmatmul.bf16.gmra.mxu0 %v801
  %v1514 = vpop.f32.mrf.mxu0
  %v1515 = vadd.f32 0.0, %v1514
  %v1516 = vpop.f32.mrf.mxu0
  %v1517 = vadd.f32 0.0, %v1516
  %1518 = vmatmul.bf16.gmra.mxu0 %v810
  %v1519 = vpop.f32.mrf.mxu0
  %v1520 = vadd.f32 0.0, %v1519
  %v1521 = vpop.f32.mrf.mxu0
  %v1522 = vadd.f32 0.0, %v1521
  %1523 = vmatmul.bf16.gmra.mxu0 %v819
  %v1524 = vpop.f32.mrf.mxu0
  %v1525 = vadd.f32 0.0, %v1524
  %v1526 = vpop.f32.mrf.mxu0
  %v1527 = vadd.f32 0.0, %v1526
  %1528 = vmatmul.bf16.gmra.mxu0 %v828
  %v1529 = vpop.f32.mrf.mxu0
  %v1530 = vadd.f32 0.0, %v1529
  %v1531 = vpop.f32.mrf.mxu0
  %v1532 = vadd.f32 0.0, %v1531
  %1533 = vmatmul.bf16.gmra.mxu0 %v837
  %v1534 = vpop.f32.mrf.mxu0
  %v1535 = vadd.f32 0.0, %v1534
  %v1536 = vpop.f32.mrf.mxu0
  %v1537 = vadd.f32 0.0, %v1536
  %1538 = vmatmul.bf16.gmra.mxu0 %v846
  %v1539 = vpop.f32.mrf.mxu0
  %v1540 = vadd.f32 0.0, %v1539
  %v1541 = vpop.f32.mrf.mxu0
  %v1542 = vadd.f32 0.0, %v1541
  %1543 = vmatmul.bf16.gmra.mxu0 %v855
  %v1544 = vpop.f32.mrf.mxu0
  %v1545 = vadd.f32 0.0, %v1544
  %v1546 = vpop.f32.mrf.mxu0
  %v1547 = vadd.f32 0.0, %v1546
  %1548 = vmatmul.bf16.gmra.mxu0 %v864
  %v1549 = vpop.f32.mrf.mxu0
  %v1550 = vadd.f32 0.0, %v1549
  %v1551 = vpop.f32.mrf.mxu0
  %v1552 = vadd.f32 0.0, %v1551
  %1553 = vmatmul.bf16.gmra.mxu0 %v873
  %v1554 = vpop.f32.mrf.mxu0
  %v1555 = vadd.f32 0.0, %v1554
  %v1556 = vpop.f32.mrf.mxu0
  %v1557 = vadd.f32 0.0, %v1556
  %1558 = vmatmul.bf16.gmra.mxu0 %v882
  %v1559 = vpop.f32.mrf.mxu0
  %v1560 = vadd.f32 0.0, %v1559
  %v1561 = vpop.f32.mrf.mxu0
  %v1562 = vadd.f32 0.0, %v1561
  %1563 = vmatmul.bf16.gmra.mxu0 %v891
  %v1564 = vpop.f32.mrf.mxu0
  %v1565 = vadd.f32 0.0, %v1564
  %v1566 = vpop.f32.mrf.mxu0
  %v1567 = vadd.f32 0.0, %v1566
  %1568 = vmatmul.bf16.gmra.mxu0 %v900
  %v1569 = vpop.f32.mrf.mxu0
  %v1570 = vadd.f32 0.0, %v1569
  %v1571 = vpop.f32.mrf.mxu0
  %v1572 = vadd.f32 0.0, %v1571
  %1573 = vdwg.mxu0
  %1574 = vmatpush.bf16.msra.mxu0 %v1356
  %1575 = vmatpush.bf16.msra.mxu0 %v1355
  %1576 = vmatpush.bf16.msra.mxu0 %v1354
  %1577 = vmatpush.bf16.msra.mxu0 %v1353
  %1578 = vmatpush.bf16.msra.mxu0 %v1352
  %1579 = vmatpush.bf16.msra.mxu0 %v1351
  %1580 = vmatpush.bf16.msra.mxu0 %v1350
  %1581 = vmatpush.bf16.msra.mxu0 %v1349
  %1582 = vmatmul.bf16.gmra.mxu0 %v766
  %v1583 = vpop.f32.mrf.mxu0
  %v1584 = vadd.f32 %v1495, %v1583
  %v1585 = vpop.f32.mrf.mxu0
  %v1586 = vadd.f32 %v1497, %v1585
  %1587 = vmatmul.bf16.gmra.mxu0 %v775
  %v1588 = vpop.f32.mrf.mxu0
  %v1589 = vadd.f32 %v1500, %v1588
  %v1590 = vpop.f32.mrf.mxu0
  %v1591 = vadd.f32 %v1502, %v1590
  %1592 = vmatmul.bf16.gmra.mxu0 %v784
  %v1593 = vpop.f32.mrf.mxu0
  %v1594 = vadd.f32 %v1505, %v1593
  %v1595 = vpop.f32.mrf.mxu0
  %v1596 = vadd.f32 %v1507, %v1595
  %1597 = vmatmul.bf16.gmra.mxu0 %v793
  %v1598 = vpop.f32.mrf.mxu0
  %v1599 = vadd.f32 %v1510, %v1598
  %v1600 = vpop.f32.mrf.mxu0
  %v1601 = vadd.f32 %v1512, %v1600
  %1602 = vmatmul.bf16.gmra.mxu0 %v802
  %v1603 = vpop.f32.mrf.mxu0
  %v1604 = vadd.f32 %v1515, %v1603
  %v1605 = vpop.f32.mrf.mxu0
  %v1606 = vadd.f32 %v1517, %v1605
  %1607 = vmatmul.bf16.gmra.mxu0 %v811
  %v1608 = vpop.f32.mrf.mxu0
  %v1609 = vadd.f32 %v1520, %v1608
  %v1610 = vpop.f32.mrf.mxu0
  %v1611 = vadd.f32 %v1522, %v1610
  %1612 = vmatmul.bf16.gmra.mxu0 %v820
  %v1613 = vpop.f32.mrf.mxu0
  %v1614 = vadd.f32 %v1525, %v1613
  %v1615 = vpop.f32.mrf.mxu0
  %v1616 = vadd.f32 %v1527, %v1615
  %1617 = vmatmul.bf16.gmra.mxu0 %v829
  %v1618 = vpop.f32.mrf.mxu0
  %v1619 = vadd.f32 %v1530, %v1618
  %v1620 = vpop.f32.mrf.mxu0
  %v1621 = vadd.f32 %v1532, %v1620
  %1622 = vmatmul.bf16.gmra.mxu0 %v838
  %v1623 = vpop.f32.mrf.mxu0
  %v1624 = vadd.f32 %v1535, %v1623
  %v1625 = vpop.f32.mrf.mxu0
  %v1626 = vadd.f32 %v1537, %v1625
  %1627 = vmatmul.bf16.gmra.mxu0 %v847
  %v1628 = vpop.f32.mrf.mxu0
  %v1629 = vadd.f32 %v1540, %v1628
  %v1630 = vpop.f32.mrf.mxu0
  %v1631 = vadd.f32 %v1542, %v1630
  %1632 = vmatmul.bf16.gmra.mxu0 %v856
  %v1633 = vpop.f32.mrf.mxu0
  %v1634 = vadd.f32 %v1545, %v1633
  %v1635 = vpop.f32.mrf.mxu0
  %v1636 = vadd.f32 %v1547, %v1635
  %1637 = vmatmul.bf16.gmra.mxu0 %v865
  %v1638 = vpop.f32.mrf.mxu0
  %v1639 = vadd.f32 %v1550, %v1638
  %v1640 = vpop.f32.mrf.mxu0
  %v1641 = vadd.f32 %v1552, %v1640
  %1642 = vmatmul.bf16.gmra.mxu0 %v874
  %v1643 = vpop.f32.mrf.mxu0
  %v1644 = vadd.f32 %v1555, %v1643
  %v1645 = vpop.f32.mrf.mxu0
  %v1646 = vadd.f32 %v1557, %v1645
  %1647 = vmatmul.bf16.gmra.mxu0 %v883
  %v1648 = vpop.f32.mrf.mxu0
  %v1649 = vadd.f32 %v1560, %v1648
  %v1650 = vpop.f32.mrf.mxu0
  %v1651 = vadd.f32 %v1562, %v1650
  %1652 = vmatmul.bf16.gmra.mxu0 %v892
  %v1653 = vpop.f32.mrf.mxu0
  %v1654 = vadd.f32 %v1565, %v1653
  %v1655 = vpop.f32.mrf.mxu0
  %v1656 = vadd.f32 %v1567, %v1655
  %1657 = vmatmul.bf16.gmra.mxu0 %v901
  %v1658 = vpop.f32.mrf.mxu0
  %v1659 = vadd.f32 %v1570, %v1658
  %v1660 = vpop.f32.mrf.mxu0
  %v1661 = vadd.f32 %v1572, %v1660
  %1662 = vdwg.mxu0
  %1663 = vmatpush.bf16.msra.mxu0 %v1364
  %1664 = vmatpush.bf16.msra.mxu0 %v1363
  %1665 = vmatpush.bf16.msra.mxu0 %v1362
  %1666 = vmatpush.bf16.msra.mxu0 %v1361
  %1667 = vmatpush.bf16.msra.mxu0 %v1360
  %1668 = vmatpush.bf16.msra.mxu0 %v1359
  %1669 = vmatpush.bf16.msra.mxu0 %v1358
  %1670 = vmatpush.bf16.msra.mxu0 %v1357
  %1671 = vmatmul.bf16.gmra.mxu0 %v767
  %v1672 = vpop.f32.mrf.mxu0
  %v1673 = vadd.f32 %v1584, %v1672
  %v1674 = vpop.f32.mrf.mxu0
  %v1675 = vadd.f32 %v1586, %v1674
  %1676 = vmatmul.bf16.gmra.mxu0 %v776
  %v1677 = vpop.f32.mrf.mxu0
  %v1678 = vadd.f32 %v1589, %v1677
  %v1679 = vpop.f32.mrf.mxu0
  %v1680 = vadd.f32 %v1591, %v1679
  %1681 = vmatmul.bf16.gmra.mxu0 %v785
  %v1682 = vpop.f32.mrf.mxu0
  %v1683 = vadd.f32 %v1594, %v1682
  %v1684 = vpop.f32.mrf.mxu0
  %v1685 = vadd.f32 %v1596, %v1684
  %1686 = vmatmul.bf16.gmra.mxu0 %v794
  %v1687 = vpop.f32.mrf.mxu0
  %v1688 = vadd.f32 %v1599, %v1687
  %v1689 = vpop.f32.mrf.mxu0
  %v1690 = vadd.f32 %v1601, %v1689
  %1691 = vmatmul.bf16.gmra.mxu0 %v803
  %v1692 = vpop.f32.mrf.mxu0
  %v1693 = vadd.f32 %v1604, %v1692
  %v1694 = vpop.f32.mrf.mxu0
  %v1695 = vadd.f32 %v1606, %v1694
  %1696 = vmatmul.bf16.gmra.mxu0 %v812
  %v1697 = vpop.f32.mrf.mxu0
  %v1698 = vadd.f32 %v1609, %v1697
  %v1699 = vpop.f32.mrf.mxu0
  %v1700 = vadd.f32 %v1611, %v1699
  %1701 = vmatmul.bf16.gmra.mxu0 %v821
  %v1702 = vpop.f32.mrf.mxu0
  %v1703 = vadd.f32 %v1614, %v1702
  %v1704 = vpop.f32.mrf.mxu0
  %v1705 = vadd.f32 %v1616, %v1704
  %1706 = vmatmul.bf16.gmra.mxu0 %v830
  %v1707 = vpop.f32.mrf.mxu0
  %v1708 = vadd.f32 %v1619, %v1707
  %v1709 = vpop.f32.mrf.mxu0
  %v1710 = vadd.f32 %v1621, %v1709
  %1711 = vmatmul.bf16.gmra.mxu0 %v839
  %v1712 = vpop.f32.mrf.mxu0
  %v1713 = vadd.f32 %v1624, %v1712
  %v1714 = vpop.f32.mrf.mxu0
  %v1715 = vadd.f32 %v1626, %v1714
  %1716 = vmatmul.bf16.gmra.mxu0 %v848
  %v1717 = vpop.f32.mrf.mxu0
  %v1718 = vadd.f32 %v1629, %v1717
  %v1719 = vpop.f32.mrf.mxu0
  %v1720 = vadd.f32 %v1631, %v1719
  %1721 = vmatmul.bf16.gmra.mxu0 %v857
  %v1722 = vpop.f32.mrf.mxu0
  %v1723 = vadd.f32 %v1634, %v1722
  %v1724 = vpop.f32.mrf.mxu0
  %v1725 = vadd.f32 %v1636, %v1724
  %1726 = vmatmul.bf16.gmra.mxu0 %v866
  %v1727 = vpop.f32.mrf.mxu0
  %v1728 = vadd.f32 %v1639, %v1727
  %v1729 = vpop.f32.mrf.mxu0
  %v1730 = vadd.f32 %v1641, %v1729
  %1731 = vmatmul.bf16.gmra.mxu0 %v875
  %v1732 = vpop.f32.mrf.mxu0
  %v1733 = vadd.f32 %v1644, %v1732
  %v1734 = vpop.f32.mrf.mxu0
  %v1735 = vadd.f32 %v1646, %v1734
  %1736 = vmatmul.bf16.gmra.mxu0 %v884
  %v1737 = vpop.f32.mrf.mxu0
  %v1738 = vadd.f32 %v1649, %v1737
  %v1739 = vpop.f32.mrf.mxu0
  %v1740 = vadd.f32 %v1651, %v1739
  %1741 = vmatmul.bf16.gmra.mxu0 %v893
  %v1742 = vpop.f32.mrf.mxu0
  %v1743 = vadd.f32 %v1654, %v1742
  %v1744 = vpop.f32.mrf.mxu0
  %v1745 = vadd.f32 %v1656, %v1744
  %1746 = vmatmul.bf16.gmra.mxu0 %v902
  %v1747 = vpop.f32.mrf.mxu0
  %v1748 = vadd.f32 %v1659, %v1747
  %v1749 = vpop.f32.mrf.mxu0
  %v1750 = vadd.f32 %v1661, %v1749
  %1751 = vdwg.mxu0
  %1752 = vmatpush.bf16.msra.mxu0 %v1372
  %1753 = vmatpush.bf16.msra.mxu0 %v1371
  %1754 = vmatpush.bf16.msra.mxu0 %v1370
  %1755 = vmatpush.bf16.msra.mxu0 %v1369
  %1756 = vmatpush.bf16.msra.mxu0 %v1368
  %1757 = vmatpush.bf16.msra.mxu0 %v1367
  %1758 = vmatpush.bf16.msra.mxu0 %v1366
  %1759 = vmatpush.bf16.msra.mxu0 %v1365
  %1760 = vmatmul.bf16.gmra.mxu0 %v768
  %v1761 = vpop.f32.mrf.mxu0
  %v1762 = vadd.f32 %v1673, %v1761
  %v1763 = vpop.f32.mrf.mxu0
  %v1764 = vadd.f32 %v1675, %v1763
  %1765 = vmatmul.bf16.gmra.mxu0 %v777
  %v1766 = vpop.f32.mrf.mxu0
  %v1767 = vadd.f32 %v1678, %v1766
  %v1768 = vpop.f32.mrf.mxu0
  %v1769 = vadd.f32 %v1680, %v1768
  %1770 = vmatmul.bf16.gmra.mxu0 %v786
  %v1771 = vpop.f32.mrf.mxu0
  %v1772 = vadd.f32 %v1683, %v1771
  %v1773 = vpop.f32.mrf.mxu0
  %v1774 = vadd.f32 %v1685, %v1773
  %1775 = vmatmul.bf16.gmra.mxu0 %v795
  %v1776 = vpop.f32.mrf.mxu0
  %v1777 = vadd.f32 %v1688, %v1776
  %v1778 = vpop.f32.mrf.mxu0
  %v1779 = vadd.f32 %v1690, %v1778
  %1780 = vmatmul.bf16.gmra.mxu0 %v804
  %v1781 = vpop.f32.mrf.mxu0
  %v1782 = vadd.f32 %v1693, %v1781
  %v1783 = vpop.f32.mrf.mxu0
  %v1784 = vadd.f32 %v1695, %v1783
  %1785 = vmatmul.bf16.gmra.mxu0 %v813
  %v1786 = vpop.f32.mrf.mxu0
  %v1787 = vadd.f32 %v1698, %v1786
  %v1788 = vpop.f32.mrf.mxu0
  %v1789 = vadd.f32 %v1700, %v1788
  %1790 = vmatmul.bf16.gmra.mxu0 %v822
  %v1791 = vpop.f32.mrf.mxu0
  %v1792 = vadd.f32 %v1703, %v1791
  %v1793 = vpop.f32.mrf.mxu0
  %v1794 = vadd.f32 %v1705, %v1793
  %1795 = vmatmul.bf16.gmra.mxu0 %v831
  %v1796 = vpop.f32.mrf.mxu0
  %v1797 = vadd.f32 %v1708, %v1796
  %v1798 = vpop.f32.mrf.mxu0
  %v1799 = vadd.f32 %v1710, %v1798
  %1800 = vmatmul.bf16.gmra.mxu0 %v840
  %v1801 = vpop.f32.mrf.mxu0
  %v1802 = vadd.f32 %v1713, %v1801
  %v1803 = vpop.f32.mrf.mxu0
  %v1804 = vadd.f32 %v1715, %v1803
  %1805 = vmatmul.bf16.gmra.mxu0 %v849
  %v1806 = vpop.f32.mrf.mxu0
  %v1807 = vadd.f32 %v1718, %v1806
  %v1808 = vpop.f32.mrf.mxu0
  %v1809 = vadd.f32 %v1720, %v1808
  %1810 = vmatmul.bf16.gmra.mxu0 %v858
  %v1811 = vpop.f32.mrf.mxu0
  %v1812 = vadd.f32 %v1723, %v1811
  %v1813 = vpop.f32.mrf.mxu0
  %v1814 = vadd.f32 %v1725, %v1813
  %1815 = vmatmul.bf16.gmra.mxu0 %v867
  %v1816 = vpop.f32.mrf.mxu0
  %v1817 = vadd.f32 %v1728, %v1816
  %v1818 = vpop.f32.mrf.mxu0
  %v1819 = vadd.f32 %v1730, %v1818
  %1820 = vmatmul.bf16.gmra.mxu0 %v876
  %v1821 = vpop.f32.mrf.mxu0
  %v1822 = vadd.f32 %v1733, %v1821
  %v1823 = vpop.f32.mrf.mxu0
  %v1824 = vadd.f32 %v1735, %v1823
  %1825 = vmatmul.bf16.gmra.mxu0 %v885
  %v1826 = vpop.f32.mrf.mxu0
  %v1827 = vadd.f32 %v1738, %v1826
  %v1828 = vpop.f32.mrf.mxu0
  %v1829 = vadd.f32 %v1740, %v1828
  %1830 = vmatmul.bf16.gmra.mxu0 %v894
  %v1831 = vpop.f32.mrf.mxu0
  %v1832 = vadd.f32 %v1743, %v1831
  %v1833 = vpop.f32.mrf.mxu0
  %v1834 = vadd.f32 %v1745, %v1833
  %1835 = vmatmul.bf16.gmra.mxu0 %v903
  %v1836 = vpop.f32.mrf.mxu0
  %v1837 = vadd.f32 %v1748, %v1836
  %v1838 = vpop.f32.mrf.mxu0
  %v1839 = vadd.f32 %v1750, %v1838
  %1840 = vdwg.mxu0
  %1841 = vmatpush.bf16.msra.mxu0 %v1380
  %1842 = vmatpush.bf16.msra.mxu0 %v1379
  %1843 = vmatpush.bf16.msra.mxu0 %v1378
  %1844 = vmatpush.bf16.msra.mxu0 %v1377
  %1845 = vmatpush.bf16.msra.mxu0 %v1376
  %1846 = vmatpush.bf16.msra.mxu0 %v1375
  %1847 = vmatpush.bf16.msra.mxu0 %v1374
  %1848 = vmatpush.bf16.msra.mxu0 %v1373
  %1849 = vmatmul.bf16.gmra.mxu0 %v769
  %v1850 = vpop.f32.mrf.mxu0
  %v1851 = vadd.f32 %v1762, %v1850
  %v1852 = vpop.f32.mrf.mxu0
  %v1853 = vadd.f32 %v1764, %v1852
  %1854 = vmatmul.bf16.gmra.mxu0 %v778
  %v1855 = vpop.f32.mrf.mxu0
  %v1856 = vadd.f32 %v1767, %v1855
  %v1857 = vpop.f32.mrf.mxu0
  %v1858 = vadd.f32 %v1769, %v1857
  %1859 = vmatmul.bf16.gmra.mxu0 %v787
  %v1860 = vpop.f32.mrf.mxu0
  %v1861 = vadd.f32 %v1772, %v1860
  %v1862 = vpop.f32.mrf.mxu0
  %v1863 = vadd.f32 %v1774, %v1862
  %1864 = vmatmul.bf16.gmra.mxu0 %v796
  %v1865 = vpop.f32.mrf.mxu0
  %v1866 = vadd.f32 %v1777, %v1865
  %v1867 = vpop.f32.mrf.mxu0
  %v1868 = vadd.f32 %v1779, %v1867
  %1869 = vmatmul.bf16.gmra.mxu0 %v805
  %v1870 = vpop.f32.mrf.mxu0
  %v1871 = vadd.f32 %v1782, %v1870
  %v1872 = vpop.f32.mrf.mxu0
  %v1873 = vadd.f32 %v1784, %v1872
  %1874 = vmatmul.bf16.gmra.mxu0 %v814
  %v1875 = vpop.f32.mrf.mxu0
  %v1876 = vadd.f32 %v1787, %v1875
  %v1877 = vpop.f32.mrf.mxu0
  %v1878 = vadd.f32 %v1789, %v1877
  %1879 = vmatmul.bf16.gmra.mxu0 %v823
  %v1880 = vpop.f32.mrf.mxu0
  %v1881 = vadd.f32 %v1792, %v1880
  %v1882 = vpop.f32.mrf.mxu0
  %v1883 = vadd.f32 %v1794, %v1882
  %1884 = vmatmul.bf16.gmra.mxu0 %v832
  %v1885 = vpop.f32.mrf.mxu0
  %v1886 = vadd.f32 %v1797, %v1885
  %v1887 = vpop.f32.mrf.mxu0
  %v1888 = vadd.f32 %v1799, %v1887
  %1889 = vmatmul.bf16.gmra.mxu0 %v841
  %v1890 = vpop.f32.mrf.mxu0
  %v1891 = vadd.f32 %v1802, %v1890
  %v1892 = vpop.f32.mrf.mxu0
  %v1893 = vadd.f32 %v1804, %v1892
  %1894 = vmatmul.bf16.gmra.mxu0 %v850
  %v1895 = vpop.f32.mrf.mxu0
  %v1896 = vadd.f32 %v1807, %v1895
  %v1897 = vpop.f32.mrf.mxu0
  %v1898 = vadd.f32 %v1809, %v1897
  %1899 = vmatmul.bf16.gmra.mxu0 %v859
  %v1900 = vpop.f32.mrf.mxu0
  %v1901 = vadd.f32 %v1812, %v1900
  %v1902 = vpop.f32.mrf.mxu0
  %v1903 = vadd.f32 %v1814, %v1902
  %1904 = vmatmul.bf16.gmra.mxu0 %v868
  %v1905 = vpop.f32.mrf.mxu0
  %v1906 = vadd.f32 %v1817, %v1905
  %v1907 = vpop.f32.mrf.mxu0
  %v1908 = vadd.f32 %v1819, %v1907
  %1909 = vmatmul.bf16.gmra.mxu0 %v877
  %v1910 = vpop.f32.mrf.mxu0
  %v1911 = vadd.f32 %v1822, %v1910
  %v1912 = vpop.f32.mrf.mxu0
  %v1913 = vadd.f32 %v1824, %v1912
  %1914 = vmatmul.bf16.gmra.mxu0 %v886
  %v1915 = vpop.f32.mrf.mxu0
  %v1916 = vadd.f32 %v1827, %v1915
  %v1917 = vpop.f32.mrf.mxu0
  %v1918 = vadd.f32 %v1829, %v1917
  %1919 = vmatmul.bf16.gmra.mxu0 %v895
  %v1920 = vpop.f32.mrf.mxu0
  %v1921 = vadd.f32 %v1832, %v1920
  %v1922 = vpop.f32.mrf.mxu0
  %v1923 = vadd.f32 %v1834, %v1922
  %1924 = vmatmul.bf16.gmra.mxu0 %v904
  %v1925 = vpop.f32.mrf.mxu0
  %v1926 = vadd.f32 %v1837, %v1925
  %v1927 = vpop.f32.mrf.mxu0
  %v1928 = vadd.f32 %v1839, %v1927
  %1929 = vdwg.mxu0
  %1930 = vmatpush.bf16.msra.mxu0 %v1388
  %1931 = vmatpush.bf16.msra.mxu0 %v1387
  %1932 = vmatpush.bf16.msra.mxu0 %v1386
  %1933 = vmatpush.bf16.msra.mxu0 %v1385
  %1934 = vmatpush.bf16.msra.mxu0 %v1384
  %1935 = vmatpush.bf16.msra.mxu0 %v1383
  %1936 = vmatpush.bf16.msra.mxu0 %v1382
  %1937 = vmatpush.bf16.msra.mxu0 %v1381
  %1938 = vmatmul.bf16.gmra.mxu0 %v770
  %v1939 = vpop.f32.mrf.mxu0
  %v1940 = vadd.f32 %v1851, %v1939
  %v1941 = vpop.f32.mrf.mxu0
  %v1942 = vadd.f32 %v1853, %v1941
  %1943 = vmatmul.bf16.gmra.mxu0 %v779
  %v1944 = vpop.f32.mrf.mxu0
  %v1945 = vadd.f32 %v1856, %v1944
  %v1946 = vpop.f32.mrf.mxu0
  %v1947 = vadd.f32 %v1858, %v1946
  %1948 = vmatmul.bf16.gmra.mxu0 %v788
  %v1949 = vpop.f32.mrf.mxu0
  %v1950 = vadd.f32 %v1861, %v1949
  %v1951 = vpop.f32.mrf.mxu0
  %v1952 = vadd.f32 %v1863, %v1951
  %1953 = vmatmul.bf16.gmra.mxu0 %v797
  %v1954 = vpop.f32.mrf.mxu0
  %v1955 = vadd.f32 %v1866, %v1954
  %v1956 = vpop.f32.mrf.mxu0
  %v1957 = vadd.f32 %v1868, %v1956
  %1958 = vmatmul.bf16.gmra.mxu0 %v806
  %v1959 = vpop.f32.mrf.mxu0
  %v1960 = vadd.f32 %v1871, %v1959
  %v1961 = vpop.f32.mrf.mxu0
  %v1962 = vadd.f32 %v1873, %v1961
  %1963 = vmatmul.bf16.gmra.mxu0 %v815
  %v1964 = vpop.f32.mrf.mxu0
  %v1965 = vadd.f32 %v1876, %v1964
  %v1966 = vpop.f32.mrf.mxu0
  %v1967 = vadd.f32 %v1878, %v1966
  %1968 = vmatmul.bf16.gmra.mxu0 %v824
  %v1969 = vpop.f32.mrf.mxu0
  %v1970 = vadd.f32 %v1881, %v1969
  %v1971 = vpop.f32.mrf.mxu0
  %v1972 = vadd.f32 %v1883, %v1971
  %1973 = vmatmul.bf16.gmra.mxu0 %v833
  %v1974 = vpop.f32.mrf.mxu0
  %v1975 = vadd.f32 %v1886, %v1974
  %v1976 = vpop.f32.mrf.mxu0
  %v1977 = vadd.f32 %v1888, %v1976
  %1978 = vmatmul.bf16.gmra.mxu0 %v842
  %v1979 = vpop.f32.mrf.mxu0
  %v1980 = vadd.f32 %v1891, %v1979
  %v1981 = vpop.f32.mrf.mxu0
  %v1982 = vadd.f32 %v1893, %v1981
  %1983 = vmatmul.bf16.gmra.mxu0 %v851
  %v1984 = vpop.f32.mrf.mxu0
  %v1985 = vadd.f32 %v1896, %v1984
  %v1986 = vpop.f32.mrf.mxu0
  %v1987 = vadd.f32 %v1898, %v1986
  %1988 = vmatmul.bf16.gmra.mxu0 %v860
  %v1989 = vpop.f32.mrf.mxu0
  %v1990 = vadd.f32 %v1901, %v1989
  %v1991 = vpop.f32.mrf.mxu0
  %v1992 = vadd.f32 %v1903, %v1991
  %1993 = vmatmul.bf16.gmra.mxu0 %v869
  %v1994 = vpop.f32.mrf.mxu0
  %v1995 = vadd.f32 %v1906, %v1994
  %v1996 = vpop.f32.mrf.mxu0
  %v1997 = vadd.f32 %v1908, %v1996
  %1998 = vmatmul.bf16.gmra.mxu0 %v878
  %v1999 = vpop.f32.mrf.mxu0
  %v2000 = vadd.f32 %v1911, %v1999
  %v2001 = vpop.f32.mrf.mxu0
  %v2002 = vadd.f32 %v1913, %v2001
  %2003 = vmatmul.bf16.gmra.mxu0 %v887
  %v2004 = vpop.f32.mrf.mxu0
  %v2005 = vadd.f32 %v1916, %v2004
  %v2006 = vpop.f32.mrf.mxu0
  %v2007 = vadd.f32 %v1918, %v2006
  %2008 = vmatmul.bf16.gmra.mxu0 %v896
  %v2009 = vpop.f32.mrf.mxu0
  %v2010 = vadd.f32 %v1921, %v2009
  %v2011 = vpop.f32.mrf.mxu0
  %v2012 = vadd.f32 %v1923, %v2011
  %2013 = vmatmul.bf16.gmra.mxu0 %v905
  %v2014 = vpop.f32.mrf.mxu0
  %v2015 = vadd.f32 %v1926, %v2014
  %v2016 = vpop.f32.mrf.mxu0
  %v2017 = vadd.f32 %v1928, %v2016
  %2018 = vdwg.mxu0
  %2019 = vmatpush.bf16.msra.mxu0 %v1396
  %2020 = vmatpush.bf16.msra.mxu0 %v1395
  %2021 = vmatpush.bf16.msra.mxu0 %v1394
  %2022 = vmatpush.bf16.msra.mxu0 %v1393
  %2023 = vmatpush.bf16.msra.mxu0 %v1392
  %2024 = vmatpush.bf16.msra.mxu0 %v1391
  %2025 = vmatpush.bf16.msra.mxu0 %v1390
  %2026 = vmatpush.bf16.msra.mxu0 %v1389
  %2027 = vmatmul.bf16.gmra.mxu0 %v771
  %v2028 = vpop.f32.mrf.mxu0
  %v2029 = vadd.f32 %v1940, %v2028
  %v2030 = vpop.f32.mrf.mxu0
  %v2031 = vadd.f32 %v1942, %v2030
  %2032 = vmatmul.bf16.gmra.mxu0 %v780
  %v2033 = vpop.f32.mrf.mxu0
  %v2034 = vadd.f32 %v1945, %v2033
  %v2035 = vpop.f32.mrf.mxu0
  %v2036 = vadd.f32 %v1947, %v2035
  %2037 = vmatmul.bf16.gmra.mxu0 %v789
  %v2038 = vpop.f32.mrf.mxu0
  %v2039 = vadd.f32 %v1950, %v2038
  %v2040 = vpop.f32.mrf.mxu0
  %v2041 = vadd.f32 %v1952, %v2040
  %2042 = vmatmul.bf16.gmra.mxu0 %v798
  %v2043 = vpop.f32.mrf.mxu0
  %v2044 = vadd.f32 %v1955, %v2043
  %v2045 = vpop.f32.mrf.mxu0
  %v2046 = vadd.f32 %v1957, %v2045
  %2047 = vmatmul.bf16.gmra.mxu0 %v807
  %v2048 = vpop.f32.mrf.mxu0
  %v2049 = vadd.f32 %v1960, %v2048
  %v2050 = vpop.f32.mrf.mxu0
  %v2051 = vadd.f32 %v1962, %v2050
  %2052 = vmatmul.bf16.gmra.mxu0 %v816
  %v2053 = vpop.f32.mrf.mxu0
  %v2054 = vadd.f32 %v1965, %v2053
  %v2055 = vpop.f32.mrf.mxu0
  %v2056 = vadd.f32 %v1967, %v2055
  %2057 = vmatmul.bf16.gmra.mxu0 %v825
  %v2058 = vpop.f32.mrf.mxu0
  %v2059 = vadd.f32 %v1970, %v2058
  %v2060 = vpop.f32.mrf.mxu0
  %v2061 = vadd.f32 %v1972, %v2060
  %2062 = vmatmul.bf16.gmra.mxu0 %v834
  %v2063 = vpop.f32.mrf.mxu0
  %v2064 = vadd.f32 %v1975, %v2063
  %v2065 = vpop.f32.mrf.mxu0
  %v2066 = vadd.f32 %v1977, %v2065
  %2067 = vmatmul.bf16.gmra.mxu0 %v843
  %v2068 = vpop.f32.mrf.mxu0
  %v2069 = vadd.f32 %v1980, %v2068
  %v2070 = vpop.f32.mrf.mxu0
  %v2071 = vadd.f32 %v1982, %v2070
  %2072 = vmatmul.bf16.gmra.mxu0 %v852
  %v2073 = vpop.f32.mrf.mxu0
  %v2074 = vadd.f32 %v1985, %v2073
  %v2075 = vpop.f32.mrf.mxu0
  %v2076 = vadd.f32 %v1987, %v2075
  %2077 = vmatmul.bf16.gmra.mxu0 %v861
  %v2078 = vpop.f32.mrf.mxu0
  %v2079 = vadd.f32 %v1990, %v2078
  %v2080 = vpop.f32.mrf.mxu0
  %v2081 = vadd.f32 %v1992, %v2080
  %2082 = vmatmul.bf16.gmra.mxu0 %v870
  %v2083 = vpop.f32.mrf.mxu0
  %v2084 = vadd.f32 %v1995, %v2083
  %v2085 = vpop.f32.mrf.mxu0
  %v2086 = vadd.f32 %v1997, %v2085
  %2087 = vmatmul.bf16.gmra.mxu0 %v879
  %v2088 = vpop.f32.mrf.mxu0
  %v2089 = vadd.f32 %v2000, %v2088
  %v2090 = vpop.f32.mrf.mxu0
  %v2091 = vadd.f32 %v2002, %v2090
  %2092 = vmatmul.bf16.gmra.mxu0 %v888
  %v2093 = vpop.f32.mrf.mxu0
  %v2094 = vadd.f32 %v2005, %v2093
  %v2095 = vpop.f32.mrf.mxu0
  %v2096 = vadd.f32 %v2007, %v2095
  %2097 = vmatmul.bf16.gmra.mxu0 %v897
  %v2098 = vpop.f32.mrf.mxu0
  %v2099 = vadd.f32 %v2010, %v2098
  %v2100 = vpop.f32.mrf.mxu0
  %v2101 = vadd.f32 %v2012, %v2100
  %2102 = vmatmul.bf16.gmra.mxu0 %v906
  %v2103 = vpop.f32.mrf.mxu0
  %v2104 = vadd.f32 %v2015, %v2103
  %v2105 = vpop.f32.mrf.mxu0
  %v2106 = vadd.f32 %v2017, %v2105
  %2107 = vdwg.mxu0
  %2108 = vmatpush.bf16.msra.mxu0 %v1404
  %2109 = vmatpush.bf16.msra.mxu0 %v1403
  %2110 = vmatpush.bf16.msra.mxu0 %v1402
  %2111 = vmatpush.bf16.msra.mxu0 %v1401
  %2112 = vmatpush.bf16.msra.mxu0 %v1400
  %2113 = vmatpush.bf16.msra.mxu0 %v1399
  %2114 = vmatpush.bf16.msra.mxu0 %v1398
  %2115 = vmatpush.bf16.msra.mxu0 %v1397
  %2116 = vmatmul.bf16.gmra.mxu0 %v772
  %v2117 = vpop.f32.mrf.mxu0
  %v2118 = vadd.f32 %v2029, %v2117
  %v2119 = vpop.f32.mrf.mxu0
  %v2120 = vadd.f32 %v2031, %v2119
  %2121 = vmatmul.bf16.gmra.mxu0 %v781
  %v2122 = vpop.f32.mrf.mxu0
  %v2123 = vadd.f32 %v2034, %v2122
  %v2124 = vpop.f32.mrf.mxu0
  %v2125 = vadd.f32 %v2036, %v2124
  %2126 = vmatmul.bf16.gmra.mxu0 %v790
  %v2127 = vpop.f32.mrf.mxu0
  %v2128 = vadd.f32 %v2039, %v2127
  %v2129 = vpop.f32.mrf.mxu0
  %v2130 = vadd.f32 %v2041, %v2129
  %2131 = vmatmul.bf16.gmra.mxu0 %v799
  %v2132 = vpop.f32.mrf.mxu0
  %v2133 = vadd.f32 %v2044, %v2132
  %v2134 = vpop.f32.mrf.mxu0
  %v2135 = vadd.f32 %v2046, %v2134
  %2136 = vmatmul.bf16.gmra.mxu0 %v808
  %v2137 = vpop.f32.mrf.mxu0
  %v2138 = vadd.f32 %v2049, %v2137
  %v2139 = vpop.f32.mrf.mxu0
  %v2140 = vadd.f32 %v2051, %v2139
  %2141 = vmatmul.bf16.gmra.mxu0 %v817
  %v2142 = vpop.f32.mrf.mxu0
  %v2143 = vadd.f32 %v2054, %v2142
  %v2144 = vpop.f32.mrf.mxu0
  %v2145 = vadd.f32 %v2056, %v2144
  %2146 = vmatmul.bf16.gmra.mxu0 %v826
  %v2147 = vpop.f32.mrf.mxu0
  %v2148 = vadd.f32 %v2059, %v2147
  %v2149 = vpop.f32.mrf.mxu0
  %v2150 = vadd.f32 %v2061, %v2149
  %2151 = vmatmul.bf16.gmra.mxu0 %v835
  %v2152 = vpop.f32.mrf.mxu0
  %v2153 = vadd.f32 %v2064, %v2152
  %v2154 = vpop.f32.mrf.mxu0
  %v2155 = vadd.f32 %v2066, %v2154
  %2156 = vmatmul.bf16.gmra.mxu0 %v844
  %v2157 = vpop.f32.mrf.mxu0
  %v2158 = vadd.f32 %v2069, %v2157
  %v2159 = vpop.f32.mrf.mxu0
  %v2160 = vadd.f32 %v2071, %v2159
  %2161 = vmatmul.bf16.gmra.mxu0 %v853
  %v2162 = vpop.f32.mrf.mxu0
  %v2163 = vadd.f32 %v2074, %v2162
  %v2164 = vpop.f32.mrf.mxu0
  %v2165 = vadd.f32 %v2076, %v2164
  %2166 = vmatmul.bf16.gmra.mxu0 %v862
  %v2167 = vpop.f32.mrf.mxu0
  %v2168 = vadd.f32 %v2079, %v2167
  %v2169 = vpop.f32.mrf.mxu0
  %v2170 = vadd.f32 %v2081, %v2169
  %2171 = vmatmul.bf16.gmra.mxu0 %v871
  %v2172 = vpop.f32.mrf.mxu0
  %v2173 = vadd.f32 %v2084, %v2172
  %v2174 = vpop.f32.mrf.mxu0
  %v2175 = vadd.f32 %v2086, %v2174
  %2176 = vmatmul.bf16.gmra.mxu0 %v880
  %v2177 = vpop.f32.mrf.mxu0
  %v2178 = vadd.f32 %v2089, %v2177
  %v2179 = vpop.f32.mrf.mxu0
  %v2180 = vadd.f32 %v2091, %v2179
  %2181 = vmatmul.bf16.gmra.mxu0 %v889
  %v2182 = vpop.f32.mrf.mxu0
  %v2183 = vadd.f32 %v2094, %v2182
  %v2184 = vpop.f32.mrf.mxu0
  %v2185 = vadd.f32 %v2096, %v2184
  %2186 = vmatmul.bf16.gmra.mxu0 %v898
  %v2187 = vpop.f32.mrf.mxu0
  %v2188 = vadd.f32 %v2099, %v2187
  %v2189 = vpop.f32.mrf.mxu0
  %v2190 = vadd.f32 %v2101, %v2189
  %2191 = vmatmul.bf16.gmra.mxu0 %v907
  %v2192 = vpop.f32.mrf.mxu0
  %v2193 = vadd.f32 %v2104, %v2192
  %v2194 = vpop.f32.mrf.mxu0
  %v2195 = vadd.f32 %v2106, %v2194
  %2196 = vdwg.mxu0
  %2197 = vmatpush.bf16.msra.mxu0 %v1412
  %2198 = vmatpush.bf16.msra.mxu0 %v1411
  %2199 = vmatpush.bf16.msra.mxu0 %v1410
  %2200 = vmatpush.bf16.msra.mxu0 %v1409
  %2201 = vmatpush.bf16.msra.mxu0 %v1408
  %2202 = vmatpush.bf16.msra.mxu0 %v1407
  %2203 = vmatpush.bf16.msra.mxu0 %v1406
  %2204 = vmatpush.bf16.msra.mxu0 %v1405
  %2205 = vmatmul.bf16.gmra.mxu0 %v773
  %v2206 = vpop.f32.mrf.mxu0
  %v2207 = vadd.f32 %v2118, %v2206
  %v2208 = vpop.f32.mrf.mxu0
  %v2209 = vadd.f32 %v2120, %v2208
  %2210 = vmatmul.bf16.gmra.mxu0 %v782
  %v2211 = vpop.f32.mrf.mxu0
  %v2212 = vadd.f32 %v2123, %v2211
  %v2213 = vpop.f32.mrf.mxu0
  %v2214 = vadd.f32 %v2125, %v2213
  %2215 = vmatmul.bf16.gmra.mxu0 %v791
  %v2216 = vpop.f32.mrf.mxu0
  %v2217 = vadd.f32 %v2128, %v2216
  %v2218 = vpop.f32.mrf.mxu0
  %v2219 = vadd.f32 %v2130, %v2218
  %2220 = vmatmul.bf16.gmra.mxu0 %v800
  %v2221 = vpop.f32.mrf.mxu0
  %v2222 = vadd.f32 %v2133, %v2221
  %v2223 = vpop.f32.mrf.mxu0
  %v2224 = vadd.f32 %v2135, %v2223
  %2225 = vmatmul.bf16.gmra.mxu0 %v809
  %v2226 = vpop.f32.mrf.mxu0
  %v2227 = vadd.f32 %v2138, %v2226
  %v2228 = vpop.f32.mrf.mxu0
  %v2229 = vadd.f32 %v2140, %v2228
  %2230 = vmatmul.bf16.gmra.mxu0 %v818
  %v2231 = vpop.f32.mrf.mxu0
  %v2232 = vadd.f32 %v2143, %v2231
  %v2233 = vpop.f32.mrf.mxu0
  %v2234 = vadd.f32 %v2145, %v2233
  %2235 = vmatmul.bf16.gmra.mxu0 %v827
  %v2236 = vpop.f32.mrf.mxu0
  %v2237 = vadd.f32 %v2148, %v2236
  %v2238 = vpop.f32.mrf.mxu0
  %v2239 = vadd.f32 %v2150, %v2238
  %2240 = vmatmul.bf16.gmra.mxu0 %v836
  %v2241 = vpop.f32.mrf.mxu0
  %v2242 = vadd.f32 %v2153, %v2241
  %v2243 = vpop.f32.mrf.mxu0
  %v2244 = vadd.f32 %v2155, %v2243
  %2245 = vmatmul.bf16.gmra.mxu0 %v845
  %v2246 = vpop.f32.mrf.mxu0
  %v2247 = vadd.f32 %v2158, %v2246
  %v2248 = vpop.f32.mrf.mxu0
  %v2249 = vadd.f32 %v2160, %v2248
  %2250 = vmatmul.bf16.gmra.mxu0 %v854
  %v2251 = vpop.f32.mrf.mxu0
  %v2252 = vadd.f32 %v2163, %v2251
  %v2253 = vpop.f32.mrf.mxu0
  %v2254 = vadd.f32 %v2165, %v2253
  %2255 = vmatmul.bf16.gmra.mxu0 %v863
  %v2256 = vpop.f32.mrf.mxu0
  %v2257 = vadd.f32 %v2168, %v2256
  %v2258 = vpop.f32.mrf.mxu0
  %v2259 = vadd.f32 %v2170, %v2258
  %2260 = vmatmul.bf16.gmra.mxu0 %v872
  %v2261 = vpop.f32.mrf.mxu0
  %v2262 = vadd.f32 %v2173, %v2261
  %v2263 = vpop.f32.mrf.mxu0
  %v2264 = vadd.f32 %v2175, %v2263
  %2265 = vmatmul.bf16.gmra.mxu0 %v881
  %v2266 = vpop.f32.mrf.mxu0
  %v2267 = vadd.f32 %v2178, %v2266
  %v2268 = vpop.f32.mrf.mxu0
  %v2269 = vadd.f32 %v2180, %v2268
  %2270 = vmatmul.bf16.gmra.mxu0 %v890
  %v2271 = vpop.f32.mrf.mxu0
  %v2272 = vadd.f32 %v2183, %v2271
  %v2273 = vpop.f32.mrf.mxu0
  %v2274 = vadd.f32 %v2185, %v2273
  %2275 = vmatmul.bf16.gmra.mxu0 %v899
  %v2276 = vpop.f32.mrf.mxu0
  %v2277 = vadd.f32 %v2188, %v2276
  %v2278 = vpop.f32.mrf.mxu0
  %v2279 = vadd.f32 %v2190, %v2278
  %2280 = vmatmul.bf16.gmra.mxu0 %v908
  %v2281 = vpop.f32.mrf.mxu0
  %v2282 = vadd.f32 %v2193, %v2281
  %v2283 = vpop.f32.mrf.mxu0
  %v2284 = vadd.f32 %v2195, %v2283
  %2285 = vdwg.mxu0
  %v2286 = vpack.c.bf16 %v2207, %v2207
  %v2287 = vpack.c.bf16 %v2209, %v2209
  %v2288 = vpack.c.bf16 %v2212, %v2212
  %v2289 = vpack.c.bf16 %v2214, %v2214
  %v2290 = vpack.c.bf16 %v2217, %v2217
  %v2291 = vpack.c.bf16 %v2219, %v2219
  %v2292 = vpack.c.bf16 %v2222, %v2222
  %v2293 = vpack.c.bf16 %v2224, %v2224
  %v2294 = vpack.c.bf16 %v2227, %v2227
  %v2295 = vpack.c.bf16 %v2229, %v2229
  %v2296 = vpack.c.bf16 %v2232, %v2232
  %v2297 = vpack.c.bf16 %v2234, %v2234
  %v2298 = vpack.c.bf16 %v2237, %v2237
  %v2299 = vpack.c.bf16 %v2239, %v2239
  %v2300 = vpack.c.bf16 %v2242, %v2242
  %v2301 = vpack.c.bf16 %v2244, %v2244
  %v2302 = vpack.c.bf16 %v2247, %v2247
  %v2303 = vpack.c.bf16 %v2249, %v2249
  %v2304 = vpack.c.bf16 %v2252, %v2252
  %v2305 = vpack.c.bf16 %v2254, %v2254
  %v2306 = vpack.c.bf16 %v2257, %v2257
  %v2307 = vpack.c.bf16 %v2259, %v2259
  %v2308 = vpack.c.bf16 %v2262, %v2262
  %v2309 = vpack.c.bf16 %v2264, %v2264
  %v2310 = vpack.c.bf16 %v2267, %v2267
  %v2311 = vpack.c.bf16 %v2269, %v2269
  %v2312 = vpack.c.bf16 %v2272, %v2272
  %v2313 = vpack.c.bf16 %v2274, %v2274
  %v2314 = vpack.c.bf16 %v2277, %v2277
  %v2315 = vpack.c.bf16 %v2279, %v2279
  %v2316 = vpack.c.bf16 %v2282, %v2282
  %v2317 = vpack.c.bf16 %v2284, %v2284
  %2318 = vst [vmem:[%s2] sm:$0xf] %v2286
  %2319 = vst [vmem:[%s2 + $0x4] sm:$0xf] %v2287
  %2320 = vst [vmem:[%s2 + $0x8] sm:$0xf] %v2288
  %2321 = vst [vmem:[%s2 + $0xc] sm:$0xf] %v2289
  %2322 = vst [vmem:[%s2 + $0x10] sm:$0xf] %v2290
  %2323 = vst [vmem:[%s2 + $0x14] sm:$0xf] %v2291
  %2324 = vst [vmem:[%s2 + $0x18] sm:$0xf] %v2292
  %2325 = vst [vmem:[%s2 + $0x1c] sm:$0xf] %v2293
  %2326 = vst [vmem:[%s2 + $0x20] sm:$0xf] %v2294
  %2327 = vst [vmem:[%s2 + $0x24] sm:$0xf] %v2295
  %2328 = vst [vmem:[%s2 + $0x28] sm:$0xf] %v2296
  %2329 = vst [vmem:[%s2 + $0x2c] sm:$0xf] %v2297
  %2330 = vst [vmem:[%s2 + $0x30] sm:$0xf] %v2298
  %2331 = vst [vmem:[%s2 + $0x34] sm:$0xf] %v2299
  %2332 = vst [vmem:[%s2 + $0x38] sm:$0xf] %v2300
  %2333 = vst [vmem:[%s2 + $0x3c] sm:$0xf] %v2301
  %2334 = vst [vmem:[%s2 + $0x40] sm:$0xf] %v2302
  %2335 = vst [vmem:[%s2 + $0x44] sm:$0xf] %v2303
  %2336 = vst [vmem:[%s2 + $0x48] sm:$0xf] %v2304
  %2337 = vst [vmem:[%s2 + $0x4c] sm:$0xf] %v2305
  %2338 = vst [vmem:[%s2 + $0x50] sm:$0xf] %v2306
  %2339 = vst [vmem:[%s2 + $0x54] sm:$0xf] %v2307
  %2340 = vst [vmem:[%s2 + $0x58] sm:$0xf] %v2308
  %2341 = vst [vmem:[%s2 + $0x5c] sm:$0xf] %v2309
  %2342 = vst [vmem:[%s2 + $0x60] sm:$0xf] %v2310
  %2343 = vst [vmem:[%s2 + $0x64] sm:$0xf] %v2311
  %2344 = vst [vmem:[%s2 + $0x68] sm:$0xf] %v2312
  %2345 = vst [vmem:[%s2 + $0x6c] sm:$0xf] %v2313
  %2346 = vst [vmem:[%s2 + $0x70] sm:$0xf] %v2314
  %2347 = vst [vmem:[%s2 + $0x74] sm:$0xf] %v2315
  %2348 = vst [vmem:[%s2 + $0x78] sm:$0xf] %v2316
  %2349 = vst [vmem:[%s2 + $0x7c] sm:$0xf] %v2317
  %v2350 = vadd.f32 %v2207, %v2209
  %v2351 = vadd.f32 %v2350, %v2212
  %v2352 = vadd.f32 %v2351, %v2214
  %v2353 = vadd.f32 %v2352, %v2217
  %v2354 = vadd.f32 %v2353, %v2219
  %v2355 = vadd.f32 %v2354, %v2222
  %v2356 = vadd.f32 %v2355, %v2224
  %v2357 = vadd.f32 %v2356, %v2227
  %v2358 = vadd.f32 %v2357, %v2229
  %v2359 = vadd.f32 %v2358, %v2232
  %v2360 = vadd.f32 %v2359, %v2234
  %v2361 = vadd.f32 %v2360, %v2237
  %v2362 = vadd.f32 %v2361, %v2239
  %v2363 = vadd.f32 %v2362, %v2242
  %v2364 = vadd.f32 %v2363, %v2244
  %v2365 = vadd.f32 %v2364, %v2247
  %v2366 = vadd.f32 %v2365, %v2249
  %v2367 = vadd.f32 %v2366, %v2252
  %v2368 = vadd.f32 %v2367, %v2254
  %v2369 = vadd.f32 %v2368, %v2257
  %v2370 = vadd.f32 %v2369, %v2259
  %v2371 = vadd.f32 %v2370, %v2262
  %v2372 = vadd.f32 %v2371, %v2264
  %v2373 = vadd.f32 %v2372, %v2267
  %v2374 = vadd.f32 %v2373, %v2269
  %v2375 = vadd.f32 %v2374, %v2272
  %v2376 = vadd.f32 %v2375, %v2274
  %v2377 = vadd.f32 %v2376, %v2277
  %v2378 = vadd.f32 %v2377, %v2279
  %v2379 = vadd.f32 %v2378, %v2282
  %v2380 = vadd.f32 %v2379, %v2284
  %v2381 = vrot.slane %v2380, 4
  %v2382 = vadd.f32 %v2380, %v2381
  %v2383 = vrot.slane %v2382, 2
  %v2384 = vadd.f32 %v2382, %v2383
  %v2385 = vrot.slane %v2384, 1
  %v2386 = vadd.f32 %v2384, %v2385
  %v2387 = vmul.f32 %v2207, %v2207
  %v2388 = vmul.f32 %v2209, %v2209
  %v2389 = vmul.f32 %v2212, %v2212
  %v2390 = vmul.f32 %v2214, %v2214
  %v2391 = vmul.f32 %v2217, %v2217
  %v2392 = vmul.f32 %v2219, %v2219
  %v2393 = vmul.f32 %v2222, %v2222
  %v2394 = vmul.f32 %v2224, %v2224
  %v2395 = vmul.f32 %v2227, %v2227
  %v2396 = vmul.f32 %v2229, %v2229
  %v2397 = vmul.f32 %v2232, %v2232
  %v2398 = vmul.f32 %v2234, %v2234
  %v2399 = vmul.f32 %v2237, %v2237
  %v2400 = vmul.f32 %v2239, %v2239
  %v2401 = vmul.f32 %v2242, %v2242
  %v2402 = vmul.f32 %v2244, %v2244
  %v2403 = vmul.f32 %v2247, %v2247
  %v2404 = vmul.f32 %v2249, %v2249
  %v2405 = vmul.f32 %v2252, %v2252
  %v2406 = vmul.f32 %v2254, %v2254
  %v2407 = vmul.f32 %v2257, %v2257
  %v2408 = vmul.f32 %v2259, %v2259
  %v2409 = vmul.f32 %v2262, %v2262
  %v2410 = vmul.f32 %v2264, %v2264
  %v2411 = vmul.f32 %v2267, %v2267
  %v2412 = vmul.f32 %v2269, %v2269
  %v2413 = vmul.f32 %v2272, %v2272
  %v2414 = vmul.f32 %v2274, %v2274
  %v2415 = vmul.f32 %v2277, %v2277
  %v2416 = vmul.f32 %v2279, %v2279
  %v2417 = vmul.f32 %v2282, %v2282
  %v2418 = vmul.f32 %v2284, %v2284
  %v2419 = vadd.f32 %v2387, %v2388
  %v2420 = vadd.f32 %v2419, %v2389
  %v2421 = vadd.f32 %v2420, %v2390
  %v2422 = vadd.f32 %v2421, %v2391
  %v2423 = vadd.f32 %v2422, %v2392
  %v2424 = vadd.f32 %v2423, %v2393
  %v2425 = vadd.f32 %v2424, %v2394
  %v2426 = vadd.f32 %v2425, %v2395
  %v2427 = vadd.f32 %v2426, %v2396
  %v2428 = vadd.f32 %v2427, %v2397
  %v2429 = vadd.f32 %v2428, %v2398
  %v2430 = vadd.f32 %v2429, %v2399
  %v2431 = vadd.f32 %v2430, %v2400
  %v2432 = vadd.f32 %v2431, %v2401
  %v2433 = vadd.f32 %v2432, %v2402
  %v2434 = vadd.f32 %v2433, %v2403
  %v2435 = vadd.f32 %v2434, %v2404
  %v2436 = vadd.f32 %v2435, %v2405
  %v2437 = vadd.f32 %v2436, %v2406
  %v2438 = vadd.f32 %v2437, %v2407
  %v2439 = vadd.f32 %v2438, %v2408
  %v2440 = vadd.f32 %v2439, %v2409
  %v2441 = vadd.f32 %v2440, %v2410
  %v2442 = vadd.f32 %v2441, %v2411
  %v2443 = vadd.f32 %v2442, %v2412
  %v2444 = vadd.f32 %v2443, %v2413
  %v2445 = vadd.f32 %v2444, %v2414
  %v2446 = vadd.f32 %v2445, %v2415
  %v2447 = vadd.f32 %v2446, %v2416
  %v2448 = vadd.f32 %v2447, %v2417
  %v2449 = vadd.f32 %v2448, %v2418
  %v2450 = vrot.slane %v2449, 4
  %v2451 = vadd.f32 %v2449, %v2450
  %v2452 = vrot.slane %v2451, 2
  %v2453 = vadd.f32 %v2451, %v2452
  %v2454 = vrot.slane %v2453, 1
  %v2455 = vadd.f32 %v2453, %v2454
  %vm2456 = vcmask 1040384
  %v2457 = vsel %vm2456, %v2386, %v2455
  %2458 = vst [vmem:[%s3] sm:$0x3] %v2457
  // Predicated region
  $region10: #{residual_block.7} parent=0 // pred_check
    _
  $region11: #{residual_block.7} parent=0 // pred_check_branch
    %2460 = sbr.rel (0) target = $region13
  $region12: #{residual_block.7} parent=0 // pred_region
    _
  $region13: #{residual_block.7} parent=0 // pred_fallthru
    _
  // Predicated region
  $region14: #{residual_block.7} parent=0 // pred_check
    _
  $region15: #{residual_block.7} parent=0 // pred_check_branch
    %2462 = sbr.rel (0) target = $region17
  $region16: #{residual_block.7} parent=0 // pred_region
    _
  $region17: #{residual_block.7} parent=0 // pred_fallthru
    _
  // Predicated region
  $region18: #{residual_block.7} parent=0 // pred_check
    _
  $region19: #{residual_block.7} parent=0 // pred_check_branch
    %2464 = sbr.rel (0) target = $region21
  $region20: #{residual_block.7} parent=0 // pred_region
    _
  $region21: #{residual_block.7} parent=0 // pred_fallthru
    _
  // Predicated region
  $region22: #{residual_block.7} parent=0 // pred_check
    _
  $region23: #{residual_block.7} parent=0 // pred_check_branch
    %2466 = sbr.rel (0) target = $region25
  $region24: #{residual_block.7} parent=0 // pred_region
    _
  $region25: #{residual_block.7} parent=0 // pred_fallthru
    _

</llo_original>
